<compile_context>
chip_gen: v7x
topology: tpu7x:2x2x1
jax: 0.10.0
libtpu: 0.0.40
codegen_flags: <defaults>
</compile_context>

<pallas_src>
import functools

import jax
import jax.numpy as jnp
from jax import lax
from jax.experimental import pallas as pl
from jax.experimental.pallas import tpu as pltpu


def _round_up(x: int, m: int) -> int:
    return ((x + m - 1) // m) * m


def _cdiv(a: int, b: int) -> int:
    return -(-a // b)


def _mish(x):
    # mish(x) = x * tanh(softplus(x)) = x * ((1+e^x)^2 - 1) / ((1+e^x)^2 + 1)
    # One EUP exp + one approx EUP reciprocal; the rest is VPU work. The clamp
    # keeps (1+e^x)^2 finite; for x >= 20 the ratio rounds to 1.0 (mish(x)==x).
    e = jnp.exp(jnp.minimum(x, 20.0))
    w = (1.0 + e) * (1.0 + e)
    num = w - 1.0
    den = w + 1.0
    if x.dtype == jnp.float32:
        r = pl.reciprocal(den, approx=True)
    else:
        # Approx EUP rcp in f32; the converts are cheap VPU pack/unpack ops.
        r = pl.reciprocal(den.astype(jnp.float32), approx=True).astype(x.dtype)
    return x * num * r


def _hold_kernel(x_ref, w1_ref, b1_ref, w2_ref, b2_ref, o_ref, *,
                 chunk, n_chunks, compute_dtype, activation_dtype):
    # x_ref : (tile, node_dim)   VMEM   node-feature tile (last block may be ragged)
    # w1_ref: (node_dim, hidden) VMEM   layer-1 weight (resident, same every step)
    # b1_ref: (1, hidden)        VMEM
    # w2_ref: (1, hidden)        VMEM   layer-2 weight as a row
    # b2_ref: (1,)               SMEM   scalar bias
    # o_ref : (1, tile)          VMEM   lane-dense output row
    w1 = w1_ref[...]
    if compute_dtype is not None:
        w1 = w1.astype(compute_dtype)
    b1 = b1_ref[...]                                   # (1, hidden) f32
    w2 = w2_ref[...]                                   # (1, hidden)
    if activation_dtype is not None:
        w2 = w2.astype(activation_dtype)
    b2 = b2_ref[0]                                     # scalar from SMEM

    def body(c, carry):
        start = pl.multiple_of(c * chunk, chunk)
        x = x_ref[pl.ds(start, chunk), :]
        if compute_dtype is not None:
            x = x.astype(compute_dtype)
        h = jnp.dot(x, w1, preferred_element_type=jnp.float32) + b1
        if activation_dtype is not None:
            h = h.astype(activation_dtype)
        h = _mish(h)
        # Second projection: VPU multiply + cross-lane (XLU) reduce with f32
        # accumulation, instead of an MXU matmul with a single output column.
        out = jnp.sum((h * w2).astype(jnp.float32), axis=-1) + b2
        o_ref[:, pl.ds(start, chunk)] = out[None, :].astype(o_ref.dtype)
        return carry

    lax.fori_loop(0, n_chunks, body, 0, unroll=min(n_chunks, 8))


def _auto_dtypes():
    """bf16 matmul inputs + bf16 activations on bf16-native gens (v6e/v7x)."""
    try:
        kind = jax.devices()[0].device_kind.lower()
    except Exception:
        kind = ""
    if ("v6" in kind) or ("v7" in kind) or ("7x" in kind):
        return jnp.bfloat16, jnp.bfloat16
    # v5e and older: VPU/EUP have no bf16 path -> keep f32 compute.
    return None, None


def hold_module_forward(node_feature, w1, b1, w2, b2, *,
                        tile_n=8192, compute_dtype="auto", activation_dtype="auto"):
    """Pallas implementation of HoldModule.forward (use_hold=True path).

    node_feature: [N, node_dim] stacked node features (rows = nodes)
    w1: [node_dim, hidden], b1: [hidden], w2: [hidden, 1] (or [hidden]), b2: [1]
    compute_dtype / activation_dtype: "auto" picks bf16 on v6e/v7x, f32 on v5e;
      pass None to force f32, or an explicit dtype.
    Returns [N, 1].
    """
    n, d = node_feature.shape
    hidden = w1.shape[1]
    itemsize = node_feature.dtype.itemsize

    if isinstance(compute_dtype, str) or isinstance(activation_dtype, str):
        auto_c, auto_a = _auto_dtypes()
        if isinstance(compute_dtype, str):
            compute_dtype = auto_c
        if isinstance(activation_dtype, str):
            activation_dtype = auto_a

    # In-kernel chunk so each fused matmul->mish->reduce working set fits the
    # 64-vreg file: f32 (256,128) = 32 vregs, bf16 (512,128) = 32 vregs.
    chunk = 512 if activation_dtype == jnp.bfloat16 else 256

    # Tile selection: big tiles amortize the ~0.35us per-grid-step overhead
    # (target >= ~1 MB of node features per step). Cap so the double-buffered,
    # lane-padded x tile stays well inside v7x's smaller (64 MiB) VMEM.
    max_tile = (24 * 1024 * 1024) // (2 * 128 * itemsize)
    tile = _round_up(min(max(tile_n, chunk), max(n, 1), max_tile), chunk)
    grid_steps = _cdiv(n, tile)
    # Megacore (v7x) split, size-gated: only force >= 2 grid steps when each
    # half gets enough rows (>= 2048) to be worth the extra per-step overhead.
    if grid_steps < 2 and n >= 2 * 2048:
        tile = _round_up(_cdiv(n, 2), chunk)
        grid_steps = _cdiv(n, tile)
    n_pad = grid_steps * tile          # output is lane-padded; sliced below
    n_chunks = tile // chunk

    b1_row = b1.reshape(1, hidden)
    w2_row = w2.reshape(1, hidden)
    b2_vec = b2.reshape(1)

    kernel = functools.partial(
        _hold_kernel, chunk=chunk, n_chunks=n_chunks,
        compute_dtype=compute_dtype, activation_dtype=activation_dtype)

    # Explicit VMEM budget: lane-padded x double buffer + output rows +
    # per-chunk mish temporaries + resident weights, plus slack.
    vmem_est = (2 * tile * 128 * itemsize          # x tile (lanes padded to 128), x2 buffers
                + 2 * 8 * tile * itemsize          # (1, tile) output rows, x2 buffers
                + 8 * chunk * hidden * 4           # mish / matmul temporaries
                + 4 * d * hidden * 4)              # W1, b1, W2
    vmem_limit = int(min(max(vmem_est + (8 << 20), 32 << 20), 48 << 20))

    out = pl.pallas_call(
        kernel,
        out_shape=jax.ShapeDtypeStruct((1, n_pad), node_feature.dtype),
        grid_spec=pltpu.PrefetchScalarGridSpec(
            num_scalar_prefetch=0,
            grid=(grid_steps,),
            in_specs=[
                pl.BlockSpec((tile, d), lambda i: (i, 0)),           # node features
                pl.BlockSpec((d, hidden), lambda i: (0, 0)),         # W1 (full, resident)
                pl.BlockSpec((1, hidden), lambda i: (0, 0)),         # b1 row
                pl.BlockSpec((1, hidden), lambda i: (0, 0)),         # W2 row
                pl.BlockSpec(memory_space=pltpu.MemorySpace.SMEM),   # b2 scalar
            ],
            out_specs=pl.BlockSpec((1, tile), lambda i: (0, i)),     # lane-dense row
        ),
        compiler_params=pltpu.CompilerParams(
            dimension_semantics=("parallel",),
            vmem_limit_bytes=vmem_limit,
        ),
    )(node_feature, w1, b1_row, w2_row, b2_vec)

    # Lane-dense (1, n_pad) -> logical (N, 1); padded rows (garbage) sliced off.
    return out.reshape(n_pad)[:n].reshape(n, 1)


def _reference(node_feature, w1, b1, w2, b2):
    h = node_feature @ w1 + b1
    h = h * jnp.tanh(jnp.logaddexp(h, 0.0))   # mish = x * tanh(softplus(x))
    return h @ w2 + b2


if __name__ == "__main__":
    key = jax.random.PRNGKey(0)
    node_dim = 32       # node feature dimension
    hidden = 128        # num_neurons=[128]

    k_x, k_w1, k_b1, k_w2, k_b2, k_x2 = jax.random.split(key, 6)

    # Deterministic synthetic parameters for MLP(node_dim -> 128 -> 1).
    w1 = jax.random.normal(k_w1, (node_dim, hidden), dtype=jnp.float32) * 0.05
    b1 = jax.random.normal(k_b1, (hidden,), dtype=jnp.float32) * 0.01
    w2 = jax.random.normal(k_w2, (hidden, 1), dtype=jnp.float32) * 0.05
    b2 = jax.random.normal(k_b2, (1,), dtype=jnp.float32) * 0.01

    # Case 1: small ragged graph (500 nodes -> one 512-row block, no wrapper pad).
    x_small = jax.random.normal(k_x, (500, node_dim), dtype=jnp.float32)
    # Case 2: larger graph exercising the size-gated 2-step (megacore) grid.
    x_big = jax.random.normal(k_x2, (4500, node_dim), dtype=jnp.float32)

    for x in (x_small, x_big):
        ref = _reference(x, w1, b1.reshape(1, -1), w2, b2.reshape(1, 1))

        # Accuracy mode: f32 everywhere (only the approx EUP reciprocal differs).
        out_f32 = jax.block_until_ready(
            hold_module_forward(x, w1, b1, w2, b2,
                                compute_dtype=None, activation_dtype=None))
        assert out_f32.shape == (x.shape[0], 1)
        assert jnp.allclose(out_f32, ref, atol=2e-3, rtol=2e-3)

        # Fast mode: auto dtypes (bf16 matmul/activations on v6e/v7x, f32 on v5e).
        out_fast = jax.block_until_ready(hold_module_forward(x, w1, b1, w2, b2))
        assert out_fast.shape == (x.shape[0], 1)
        assert jnp.allclose(out_fast, ref, atol=3e-2, rtol=3e-2)

    # TODO(synk): DGL graph bookkeeping (graph.ndata / apply_nodes) is pure data
    # plumbing and is intentionally not reproduced; the kernel consumes the
    # stacked node-feature matrix directly.
    print("KERNEL_OK")
</pallas_src>

<mosaic_0001>
module attributes {stable_mosaic.version = 11 : i64} {
  func.func @_hold_kernel(%arg0: i32, %arg1: memref<512x32xf32, #tpu.memory_space<vmem>>, %arg2: memref<32x128xf32, #tpu.memory_space<vmem>>, %arg3: memref<1x128xf32, #tpu.memory_space<vmem>>, %arg4: memref<1x128xf32, #tpu.memory_space<vmem>>, %arg5: memref<1xf32, #tpu.memory_space<smem>>, %arg6: memref<1x512xf32, #tpu.memory_space<vmem>>) attributes {dimension_semantics = [#tpu.dimension_semantics<parallel>], iteration_bounds = array<i64: 1>, scalar_prefetch = 0 : i64, scratch_operands = 0 : i64, tpu.core_type = #tpu.core_type<tc>, window_params = [{transform_indices = @transform_0, window_bounds = array<i64: 512, 32>}, {pipeline_mode = #tpu.pipeline_mode<synchronous>, transform_indices = @transform_1, window_bounds = array<i64: 32, 128>}, {pipeline_mode = #tpu.pipeline_mode<synchronous>, transform_indices = @transform_2, window_bounds = array<i64: 1, 128>}, {pipeline_mode = #tpu.pipeline_mode<synchronous>, transform_indices = @transform_3, window_bounds = array<i64: 1, 128>}, {transform_indices = @transform_4, window_bounds = array<i64: 1>}, {transform_indices = @transform_5, window_bounds = array<i64: 1, 512>}]} {
    %c0 = arith.constant 0 : index
    %c0_0 = arith.constant 0 : index
    %0 = vector.load %arg2[%c0, %c0_0] : memref<32x128xf32, #tpu.memory_space<vmem>>, vector<32x128xf32>
    %c0_1 = arith.constant 0 : index
    %c0_2 = arith.constant 0 : index
    %1 = vector.load %arg3[%c0_1, %c0_2] : memref<1x128xf32, #tpu.memory_space<vmem>>, vector<1x128xf32>
    %c0_3 = arith.constant 0 : index
    %c0_4 = arith.constant 0 : index
    %2 = vector.load %arg4[%c0_3, %c0_4] : memref<1x128xf32, #tpu.memory_space<vmem>>, vector<1x128xf32>
    %c0_5 = arith.constant 0 : index
    %3 = memref.load %arg5[%c0_5] : memref<1xf32, #tpu.memory_space<smem>>
    %c0_i32 = arith.constant 0 : i32
    %c256_i32 = arith.constant 256 : i32
    %4 = arith.muli %c0_i32, %c256_i32 : i32
    %5 = tpu.assume_multiple %4, 256 : i32
    %6 = arith.index_cast %5 : i32 to index
    %c0_6 = arith.constant 0 : index
    %7 = vector.load %arg1[%6, %c0_6] : memref<512x32xf32, #tpu.memory_space<vmem>>, vector<256x32xf32>
    %cst = arith.constant dense<0.000000e+00> : vector<256x128xf32>
    %8 = tpu.matmul %7, %0, %cst {dimension_numbers = #tpu.dot_dimension_numbers<[1], [0], [0], [1], [0, 0, 1, 1], [], []>} : vector<256x32xf32>, vector<32x128xf32>, vector<256x128xf32> -> vector<256x128xf32>
    %9 = vector.broadcast %1 : vector<1x128xf32> to vector<256x128xf32>
    %10 = arith.addf %8, %9 : vector<256x128xf32>
    %cst_7 = arith.constant 2.000000e+01 : f32
    %11 = vector.broadcast %cst_7 : f32 to vector<256x128xf32>
    %12 = arith.minimumf %10, %11 : vector<256x128xf32>
    %13 = math.exp %12 : vector<256x128xf32>
    %cst_8 = arith.constant 1.000000e+00 : f32
    %14 = vector.broadcast %cst_8 : f32 to vector<256x128xf32>
    %15 = arith.addf %14, %13 : vector<256x128xf32>
    %cst_9 = arith.constant 1.000000e+00 : f32
    %16 = vector.broadcast %cst_9 : f32 to vector<256x128xf32>
    %17 = arith.addf %16, %13 : vector<256x128xf32>
    %18 = arith.mulf %15, %17 : vector<256x128xf32>
    %cst_10 = arith.constant 1.000000e+00 : f32
    %19 = vector.broadcast %cst_10 : f32 to vector<256x128xf32>
    %20 = arith.subf %18, %19 : vector<256x128xf32>
    %cst_11 = arith.constant 1.000000e+00 : f32
    %21 = vector.broadcast %cst_11 : f32 to vector<256x128xf32>
    %22 = arith.addf %18, %21 : vector<256x128xf32>
    %23 = tpu.reciprocal %22 {approx = true} : vector<256x128xf32> -> vector<256x128xf32>
    %24 = arith.mulf %10, %20 : vector<256x128xf32>
    %25 = arith.mulf %24, %23 : vector<256x128xf32>
    %26 = vector.broadcast %2 : vector<1x128xf32> to vector<256x128xf32>
    %27 = arith.mulf %25, %26 : vector<256x128xf32>
    %cst_12 = arith.constant dense<0.000000e+00> : vector<256xf32>
    %28 = vector.multi_reduction <add>, %27, %cst_12 [1] : vector<256x128xf32> to vector<256xf32>
    %29 = vector.broadcast %3 : f32 to vector<256xf32>
    %30 = arith.addf %28, %29 : vector<256xf32>
    %31 = vector.shape_cast %30 : vector<256xf32> to vector<1x256xf32>
    %c0_13 = arith.constant 0 : index
    %32 = arith.index_cast %5 : i32 to index
    %33 = vector.load %arg6[%c0_13, %32] : memref<1x512xf32, #tpu.memory_space<vmem>>, vector<1x256xf32>
    tpu.vector_store %arg6[%c0_13, %32], %31 {strides = array<i32>} : memref<1x512xf32, #tpu.memory_space<vmem>>, vector<1x256xf32>,
    %c1_i32 = arith.constant 1 : i32
    %c256_i32_14 = arith.constant 256 : i32
    %34 = arith.muli %c1_i32, %c256_i32_14 : i32
    %35 = tpu.assume_multiple %34, 256 : i32
    %36 = arith.index_cast %35 : i32 to index
    %c0_15 = arith.constant 0 : index
    %37 = vector.load %arg1[%36, %c0_15] : memref<512x32xf32, #tpu.memory_space<vmem>>, vector<256x32xf32>
    %cst_16 = arith.constant dense<0.000000e+00> : vector<256x128xf32>
    %38 = tpu.matmul %37, %0, %cst_16 {dimension_numbers = #tpu.dot_dimension_numbers<[1], [0], [0], [1], [0, 0, 1, 1], [], []>} : vector<256x32xf32>, vector<32x128xf32>, vector<256x128xf32> -> vector<256x128xf32>
    %39 = vector.broadcast %1 : vector<1x128xf32> to vector<256x128xf32>
    %40 = arith.addf %38, %39 : vector<256x128xf32>
    %cst_17 = arith.constant 2.000000e+01 : f32
    %41 = vector.broadcast %cst_17 : f32 to vector<256x128xf32>
    %42 = arith.minimumf %40, %41 : vector<256x128xf32>
    %43 = math.exp %42 : vector<256x128xf32>
    %cst_18 = arith.constant 1.000000e+00 : f32
    %44 = vector.broadcast %cst_18 : f32 to vector<256x128xf32>
    %45 = arith.addf %44, %43 : vector<256x128xf32>
    %cst_19 = arith.constant 1.000000e+00 : f32
    %46 = vector.broadcast %cst_19 : f32 to vector<256x128xf32>
    %47 = arith.addf %46, %43 : vector<256x128xf32>
    %48 = arith.mulf %45, %47 : vector<256x128xf32>
    %cst_20 = arith.constant 1.000000e+00 : f32
    %49 = vector.broadcast %cst_20 : f32 to vector<256x128xf32>
    %50 = arith.subf %48, %49 : vector<256x128xf32>
    %cst_21 = arith.constant 1.000000e+00 : f32
    %51 = vector.broadcast %cst_21 : f32 to vector<256x128xf32>
    %52 = arith.addf %48, %51 : vector<256x128xf32>
    %53 = tpu.reciprocal %52 {approx = true} : vector<256x128xf32> -> vector<256x128xf32>
    %54 = arith.mulf %40, %50 : vector<256x128xf32>
    %55 = arith.mulf %54, %53 : vector<256x128xf32>
    %56 = vector.broadcast %2 : vector<1x128xf32> to vector<256x128xf32>
    %57 = arith.mulf %55, %56 : vector<256x128xf32>
    %cst_22 = arith.constant dense<0.000000e+00> : vector<256xf32>
    %58 = vector.multi_reduction <add>, %57, %cst_22 [1] : vector<256x128xf32> to vector<256xf32>
    %59 = vector.broadcast %3 : f32 to vector<256xf32>
    %60 = arith.addf %58, %59 : vector<256xf32>
    %61 = vector.shape_cast %60 : vector<256xf32> to vector<1x256xf32>
    %c0_23 = arith.constant 0 : index
    %62 = arith.index_cast %35 : i32 to index
    %63 = vector.load %arg6[%c0_23, %62] : memref<1x512xf32, #tpu.memory_space<vmem>>, vector<1x256xf32>
    tpu.vector_store %arg6[%c0_23, %62], %61 {strides = array<i32>} : memref<1x512xf32, #tpu.memory_space<vmem>>, vector<1x256xf32>,
    %c2_i32 = arith.constant 2 : i32
    return
  }
  func.func @transform_0(%arg0: i32) -> (i32, i32) {
    %c0_i32 = arith.constant 0 : i32
    %c0_i32_0 = arith.constant 0 : i32
    return %arg0, %c0_i32 : i32, i32
  }
  func.func @transform_1(%arg0: i32) -> (i32, i32) {
    %c0_i32 = arith.constant 0 : i32
    %c0_i32_0 = arith.constant 0 : i32
    %c0_i32_1 = arith.constant 0 : i32
    return %c0_i32, %c0_i32_0 : i32, i32
  }
  func.func @transform_2(%arg0: i32) -> (i32, i32) {
    %c0_i32 = arith.constant 0 : i32
    %c0_i32_0 = arith.constant 0 : i32
    %c0_i32_1 = arith.constant 0 : i32
    return %c0_i32, %c0_i32_0 : i32, i32
  }
  func.func @transform_3(%arg0: i32) -> (i32, i32) {
    %c0_i32 = arith.constant 0 : i32
    %c0_i32_0 = arith.constant 0 : i32
    %c0_i32_1 = arith.constant 0 : i32
    return %c0_i32, %c0_i32_0 : i32, i32
  }
  func.func @transform_4(%arg0: i32) -> i32 {
    %c0_i32 = arith.constant 0 : i32
    %c0_i32_0 = arith.constant 0 : i32
    return %c0_i32 : i32
  }
  func.func @transform_5(%arg0: i32) -> (i32, i32) {
    %c0_i32 = arith.constant 0 : i32
    %c0_i32_0 = arith.constant 0 : i32
    return %c0_i32, %arg0 : i32, i32
  }
}

</mosaic_0001>

<llo_original>
// kernel: tpu_custom_call.1
$region0: #{tpu_custom_call.1}
  #allocation0 [shape = 'u32[]', space=smem, size = 0x4, offset = 0x4, fixed_abs, tag = 'smem constant byte address 0x4 - core index']
  #allocation1 [shape = 'u32[144,128]{1,0:T(1,128)}', space=vmem, size = 0x12000, scoped, tag = 'internal scratch']
  #allocation2 [shape = 'f32[1]{0:T(128)S(6)}', space=smem, size = 0x200, scoped, tag = 'scoped memory for tpu_custom_call.1']
  %s0 = inlined_call_operand.vmem [shape: f32[500,32], index: 0, kind: input, shape index: {}]
  %s1 = inlined_call_operand.vmem [shape: f32[32,128], index: 1, kind: input, shape index: {}]
  %s2 = inlined_call_operand.vmem [shape: f32[1,128], index: 2, kind: input, shape index: {}]
  %s3 = inlined_call_operand.vmem [shape: f32[1,128], index: 3, kind: input, shape index: {}]
  %s4 = inlined_call_operand.<no memory space> [shape: f32[1], index: 4, kind: input, shape index: {}]
  %s5 = inlined_call_operand.hbm [shape: f32[1,512], index: 5, kind: output, shape index: {}]
  %s6 = sld [smem:[#allocation0]]
  $region30: #{tpu_custom_call.1} parent=0
    _
  %s8 = ssub.s32 1, %s6
  %s9 = scalar_select 0, %s8, %s6
  %10 = sst [smem:[#allocation2]] %s4
  $region1: #{tpu_custom_call.1} parent=0
    #allocation3 [shape = 'u8[2048]{0}', space=vmem, size = 0x800, scoped, tag = 'output window, operand 0, single buffered']
    #allocation4 [shape = 's32[1]{0}', space=sflag, size = 0x4, scoped, tag = 'scoped memory for tpu_custom_call.1']
    %11 = vsyncpa [#allocation4], 0
    // Predicated region
    $region2: #{tpu_custom_call.1} parent=1 // pred_check
      _
    $region3: #{tpu_custom_call.1} parent=1 // pred_check_branch
      %13 = sbr.rel (0) target = $region5
    $region4: #{tpu_custom_call.1} parent=1 // pred_region
      _
    $region5: #{tpu_custom_call.1} parent=1 // pred_fallthru
      _
    // Predicated region
    $region6: #{tpu_custom_call.1} parent=1 // pred_check
      _
    $region7: #{tpu_custom_call.1} parent=1 // pred_check_branch
      %15 = sbr.rel (0) target = $region9
    $region8: #{tpu_custom_call.1} parent=1 // pred_region
      _
    $region9: #{tpu_custom_call.1} parent=1 // pred_fallthru
      _
    // Predicated region
    $region10: #{tpu_custom_call.1} parent=1 // pred_check
      _
    $region11: #{tpu_custom_call.1} parent=1 // pred_check_branch
      %17 = sbr.rel (0) target = $region13
    $region12: #{tpu_custom_call.1} parent=1 // pred_region
      _
    $region13: #{tpu_custom_call.1} parent=1 // pred_fallthru
      _
    // Predicated region
    $region14: #{tpu_custom_call.1} parent=1 // pred_check
      _
    $region15: #{tpu_custom_call.1} parent=1 // pred_check_branch
      %19 = sbr.rel (0) target = $region17
    $region16: #{tpu_custom_call.1} parent=1 // pred_region
      _
    $region17: #{tpu_custom_call.1} parent=1 // pred_fallthru
      _
    // Predicated region
    $region18: #{tpu_custom_call.1} parent=1 // pred_check
      _
    $region19: #{tpu_custom_call.1} parent=1 // pred_check_branch
      %21 = sbr.rel (0) target = $region21
    $region20: #{tpu_custom_call.1} parent=1 // pred_region
      _
    $region21: #{tpu_custom_call.1} parent=1 // pred_fallthru
      _
    %v22 = vld [vmem:[%s1] sm:$0xff]
    %v23 = vld [vmem:[%s1 + $0x8] sm:$0xff]
    %v24 = vld [vmem:[%s1 + $0x10] sm:$0xff]
    %v25 = vld [vmem:[%s1 + $0x18] sm:$0xff]
    %v26 = vld [vmem:[%s2] sm:$0x1]
    %v27 = vld [vmem:[%s3] sm:$0x1]
    %s28 = sld [smem:[#allocation2]]
    %v29 = vld [vmem:[%s0] sm:$0xff]
    %v30 = vld [vmem:[%s0 + $0x8] sm:$0xff]
    %v31 = vld [vmem:[%s0 + $0x10] sm:$0xff]
    %v32 = vld [vmem:[%s0 + $0x18] sm:$0xff]
    %v33 = vld [vmem:[%s0 + $0x20] sm:$0xff]
    %v34 = vld [vmem:[%s0 + $0x28] sm:$0xff]
    %v35 = vld [vmem:[%s0 + $0x30] sm:$0xff]
    %v36 = vld [vmem:[%s0 + $0x38] sm:$0xff]
    %v37 = vld [vmem:[%s0 + $0x40] sm:$0xff]
    %v38 = vld [vmem:[%s0 + $0x48] sm:$0xff]
    %v39 = vld [vmem:[%s0 + $0x50] sm:$0xff]
    %v40 = vld [vmem:[%s0 + $0x58] sm:$0xff]
    %v41 = vld [vmem:[%s0 + $0x60] sm:$0xff]
    %v42 = vld [vmem:[%s0 + $0x68] sm:$0xff]
    %v43 = vld [vmem:[%s0 + $0x70] sm:$0xff]
    %v44 = vld [vmem:[%s0 + $0x78] sm:$0xff]
    %v45 = vld [vmem:[%s0 + $0x80] sm:$0xff]
    %v46 = vld [vmem:[%s0 + $0x88] sm:$0xff]
    %v47 = vld [vmem:[%s0 + $0x90] sm:$0xff]
    %v48 = vld [vmem:[%s0 + $0x98] sm:$0xff]
    %v49 = vld [vmem:[%s0 + $0xa0] sm:$0xff]
    %v50 = vld [vmem:[%s0 + $0xa8] sm:$0xff]
    %v51 = vld [vmem:[%s0 + $0xb0] sm:$0xff]
    %v52 = vld [vmem:[%s0 + $0xb8] sm:$0xff]
    %v53 = vld [vmem:[%s0 + $0xc0] sm:$0xff]
    %v54 = vld [vmem:[%s0 + $0xc8] sm:$0xff]
    %v55 = vld [vmem:[%s0 + $0xd0] sm:$0xff]
    %v56 = vld [vmem:[%s0 + $0xd8] sm:$0xff]
    %v57 = vld [vmem:[%s0 + $0xe0] sm:$0xff]
    %v58 = vld [vmem:[%s0 + $0xe8] sm:$0xff]
    %v59 = vld [vmem:[%s0 + $0xf0] sm:$0xff]
    %v60 = vld [vmem:[%s0 + $0xf8] sm:$0xff]
    %v62 = vlaneseq
    %v63 = vshrl.u32 %v62, 7
    %v64 = vsub.s32 0, %v63
    %v65 = vrot.slane %v26, %v64
    %vm67 = vcmask 261120
    %v69 = vsel %vm67, %v29, 0
    %v72 = vsel %vm67, %v30, 0
    %v75 = vsel %vm67, %v31, 0
    %v78 = vsel %vm67, %v32, 0
    %v81 = vsel %vm67, %v33, 0
    %v84 = vsel %vm67, %v34, 0
    %v87 = vsel %vm67, %v35, 0
    %v90 = vsel %vm67, %v36, 0
    %v93 = vsel %vm67, %v37, 0
    %v96 = vsel %vm67, %v38, 0
    %v99 = vsel %vm67, %v39, 0
    %v102 = vsel %vm67, %v40, 0
    %v105 = vsel %vm67, %v41, 0
    %v108 = vsel %vm67, %v42, 0
    %v111 = vsel %vm67, %v43, 0
    %v114 = vsel %vm67, %v44, 0
    %v117 = vsel %vm67, %v45, 0
    %v120 = vsel %vm67, %v46, 0
    %v123 = vsel %vm67, %v47, 0
    %v126 = vsel %vm67, %v48, 0
    %v129 = vsel %vm67, %v49, 0
    %v132 = vsel %vm67, %v50, 0
    %v135 = vsel %vm67, %v51, 0
    %v138 = vsel %vm67, %v52, 0
    %v141 = vsel %vm67, %v53, 0
    %v144 = vsel %vm67, %v54, 0
    %v147 = vsel %vm67, %v55, 0
    %v150 = vsel %vm67, %v56, 0
    %v153 = vsel %vm67, %v57, 0
    %v156 = vsel %vm67, %v58, 0
    %v159 = vsel %vm67, %v59, 0
    %v162 = vsel %vm67, %v60, 0
    %164 = vmatprep.subr.mxu0 0.0
    %165 = vmatpush1.msra.mxu0 %v22
    %166 = vmatprep.subr.mxu0 0.0
    %167 = vmatpush1.msra.mxu0 %v23
    %168 = vmatprep.subr.mxu0 0.0
    %169 = vmatpush1.msra.mxu0 %v24
    %170 = vmatprep.subr.mxu0 0.0
    %171 = vmatpush1.msra.mxu0 %v25
    %172 = vmatprep.subr.mxu0 0.0
    %173 = vmatpush1.msra.mxu0 0.0
    %174 = vmatprep.subr.mxu0 0.0
    %175 = vmatpush1.msra.mxu0 0.0
    %176 = vmatprep.subr.mxu0 0.0
    %177 = vmatpush1.msra.mxu0 0.0
    %178 = vmatprep.subr.mxu0 0.0
    %179 = vmatpush1.msra.mxu0 0.0
    %180 = vmatprep.subr.mxu0 0.0
    %181 = vmatpush1.msra.mxu0 0.0
    %182 = vmatprep.subr.mxu0 0.0
    %183 = vmatpush1.msra.mxu0 0.0
    %184 = vmatprep.subr.mxu0 0.0
    %185 = vmatpush1.msra.mxu0 0.0
    %186 = vmatprep.subr.mxu0 0.0
    %187 = vmatpush1.msra.mxu0 0.0
    %188 = vmatprep.subr.mxu0 0.0
    %189 = vmatpush1.msra.mxu0 0.0
    %190 = vmatprep.subr.mxu0 0.0
    %191 = vmatpush1.msra.mxu0 0.0
    %192 = vmatprep.subr.mxu0 0.0
    %193 = vmatpush1.msra.mxu0 0.0
    %194 = vmatprep.subr.mxu0 0.0
    %195 = vmatpush1.msra.mxu0 0.0
    %196 = vmatprep.subr.mxu0 0.0
    %197 = vmatpush1.msra.mxu0 0.0
    %198 = vmatprep.subr.mxu0 0.0
    %199 = vmatpush1.msra.mxu0 0.0
    %200 = vmatprep.subr.mxu0 0.0
    %201 = vmatpush1.msra.mxu0 0.0
    %202 = vmatprep.subr.mxu0 0.0
    %203 = vmatpush1.msra.mxu0 0.0
    %204 = vmatprep.subr.mxu0 0.0
    %205 = vmatpush1.msra.mxu0 0.0
    %206 = vmatprep.subr.mxu0 0.0
    %207 = vmatpush1.msra.mxu0 0.0
    %208 = vmatprep.subr.mxu0 0.0
    %209 = vmatpush1.msra.mxu0 0.0
    %210 = vmatprep.subr.mxu0 0.0
    %211 = vmatpush1.msra.mxu0 0.0
    %212 = vmatprep.subr.mxu0 0.0
    %213 = vmatpush1.msra.mxu0 0.0
    %214 = vmatprep.subr.mxu0 0.0
    %215 = vmatpush1.msra.mxu0 0.0
    %216 = vmatprep.subr.mxu0 0.0
    %217 = vmatpush1.msra.mxu0 0.0
    %218 = vmatprep.subr.mxu0 0.0
    %219 = vmatpush1.msra.mxu0 0.0
    %220 = vmatprep.subr.mxu0 0.0
    %221 = vmatpush1.msra.mxu0 0.0
    %222 = vmatprep.subr.mxu0 0.0
    %223 = vmatpush1.msra.mxu0 0.0
    %224 = vmatprep.subr.mxu0 0.0
    %225 = vmatpush1.msra.mxu0 0.0
    %226 = vmatprep.subr.mxu0 0.0
    %227 = vmatpush1.msra.mxu0 0.0
    %228 = vmatprep.mubr.f32.mxu0 0.0
    %229 = vmatmul.mubr.f32.gmra.mrb[0].mxu0 %v69
    %v230 = vpop.f32.mrb[0].mxu0
    %v231 = vadd.f32 %v65, %v230
    %v232 = vpop.f32.mrb[0].mxu0
    %233 = vmatprep.mubr.f32.mxu0 0.0
    %234 = vmatmul.mubr.f32.gmra.mrb[0].mxu0 %v72
    %v235 = vpop.f32.mrb[0].mxu0
    %v236 = vadd.f32 %v65, %v235
    %v237 = vpop.f32.mrb[0].mxu0
    %238 = vmatprep.mubr.f32.mxu0 0.0
    %239 = vmatmul.mubr.f32.gmra.mrb[0].mxu0 %v75
    %v240 = vpop.f32.mrb[0].mxu0
    %v241 = vadd.f32 %v65, %v240
    %v242 = vpop.f32.mrb[0].mxu0
    %243 = vmatprep.mubr.f32.mxu0 0.0
    %244 = vmatmul.mubr.f32.gmra.mrb[0].mxu0 %v78
    %v245 = vpop.f32.mrb[0].mxu0
    %v246 = vadd.f32 %v65, %v245
    %v247 = vpop.f32.mrb[0].mxu0
    %248 = vmatprep.mubr.f32.mxu0 0.0
    %249 = vmatmul.mubr.f32.gmra.mrb[0].mxu0 %v81
    %v250 = vpop.f32.mrb[0].mxu0
    %v251 = vadd.f32 %v65, %v250
    %v252 = vpop.f32.mrb[0].mxu0
    %253 = vmatprep.mubr.f32.mxu0 0.0
    %254 = vmatmul.mubr.f32.gmra.mrb[0].mxu0 %v84
    %v255 = vpop.f32.mrb[0].mxu0
    %v256 = vadd.f32 %v65, %v255
    %v257 = vpop.f32.mrb[0].mxu0
    %258 = vmatprep.mubr.f32.mxu0 0.0
    %259 = vmatmul.mubr.f32.gmra.mrb[0].mxu0 %v87
    %v260 = vpop.f32.mrb[0].mxu0
    %v261 = vadd.f32 %v65, %v260
    %v262 = vpop.f32.mrb[0].mxu0
    %263 = vmatprep.mubr.f32.mxu0 0.0
    %264 = vmatmul.mubr.f32.gmra.mrb[0].mxu0 %v90
    %v265 = vpop.f32.mrb[0].mxu0
    %v266 = vadd.f32 %v65, %v265
    %v267 = vpop.f32.mrb[0].mxu0
    %268 = vmatprep.mubr.f32.mxu0 0.0
    %269 = vmatmul.mubr.f32.gmra.mrb[0].mxu0 %v93
    %v270 = vpop.f32.mrb[0].mxu0
    %v271 = vadd.f32 %v65, %v270
    %v272 = vpop.f32.mrb[0].mxu0
    %273 = vmatprep.mubr.f32.mxu0 0.0
    %274 = vmatmul.mubr.f32.gmra.mrb[0].mxu0 %v96
    %v275 = vpop.f32.mrb[0].mxu0
    %v276 = vadd.f32 %v65, %v275
    %v277 = vpop.f32.mrb[0].mxu0
    %278 = vmatprep.mubr.f32.mxu0 0.0
    %279 = vmatmul.mubr.f32.gmra.mrb[0].mxu0 %v99
    %v280 = vpop.f32.mrb[0].mxu0
    %v281 = vadd.f32 %v65, %v280
    %v282 = vpop.f32.mrb[0].mxu0
    %283 = vmatprep.mubr.f32.mxu0 0.0
    %284 = vmatmul.mubr.f32.gmra.mrb[0].mxu0 %v102
    %v285 = vpop.f32.mrb[0].mxu0
    %v286 = vadd.f32 %v65, %v285
    %v287 = vpop.f32.mrb[0].mxu0
    %288 = vmatprep.mubr.f32.mxu0 0.0
    %289 = vmatmul.mubr.f32.gmra.mrb[0].mxu0 %v105
    %v290 = vpop.f32.mrb[0].mxu0
    %v291 = vadd.f32 %v65, %v290
    %v292 = vpop.f32.mrb[0].mxu0
    %293 = vmatprep.mubr.f32.mxu0 0.0
    %294 = vmatmul.mubr.f32.gmra.mrb[0].mxu0 %v108
    %v295 = vpop.f32.mrb[0].mxu0
    %v296 = vadd.f32 %v65, %v295
    %v297 = vpop.f32.mrb[0].mxu0
    %298 = vmatprep.mubr.f32.mxu0 0.0
    %299 = vmatmul.mubr.f32.gmra.mrb[0].mxu0 %v111
    %v300 = vpop.f32.mrb[0].mxu0
    %v301 = vadd.f32 %v65, %v300
    %v302 = vpop.f32.mrb[0].mxu0
    %303 = vmatprep.mubr.f32.mxu0 0.0
    %304 = vmatmul.mubr.f32.gmra.mrb[0].mxu0 %v114
    %v305 = vpop.f32.mrb[0].mxu0
    %v306 = vadd.f32 %v65, %v305
    %v307 = vpop.f32.mrb[0].mxu0
    %308 = vmatprep.mubr.f32.mxu0 0.0
    %309 = vmatmul.mubr.f32.gmra.mrb[0].mxu0 %v117
    %v310 = vpop.f32.mrb[0].mxu0
    %v311 = vadd.f32 %v65, %v310
    %v312 = vpop.f32.mrb[0].mxu0
    %313 = vmatprep.mubr.f32.mxu0 0.0
    %314 = vmatmul.mubr.f32.gmra.mrb[0].mxu0 %v120
    %v315 = vpop.f32.mrb[0].mxu0
    %v316 = vadd.f32 %v65, %v315
    %v317 = vpop.f32.mrb[0].mxu0
    %318 = vmatprep.mubr.f32.mxu0 0.0
    %319 = vmatmul.mubr.f32.gmra.mrb[0].mxu0 %v123
    %v320 = vpop.f32.mrb[0].mxu0
    %v321 = vadd.f32 %v65, %v320
    %v322 = vpop.f32.mrb[0].mxu0
    %323 = vmatprep.mubr.f32.mxu0 0.0
    %324 = vmatmul.mubr.f32.gmra.mrb[0].mxu0 %v126
    %v325 = vpop.f32.mrb[0].mxu0
    %v326 = vadd.f32 %v65, %v325
    %v327 = vpop.f32.mrb[0].mxu0
    %328 = vmatprep.mubr.f32.mxu0 0.0
    %329 = vmatmul.mubr.f32.gmra.mrb[0].mxu0 %v129
    %v330 = vpop.f32.mrb[0].mxu0
    %v331 = vadd.f32 %v65, %v330
    %v332 = vpop.f32.mrb[0].mxu0
    %333 = vmatprep.mubr.f32.mxu0 0.0
    %334 = vmatmul.mubr.f32.gmra.mrb[0].mxu0 %v132
    %v335 = vpop.f32.mrb[0].mxu0
    %v336 = vadd.f32 %v65, %v335
    %v337 = vpop.f32.mrb[0].mxu0
    %338 = vmatprep.mubr.f32.mxu0 0.0
    %339 = vmatmul.mubr.f32.gmra.mrb[0].mxu0 %v135
    %v340 = vpop.f32.mrb[0].mxu0
    %v341 = vadd.f32 %v65, %v340
    %v342 = vpop.f32.mrb[0].mxu0
    %343 = vmatprep.mubr.f32.mxu0 0.0
    %344 = vmatmul.mubr.f32.gmra.mrb[0].mxu0 %v138
    %v345 = vpop.f32.mrb[0].mxu0
    %v346 = vadd.f32 %v65, %v345
    %v347 = vpop.f32.mrb[0].mxu0
    %348 = vmatprep.mubr.f32.mxu0 0.0
    %349 = vmatmul.mubr.f32.gmra.mrb[0].mxu0 %v141
    %v350 = vpop.f32.mrb[0].mxu0
    %v351 = vadd.f32 %v65, %v350
    %v352 = vpop.f32.mrb[0].mxu0
    %353 = vmatprep.mubr.f32.mxu0 0.0
    %354 = vmatmul.mubr.f32.gmra.mrb[0].mxu0 %v144
    %v355 = vpop.f32.mrb[0].mxu0
    %v356 = vadd.f32 %v65, %v355
    %v357 = vpop.f32.mrb[0].mxu0
    %358 = vmatprep.mubr.f32.mxu0 0.0
    %359 = vmatmul.mubr.f32.gmra.mrb[0].mxu0 %v147
    %v360 = vpop.f32.mrb[0].mxu0
    %v361 = vadd.f32 %v65, %v360
    %v362 = vpop.f32.mrb[0].mxu0
    %363 = vmatprep.mubr.f32.mxu0 0.0
    %364 = vmatmul.mubr.f32.gmra.mrb[0].mxu0 %v150
    %v365 = vpop.f32.mrb[0].mxu0
    %v366 = vadd.f32 %v65, %v365
    %v367 = vpop.f32.mrb[0].mxu0
    %368 = vmatprep.mubr.f32.mxu0 0.0
    %369 = vmatmul.mubr.f32.gmra.mrb[0].mxu0 %v153
    %v370 = vpop.f32.mrb[0].mxu0
    %v371 = vadd.f32 %v65, %v370
    %v372 = vpop.f32.mrb[0].mxu0
    %373 = vmatprep.mubr.f32.mxu0 0.0
    %374 = vmatmul.mubr.f32.gmra.mrb[0].mxu0 %v156
    %v375 = vpop.f32.mrb[0].mxu0
    %v376 = vadd.f32 %v65, %v375
    %v377 = vpop.f32.mrb[0].mxu0
    %378 = vmatprep.mubr.f32.mxu0 0.0
    %379 = vmatmul.mubr.f32.gmra.mrb[0].mxu0 %v159
    %v380 = vpop.f32.mrb[0].mxu0
    %v381 = vadd.f32 %v65, %v380
    %v382 = vpop.f32.mrb[0].mxu0
    %383 = vmatprep.mubr.f32.mxu0 0.0
    %384 = vmatmul.mubr.f32.gmra.mrb[0].mxu0 %v162
    %v385 = vpop.f32.mrb[0].mxu0
    %v386 = vadd.f32 %v65, %v385
    %v387 = vpop.f32.mrb[0].mxu0
    %388 = vdwg.mxu0
    %v389 = vmin.f32 %v231, 20.0
    %v390 = vmin.f32 %v236, 20.0
    %v391 = vmin.f32 %v241, 20.0
    %v392 = vmin.f32 %v246, 20.0
    %v393 = vmin.f32 %v251, 20.0
    %v394 = vmin.f32 %v256, 20.0
    %v395 = vmin.f32 %v261, 20.0
    %v396 = vmin.f32 %v266, 20.0
    %v397 = vmin.f32 %v271, 20.0
    %v398 = vmin.f32 %v276, 20.0
    %v399 = vmin.f32 %v281, 20.0
    %v400 = vmin.f32 %v286, 20.0
    %v401 = vmin.f32 %v291, 20.0
    %v402 = vmin.f32 %v296, 20.0
    %v403 = vmin.f32 %v301, 20.0
    %v404 = vmin.f32 %v306, 20.0
    %v405 = vmin.f32 %v311, 20.0
    %v406 = vmin.f32 %v316, 20.0
    %v407 = vmin.f32 %v321, 20.0
    %v408 = vmin.f32 %v326, 20.0
    %v409 = vmin.f32 %v331, 20.0
    %v410 = vmin.f32 %v336, 20.0
    %v411 = vmin.f32 %v341, 20.0
    %v412 = vmin.f32 %v346, 20.0
    %v413 = vmin.f32 %v351, 20.0
    %v414 = vmin.f32 %v356, 20.0
    %v415 = vmin.f32 %v361, 20.0
    %v416 = vmin.f32 %v366, 20.0
    %v417 = vmin.f32 %v371, 20.0
    %v418 = vmin.f32 %v376, 20.0
    %v419 = vmin.f32 %v381, 20.0
    %v420 = vmin.f32 %v386, 20.0
    %v421 = vmul.f32 %v389, 1.442695
    %v422 = vpow.pop %v421
    %v423 = vmul.f32 %v390, 1.442695
    %v424 = vpow.pop %v423
    %v425 = vmul.f32 %v391, 1.442695
    %v426 = vpow.pop %v425
    %v427 = vmul.f32 %v392, 1.442695
    %v428 = vpow.pop %v427
    %v429 = vmul.f32 %v393, 1.442695
    %v430 = vpow.pop %v429
    %v431 = vmul.f32 %v394, 1.442695
    %v432 = vpow.pop %v431
    %v433 = vmul.f32 %v395, 1.442695
    %v434 = vpow.pop %v433
    %v435 = vmul.f32 %v396, 1.442695
    %v436 = vpow.pop %v435
    %v437 = vmul.f32 %v397, 1.442695
    %v438 = vpow.pop %v437
    %v439 = vmul.f32 %v398, 1.442695
    %v440 = vpow.pop %v439
    %v441 = vmul.f32 %v399, 1.442695
    %v442 = vpow.pop %v441
    %v443 = vmul.f32 %v400, 1.442695
    %v444 = vpow.pop %v443
    %v445 = vmul.f32 %v401, 1.442695
    %v446 = vpow.pop %v445
    %v447 = vmul.f32 %v402, 1.442695
    %v448 = vpow.pop %v447
    %v449 = vmul.f32 %v403, 1.442695
    %v450 = vpow.pop %v449
    %v451 = vmul.f32 %v404, 1.442695
    %v452 = vpow.pop %v451
    %v453 = vmul.f32 %v405, 1.442695
    %v454 = vpow.pop %v453
    %v455 = vmul.f32 %v406, 1.442695
    %v456 = vpow.pop %v455
    %v457 = vmul.f32 %v407, 1.442695
    %v458 = vpow.pop %v457
    %v459 = vmul.f32 %v408, 1.442695
    %v460 = vpow.pop %v459
    %v461 = vmul.f32 %v409, 1.442695
    %v462 = vpow.pop %v461
    %v463 = vmul.f32 %v410, 1.442695
    %v464 = vpow.pop %v463
    %v465 = vmul.f32 %v411, 1.442695
    %v466 = vpow.pop %v465
    %v467 = vmul.f32 %v412, 1.442695
    %v468 = vpow.pop %v467
    %v469 = vmul.f32 %v413, 1.442695
    %v470 = vpow.pop %v469
    %v471 = vmul.f32 %v414, 1.442695
    %v472 = vpow.pop %v471
    %v473 = vmul.f32 %v415, 1.442695
    %v474 = vpow.pop %v473
    %v475 = vmul.f32 %v416, 1.442695
    %v476 = vpow.pop %v475
    %v477 = vmul.f32 %v417, 1.442695
    %v478 = vpow.pop %v477
    %v479 = vmul.f32 %v418, 1.442695
    %v480 = vpow.pop %v479
    %v481 = vmul.f32 %v419, 1.442695
    %v482 = vpow.pop %v481
    %v483 = vmul.f32 %v420, 1.442695
    %v484 = vpow.pop %v483
    %v485 = vadd.f32 %v422, 1.0
    %v486 = vadd.f32 %v424, 1.0
    %v487 = vadd.f32 %v426, 1.0
    %v488 = vadd.f32 %v428, 1.0
    %v489 = vadd.f32 %v430, 1.0
    %v490 = vadd.f32 %v432, 1.0
    %v491 = vadd.f32 %v434, 1.0
    %v492 = vadd.f32 %v436, 1.0
    %v493 = vadd.f32 %v438, 1.0
    %v494 = vadd.f32 %v440, 1.0
    %v495 = vadd.f32 %v442, 1.0
    %v496 = vadd.f32 %v444, 1.0
    %v497 = vadd.f32 %v446, 1.0
    %v498 = vadd.f32 %v448, 1.0
    %v499 = vadd.f32 %v450, 1.0
    %v500 = vadd.f32 %v452, 1.0
    %v501 = vadd.f32 %v454, 1.0
    %v502 = vadd.f32 %v456, 1.0
    %v503 = vadd.f32 %v458, 1.0
    %v504 = vadd.f32 %v460, 1.0
    %v505 = vadd.f32 %v462, 1.0
    %v506 = vadd.f32 %v464, 1.0
    %v507 = vadd.f32 %v466, 1.0
    %v508 = vadd.f32 %v468, 1.0
    %v509 = vadd.f32 %v470, 1.0
    %v510 = vadd.f32 %v472, 1.0
    %v511 = vadd.f32 %v474, 1.0
    %v512 = vadd.f32 %v476, 1.0
    %v513 = vadd.f32 %v478, 1.0
    %v514 = vadd.f32 %v480, 1.0
    %v515 = vadd.f32 %v482, 1.0
    %v516 = vadd.f32 %v484, 1.0
    %v517 = vmul.f32 %v485, %v485
    %v518 = vmul.f32 %v486, %v486
    %v519 = vmul.f32 %v487, %v487
    %v520 = vmul.f32 %v488, %v488
    %v521 = vmul.f32 %v489, %v489
    %v522 = vmul.f32 %v490, %v490
    %v523 = vmul.f32 %v491, %v491
    %v524 = vmul.f32 %v492, %v492
    %v525 = vmul.f32 %v493, %v493
    %v526 = vmul.f32 %v494, %v494
    %v527 = vmul.f32 %v495, %v495
    %v528 = vmul.f32 %v496, %v496
    %v529 = vmul.f32 %v497, %v497
    %v530 = vmul.f32 %v498, %v498
    %v531 = vmul.f32 %v499, %v499
    %v532 = vmul.f32 %v500, %v500
    %v533 = vmul.f32 %v501, %v501
    %v534 = vmul.f32 %v502, %v502
    %v535 = vmul.f32 %v503, %v503
    %v536 = vmul.f32 %v504, %v504
    %v537 = vmul.f32 %v505, %v505
    %v538 = vmul.f32 %v506, %v506
    %v539 = vmul.f32 %v507, %v507
    %v540 = vmul.f32 %v508, %v508
    %v541 = vmul.f32 %v509, %v509
    %v542 = vmul.f32 %v510, %v510
    %v543 = vmul.f32 %v511, %v511
    %v544 = vmul.f32 %v512, %v512
    %v545 = vmul.f32 %v513, %v513
    %v546 = vmul.f32 %v514, %v514
    %v547 = vmul.f32 %v515, %v515
    %v548 = vmul.f32 %v516, %v516
    %v549 = vsub.f32 %v517, 1.0
    %v550 = vsub.f32 %v518, 1.0
    %v551 = vsub.f32 %v519, 1.0
    %v552 = vsub.f32 %v520, 1.0
    %v553 = vsub.f32 %v521, 1.0
    %v554 = vsub.f32 %v522, 1.0
    %v555 = vsub.f32 %v523, 1.0
    %v556 = vsub.f32 %v524, 1.0
    %v557 = vsub.f32 %v525, 1.0
    %v558 = vsub.f32 %v526, 1.0
    %v559 = vsub.f32 %v527, 1.0
    %v560 = vsub.f32 %v528, 1.0
    %v561 = vsub.f32 %v529, 1.0
    %v562 = vsub.f32 %v530, 1.0
    %v563 = vsub.f32 %v531, 1.0
    %v564 = vsub.f32 %v532, 1.0
    %v565 = vsub.f32 %v533, 1.0
    %v566 = vsub.f32 %v534, 1.0
    %v567 = vsub.f32 %v535, 1.0
    %v568 = vsub.f32 %v536, 1.0
    %v569 = vsub.f32 %v537, 1.0
    %v570 = vsub.f32 %v538, 1.0
    %v571 = vsub.f32 %v539, 1.0
    %v572 = vsub.f32 %v540, 1.0
    %v573 = vsub.f32 %v541, 1.0
    %v574 = vsub.f32 %v542, 1.0
    %v575 = vsub.f32 %v543, 1.0
    %v576 = vsub.f32 %v544, 1.0
    %v577 = vsub.f32 %v545, 1.0
    %v578 = vsub.f32 %v546, 1.0
    %v579 = vsub.f32 %v547, 1.0
    %v580 = vsub.f32 %v548, 1.0
    %v581 = vadd.f32 %v517, 1.0
    %v582 = vadd.f32 %v518, 1.0
    %v583 = vadd.f32 %v519, 1.0
    %v584 = vadd.f32 %v520, 1.0
    %v585 = vadd.f32 %v521, 1.0
    %v586 = vadd.f32 %v522, 1.0
    %v587 = vadd.f32 %v523, 1.0
    %v588 = vadd.f32 %v524, 1.0
    %v589 = vadd.f32 %v525, 1.0
    %v590 = vadd.f32 %v526, 1.0
    %v591 = vadd.f32 %v527, 1.0
    %v592 = vadd.f32 %v528, 1.0
    %v593 = vadd.f32 %v529, 1.0
    %v594 = vadd.f32 %v530, 1.0
    %v595 = vadd.f32 %v531, 1.0
    %v596 = vadd.f32 %v532, 1.0
    %v597 = vadd.f32 %v533, 1.0
    %v598 = vadd.f32 %v534, 1.0
    %v599 = vadd.f32 %v535, 1.0
    %v600 = vadd.f32 %v536, 1.0
    %v601 = vadd.f32 %v537, 1.0
    %v602 = vadd.f32 %v538, 1.0
    %v603 = vadd.f32 %v539, 1.0
    %v604 = vadd.f32 %v540, 1.0
    %v605 = vadd.f32 %v541, 1.0
    %v606 = vadd.f32 %v542, 1.0
    %v607 = vadd.f32 %v543, 1.0
    %v608 = vadd.f32 %v544, 1.0
    %v609 = vadd.f32 %v545, 1.0
    %v610 = vadd.f32 %v546, 1.0
    %v611 = vadd.f32 %v547, 1.0
    %v612 = vadd.f32 %v548, 1.0
    %v613 = vrcp.pop %v581
    %v614 = vrcp.pop %v582
    %v615 = vrcp.pop %v583
    %v616 = vrcp.pop %v584
    %v617 = vrcp.pop %v585
    %v618 = vrcp.pop %v586
    %v619 = vrcp.pop %v587
    %v620 = vrcp.pop %v588
    %v621 = vrcp.pop %v589
    %v622 = vrcp.pop %v590
    %v623 = vrcp.pop %v591
    %v624 = vrcp.pop %v592
    %v625 = vrcp.pop %v593
    %v626 = vrcp.pop %v594
    %v627 = vrcp.pop %v595
    %v628 = vrcp.pop %v596
    %v629 = vrcp.pop %v597
    %v630 = vrcp.pop %v598
    %v631 = vrcp.pop %v599
    %v632 = vrcp.pop %v600
    %v633 = vrcp.pop %v601
    %v634 = vrcp.pop %v602
    %v635 = vrcp.pop %v603
    %v636 = vrcp.pop %v604
    %v637 = vrcp.pop %v605
    %v638 = vrcp.pop %v606
    %v639 = vrcp.pop %v607
    %v640 = vrcp.pop %v608
    %v641 = vrcp.pop %v609
    %v642 = vrcp.pop %v610
    %v643 = vrcp.pop %v611
    %v644 = vrcp.pop %v612
    %v645 = vmul.f32 %v231, %v549
    %v646 = vmul.f32 %v236, %v550
    %v647 = vmul.f32 %v241, %v551
    %v648 = vmul.f32 %v246, %v552
    %v649 = vmul.f32 %v251, %v553
    %v650 = vmul.f32 %v256, %v554
    %v651 = vmul.f32 %v261, %v555
    %v652 = vmul.f32 %v266, %v556
    %v653 = vmul.f32 %v271, %v557
    %v654 = vmul.f32 %v276, %v558
    %v655 = vmul.f32 %v281, %v559
    %v656 = vmul.f32 %v286, %v560
    %v657 = vmul.f32 %v291, %v561
    %v658 = vmul.f32 %v296, %v562
    %v659 = vmul.f32 %v301, %v563
    %v660 = vmul.f32 %v306, %v564
    %v661 = vmul.f32 %v311, %v565
    %v662 = vmul.f32 %v316, %v566
    %v663 = vmul.f32 %v321, %v567
    %v664 = vmul.f32 %v326, %v568
    %v665 = vmul.f32 %v331, %v569
    %v666 = vmul.f32 %v336, %v570
    %v667 = vmul.f32 %v341, %v571
    %v668 = vmul.f32 %v346, %v572
    %v669 = vmul.f32 %v351, %v573
    %v670 = vmul.f32 %v356, %v574
    %v671 = vmul.f32 %v361, %v575
    %v672 = vmul.f32 %v366, %v576
    %v673 = vmul.f32 %v371, %v577
    %v674 = vmul.f32 %v376, %v578
    %v675 = vmul.f32 %v381, %v579
    %v676 = vmul.f32 %v386, %v580
    %v677 = vmul.f32 %v645, %v613
    %v678 = vmul.f32 %v646, %v614
    %v679 = vmul.f32 %v647, %v615
    %v680 = vmul.f32 %v648, %v616
    %v681 = vmul.f32 %v649, %v617
    %v682 = vmul.f32 %v650, %v618
    %v683 = vmul.f32 %v651, %v619
    %v684 = vmul.f32 %v652, %v620
    %v685 = vmul.f32 %v653, %v621
    %v686 = vmul.f32 %v654, %v622
    %v687 = vmul.f32 %v655, %v623
    %v688 = vmul.f32 %v656, %v624
    %v689 = vmul.f32 %v657, %v625
    %v690 = vmul.f32 %v658, %v626
    %v691 = vmul.f32 %v659, %v627
    %v692 = vmul.f32 %v660, %v628
    %v693 = vmul.f32 %v661, %v629
    %v694 = vmul.f32 %v662, %v630
    %v695 = vmul.f32 %v663, %v631
    %v696 = vmul.f32 %v664, %v632
    %v697 = vmul.f32 %v665, %v633
    %v698 = vmul.f32 %v666, %v634
    %v699 = vmul.f32 %v667, %v635
    %v700 = vmul.f32 %v668, %v636
    %v701 = vmul.f32 %v669, %v637
    %v702 = vmul.f32 %v670, %v638
    %v703 = vmul.f32 %v671, %v639
    %v704 = vmul.f32 %v672, %v640
    %v705 = vmul.f32 %v673, %v641
    %v706 = vmul.f32 %v674, %v642
    %v707 = vmul.f32 %v675, %v643
    %v708 = vmul.f32 %v676, %v644
    %v710 = vlaneseq
    %v711 = vshrl.u32 %v710, 7
    %v712 = vsub.s32 0, %v711
    %v713 = vrot.slane %v27, %v712
    %v715 = vmul.f32 %v677, %v713
    %v716 = vmul.f32 %v678, %v713
    %v717 = vmul.f32 %v679, %v713
    %v718 = vmul.f32 %v680, %v713
    %v719 = vmul.f32 %v681, %v713
    %v720 = vmul.f32 %v682, %v713
    %v721 = vmul.f32 %v683, %v713
    %v722 = vmul.f32 %v684, %v713
    %v723 = vmul.f32 %v685, %v713
    %v724 = vmul.f32 %v686, %v713
    %v725 = vmul.f32 %v687, %v713
    %v726 = vmul.f32 %v688, %v713
    %v727 = vmul.f32 %v689, %v713
    %v728 = vmul.f32 %v690, %v713
    %v729 = vmul.f32 %v691, %v713
    %v730 = vmul.f32 %v692, %v713
    %v731 = vmul.f32 %v693, %v713
    %v732 = vmul.f32 %v694, %v713
    %v733 = vmul.f32 %v695, %v713
    %v734 = vmul.f32 %v696, %v713
    %v735 = vmul.f32 %v697, %v713
    %v736 = vmul.f32 %v698, %v713
    %v737 = vmul.f32 %v699, %v713
    %v738 = vmul.f32 %v700, %v713
    %v739 = vmul.f32 %v701, %v713
    %v740 = vmul.f32 %v702, %v713
    %v741 = vmul.f32 %v703, %v713
    %v742 = vmul.f32 %v704, %v713
    %v743 = vmul.f32 %v705, %v713
    %v744 = vmul.f32 %v706, %v713
    %v745 = vmul.f32 %v707, %v713
    %v746 = vmul.f32 %v708, %v713
    %747 = vadd.xlane.f32.xlu0 %v715
    %v748 = vpop.xlane.xlu0 %747
    %749 = vadd.xlane.f32.xlu0 %v716
    %v750 = vpop.xlane.xlu0 %749
    %751 = vadd.xlane.f32.xlu0 %v717
    %v752 = vpop.xlane.xlu0 %751
    %753 = vadd.xlane.f32.xlu0 %v718
    %v754 = vpop.xlane.xlu0 %753
    %755 = vadd.xlane.f32.xlu0 %v719
    %v756 = vpop.xlane.xlu0 %755
    %757 = vadd.xlane.f32.xlu0 %v720
    %v758 = vpop.xlane.xlu0 %757
    %759 = vadd.xlane.f32.xlu0 %v721
    %v760 = vpop.xlane.xlu0 %759
    %761 = vadd.xlane.f32.xlu0 %v722
    %v762 = vpop.xlane.xlu0 %761
    %763 = vadd.xlane.f32.xlu0 %v723
    %v764 = vpop.xlane.xlu0 %763
    %765 = vadd.xlane.f32.xlu0 %v724
    %v766 = vpop.xlane.xlu0 %765
    %767 = vadd.xlane.f32.xlu0 %v725
    %v768 = vpop.xlane.xlu0 %767
    %769 = vadd.xlane.f32.xlu0 %v726
    %v770 = vpop.xlane.xlu0 %769
    %771 = vadd.xlane.f32.xlu0 %v727
    %v772 = vpop.xlane.xlu0 %771
    %773 = vadd.xlane.f32.xlu0 %v728
    %v774 = vpop.xlane.xlu0 %773
    %775 = vadd.xlane.f32.xlu0 %v729
    %v776 = vpop.xlane.xlu0 %775
    %777 = vadd.xlane.f32.xlu0 %v730
    %v778 = vpop.xlane.xlu0 %777
    %779 = vadd.xlane.f32.xlu0 %v731
    %v780 = vpop.xlane.xlu0 %779
    %781 = vadd.xlane.f32.xlu0 %v732
    %v782 = vpop.xlane.xlu0 %781
    %783 = vadd.xlane.f32.xlu0 %v733
    %v784 = vpop.xlane.xlu0 %783
    %785 = vadd.xlane.f32.xlu0 %v734
    %v786 = vpop.xlane.xlu0 %785
    %787 = vadd.xlane.f32.xlu0 %v735
    %v788 = vpop.xlane.xlu0 %787
    %789 = vadd.xlane.f32.xlu0 %v736
    %v790 = vpop.xlane.xlu0 %789
    %791 = vadd.xlane.f32.xlu0 %v737
    %v792 = vpop.xlane.xlu0 %791
    %793 = vadd.xlane.f32.xlu0 %v738
    %v794 = vpop.xlane.xlu0 %793
    %795 = vadd.xlane.f32.xlu0 %v739
    %v796 = vpop.xlane.xlu0 %795
    %797 = vadd.xlane.f32.xlu0 %v740
    %v798 = vpop.xlane.xlu0 %797
    %799 = vadd.xlane.f32.xlu0 %v741
    %v800 = vpop.xlane.xlu0 %799
    %801 = vadd.xlane.f32.xlu0 %v742
    %v802 = vpop.xlane.xlu0 %801
    %803 = vadd.xlane.f32.xlu0 %v743
    %v804 = vpop.xlane.xlu0 %803
    %805 = vadd.xlane.f32.xlu0 %v744
    %v806 = vpop.xlane.xlu0 %805
    %807 = vadd.xlane.f32.xlu0 %v745
    %v808 = vpop.xlane.xlu0 %807
    %809 = vadd.xlane.f32.xlu0 %v746
    %v810 = vpop.xlane.xlu0 %809
    %v811 = vstv %s28
    %v812 = vadd.f32 %v748, %v811
    %v813 = vadd.f32 %v750, %v811
    %v814 = vadd.f32 %v752, %v811
    %v815 = vadd.f32 %v754, %v811
    %v816 = vadd.f32 %v756, %v811
    %v817 = vadd.f32 %v758, %v811
    %v818 = vadd.f32 %v760, %v811
    %v819 = vadd.f32 %v762, %v811
    %v820 = vadd.f32 %v764, %v811
    %v821 = vadd.f32 %v766, %v811
    %v822 = vadd.f32 %v768, %v811
    %v823 = vadd.f32 %v770, %v811
    %v824 = vadd.f32 %v772, %v811
    %v825 = vadd.f32 %v774, %v811
    %v826 = vadd.f32 %v776, %v811
    %v827 = vadd.f32 %v778, %v811
    %v828 = vadd.f32 %v780, %v811
    %v829 = vadd.f32 %v782, %v811
    %v830 = vadd.f32 %v784, %v811
    %v831 = vadd.f32 %v786, %v811
    %v832 = vadd.f32 %v788, %v811
    %v833 = vadd.f32 %v790, %v811
    %v834 = vadd.f32 %v792, %v811
    %v835 = vadd.f32 %v794, %v811
    %v836 = vadd.f32 %v796, %v811
    %v837 = vadd.f32 %v798, %v811
    %v838 = vadd.f32 %v800, %v811
    %v839 = vadd.f32 %v802, %v811
    %v840 = vadd.f32 %v804, %v811
    %v841 = vadd.f32 %v806, %v811
    %v842 = vadd.f32 %v808, %v811
    %v843 = vadd.f32 %v810, %v811
    %v876 = vlaneseq
    %v877 = vshrl.u32 %v876, 7
    %v878 = vsub.s32 0, %v877
    %v879 = vrot.slane %v812, %v878
    %v880 = vlaneseq
    %v881 = vshrl.u32 %v880, 7
    %v882 = vsub.s32 1, %v881
    %v883 = vrot.slane %v812, %v882
    %v884 = vlaneseq
    %v885 = vshrl.u32 %v884, 7
    %v886 = vsub.s32 2, %v885
    %v887 = vrot.slane %v812, %v886
    %v888 = vlaneseq
    %v889 = vshrl.u32 %v888, 7
    %v890 = vsub.s32 3, %v889
    %v891 = vrot.slane %v812, %v890
    %v892 = vlaneseq
    %v893 = vshrl.u32 %v892, 7
    %v894 = vsub.s32 4, %v893
    %v895 = vrot.slane %v812, %v894
    %v896 = vlaneseq
    %v897 = vshrl.u32 %v896, 7
    %v898 = vsub.s32 5, %v897
    %v899 = vrot.slane %v812, %v898
    %v900 = vlaneseq
    %v901 = vshrl.u32 %v900, 7
    %v902 = vsub.s32 6, %v901
    %v903 = vrot.slane %v812, %v902
    %v904 = vlaneseq
    %v905 = vshrl.u32 %v904, 7
    %v906 = vsub.s32 7, %v905
    %v907 = vrot.slane %v812, %v906
    %v908 = vlaneseq
    %v909 = vshrl.u32 %v908, 7
    %v910 = vsub.s32 0, %v909
    %v911 = vrot.slane %v813, %v910
    %v912 = vlaneseq
    %v913 = vshrl.u32 %v912, 7
    %v914 = vsub.s32 1, %v913
    %v915 = vrot.slane %v813, %v914
    %v916 = vlaneseq
    %v917 = vshrl.u32 %v916, 7
    %v918 = vsub.s32 2, %v917
    %v919 = vrot.slane %v813, %v918
    %v920 = vlaneseq
    %v921 = vshrl.u32 %v920, 7
    %v922 = vsub.s32 3, %v921
    %v923 = vrot.slane %v813, %v922
    %v924 = vlaneseq
    %v925 = vshrl.u32 %v924, 7
    %v926 = vsub.s32 4, %v925
    %v927 = vrot.slane %v813, %v926
    %v928 = vlaneseq
    %v929 = vshrl.u32 %v928, 7
    %v930 = vsub.s32 5, %v929
    %v931 = vrot.slane %v813, %v930
    %v932 = vlaneseq
    %v933 = vshrl.u32 %v932, 7
    %v934 = vsub.s32 6, %v933
    %v935 = vrot.slane %v813, %v934
    %v936 = vlaneseq
    %v937 = vshrl.u32 %v936, 7
    %v938 = vsub.s32 7, %v937
    %v939 = vrot.slane %v813, %v938
    %v940 = vlaneseq
    %v941 = vshrl.u32 %v940, 7
    %v942 = vsub.s32 0, %v941
    %v943 = vrot.slane %v814, %v942
    %v944 = vlaneseq
    %v945 = vshrl.u32 %v944, 7
    %v946 = vsub.s32 1, %v945
    %v947 = vrot.slane %v814, %v946
    %v948 = vlaneseq
    %v949 = vshrl.u32 %v948, 7
    %v950 = vsub.s32 2, %v949
    %v951 = vrot.slane %v814, %v950
    %v952 = vlaneseq
    %v953 = vshrl.u32 %v952, 7
    %v954 = vsub.s32 3, %v953
    %v955 = vrot.slane %v814, %v954
    %v956 = vlaneseq
    %v957 = vshrl.u32 %v956, 7
    %v958 = vsub.s32 4, %v957
    %v959 = vrot.slane %v814, %v958
    %v960 = vlaneseq
    %v961 = vshrl.u32 %v960, 7
    %v962 = vsub.s32 5, %v961
    %v963 = vrot.slane %v814, %v962
    %v964 = vlaneseq
    %v965 = vshrl.u32 %v964, 7
    %v966 = vsub.s32 6, %v965
    %v967 = vrot.slane %v814, %v966
    %v968 = vlaneseq
    %v969 = vshrl.u32 %v968, 7
    %v970 = vsub.s32 7, %v969
    %v971 = vrot.slane %v814, %v970
    %v972 = vlaneseq
    %v973 = vshrl.u32 %v972, 7
    %v974 = vsub.s32 0, %v973
    %v975 = vrot.slane %v815, %v974
    %v976 = vlaneseq
    %v977 = vshrl.u32 %v976, 7
    %v978 = vsub.s32 1, %v977
    %v979 = vrot.slane %v815, %v978
    %v980 = vlaneseq
    %v981 = vshrl.u32 %v980, 7
    %v982 = vsub.s32 2, %v981
    %v983 = vrot.slane %v815, %v982
    %v984 = vlaneseq
    %v985 = vshrl.u32 %v984, 7
    %v986 = vsub.s32 3, %v985
    %v987 = vrot.slane %v815, %v986
    %v988 = vlaneseq
    %v989 = vshrl.u32 %v988, 7
    %v990 = vsub.s32 4, %v989
    %v991 = vrot.slane %v815, %v990
    %v992 = vlaneseq
    %v993 = vshrl.u32 %v992, 7
    %v994 = vsub.s32 5, %v993
    %v995 = vrot.slane %v815, %v994
    %v996 = vlaneseq
    %v997 = vshrl.u32 %v996, 7
    %v998 = vsub.s32 6, %v997
    %v999 = vrot.slane %v815, %v998
    %v1000 = vlaneseq
    %v1001 = vshrl.u32 %v1000, 7
    %v1002 = vsub.s32 7, %v1001
    %v1003 = vrot.slane %v815, %v1002
    %v1004 = vlaneseq
    %v1005 = vshrl.u32 %v1004, 7
    %v1006 = vsub.s32 0, %v1005
    %v1007 = vrot.slane %v816, %v1006
    %v1008 = vlaneseq
    %v1009 = vshrl.u32 %v1008, 7
    %v1010 = vsub.s32 1, %v1009
    %v1011 = vrot.slane %v816, %v1010
    %v1012 = vlaneseq
    %v1013 = vshrl.u32 %v1012, 7
    %v1014 = vsub.s32 2, %v1013
    %v1015 = vrot.slane %v816, %v1014
    %v1016 = vlaneseq
    %v1017 = vshrl.u32 %v1016, 7
    %v1018 = vsub.s32 3, %v1017
    %v1019 = vrot.slane %v816, %v1018
    %v1020 = vlaneseq
    %v1021 = vshrl.u32 %v1020, 7
    %v1022 = vsub.s32 4, %v1021
    %v1023 = vrot.slane %v816, %v1022
    %v1024 = vlaneseq
    %v1025 = vshrl.u32 %v1024, 7
    %v1026 = vsub.s32 5, %v1025
    %v1027 = vrot.slane %v816, %v1026
    %v1028 = vlaneseq
    %v1029 = vshrl.u32 %v1028, 7
    %v1030 = vsub.s32 6, %v1029
    %v1031 = vrot.slane %v816, %v1030
    %v1032 = vlaneseq
    %v1033 = vshrl.u32 %v1032, 7
    %v1034 = vsub.s32 7, %v1033
    %v1035 = vrot.slane %v816, %v1034
    %v1036 = vlaneseq
    %v1037 = vshrl.u32 %v1036, 7
    %v1038 = vsub.s32 0, %v1037
    %v1039 = vrot.slane %v817, %v1038
    %v1040 = vlaneseq
    %v1041 = vshrl.u32 %v1040, 7
    %v1042 = vsub.s32 1, %v1041
    %v1043 = vrot.slane %v817, %v1042
    %v1044 = vlaneseq
    %v1045 = vshrl.u32 %v1044, 7
    %v1046 = vsub.s32 2, %v1045
    %v1047 = vrot.slane %v817, %v1046
    %v1048 = vlaneseq
    %v1049 = vshrl.u32 %v1048, 7
    %v1050 = vsub.s32 3, %v1049
    %v1051 = vrot.slane %v817, %v1050
    %v1052 = vlaneseq
    %v1053 = vshrl.u32 %v1052, 7
    %v1054 = vsub.s32 4, %v1053
    %v1055 = vrot.slane %v817, %v1054
    %v1056 = vlaneseq
    %v1057 = vshrl.u32 %v1056, 7
    %v1058 = vsub.s32 5, %v1057
    %v1059 = vrot.slane %v817, %v1058
    %v1060 = vlaneseq
    %v1061 = vshrl.u32 %v1060, 7
    %v1062 = vsub.s32 6, %v1061
    %v1063 = vrot.slane %v817, %v1062
    %v1064 = vlaneseq
    %v1065 = vshrl.u32 %v1064, 7
    %v1066 = vsub.s32 7, %v1065
    %v1067 = vrot.slane %v817, %v1066
    %v1068 = vlaneseq
    %v1069 = vshrl.u32 %v1068, 7
    %v1070 = vsub.s32 0, %v1069
    %v1071 = vrot.slane %v818, %v1070
    %v1072 = vlaneseq
    %v1073 = vshrl.u32 %v1072, 7
    %v1074 = vsub.s32 1, %v1073
    %v1075 = vrot.slane %v818, %v1074
    %v1076 = vlaneseq
    %v1077 = vshrl.u32 %v1076, 7
    %v1078 = vsub.s32 2, %v1077
    %v1079 = vrot.slane %v818, %v1078
    %v1080 = vlaneseq
    %v1081 = vshrl.u32 %v1080, 7
    %v1082 = vsub.s32 3, %v1081
    %v1083 = vrot.slane %v818, %v1082
    %v1084 = vlaneseq
    %v1085 = vshrl.u32 %v1084, 7
    %v1086 = vsub.s32 4, %v1085
    %v1087 = vrot.slane %v818, %v1086
    %v1088 = vlaneseq
    %v1089 = vshrl.u32 %v1088, 7
    %v1090 = vsub.s32 5, %v1089
    %v1091 = vrot.slane %v818, %v1090
    %v1092 = vlaneseq
    %v1093 = vshrl.u32 %v1092, 7
    %v1094 = vsub.s32 6, %v1093
    %v1095 = vrot.slane %v818, %v1094
    %v1096 = vlaneseq
    %v1097 = vshrl.u32 %v1096, 7
    %v1098 = vsub.s32 7, %v1097
    %v1099 = vrot.slane %v818, %v1098
    %v1100 = vlaneseq
    %v1101 = vshrl.u32 %v1100, 7
    %v1102 = vsub.s32 0, %v1101
    %v1103 = vrot.slane %v819, %v1102
    %v1104 = vlaneseq
    %v1105 = vshrl.u32 %v1104, 7
    %v1106 = vsub.s32 1, %v1105
    %v1107 = vrot.slane %v819, %v1106
    %v1108 = vlaneseq
    %v1109 = vshrl.u32 %v1108, 7
    %v1110 = vsub.s32 2, %v1109
    %v1111 = vrot.slane %v819, %v1110
    %v1112 = vlaneseq
    %v1113 = vshrl.u32 %v1112, 7
    %v1114 = vsub.s32 3, %v1113
    %v1115 = vrot.slane %v819, %v1114
    %v1116 = vlaneseq
    %v1117 = vshrl.u32 %v1116, 7
    %v1118 = vsub.s32 4, %v1117
    %v1119 = vrot.slane %v819, %v1118
    %v1120 = vlaneseq
    %v1121 = vshrl.u32 %v1120, 7
    %v1122 = vsub.s32 5, %v1121
    %v1123 = vrot.slane %v819, %v1122
    %v1124 = vlaneseq
    %v1125 = vshrl.u32 %v1124, 7
    %v1126 = vsub.s32 6, %v1125
    %v1127 = vrot.slane %v819, %v1126
    %v1128 = vlaneseq
    %v1129 = vshrl.u32 %v1128, 7
    %v1130 = vsub.s32 7, %v1129
    %v1131 = vrot.slane %v819, %v1130
    %v1132 = vlaneseq
    %v1133 = vshrl.u32 %v1132, 7
    %v1134 = vsub.s32 0, %v1133
    %v1135 = vrot.slane %v820, %v1134
    %v1136 = vlaneseq
    %v1137 = vshrl.u32 %v1136, 7
    %v1138 = vsub.s32 1, %v1137
    %v1139 = vrot.slane %v820, %v1138
    %v1140 = vlaneseq
    %v1141 = vshrl.u32 %v1140, 7
    %v1142 = vsub.s32 2, %v1141
    %v1143 = vrot.slane %v820, %v1142
    %v1144 = vlaneseq
    %v1145 = vshrl.u32 %v1144, 7
    %v1146 = vsub.s32 3, %v1145
    %v1147 = vrot.slane %v820, %v1146
    %v1148 = vlaneseq
    %v1149 = vshrl.u32 %v1148, 7
    %v1150 = vsub.s32 4, %v1149
    %v1151 = vrot.slane %v820, %v1150
    %v1152 = vlaneseq
    %v1153 = vshrl.u32 %v1152, 7
    %v1154 = vsub.s32 5, %v1153
    %v1155 = vrot.slane %v820, %v1154
    %v1156 = vlaneseq
    %v1157 = vshrl.u32 %v1156, 7
    %v1158 = vsub.s32 6, %v1157
    %v1159 = vrot.slane %v820, %v1158
    %v1160 = vlaneseq
    %v1161 = vshrl.u32 %v1160, 7
    %v1162 = vsub.s32 7, %v1161
    %v1163 = vrot.slane %v820, %v1162
    %v1164 = vlaneseq
    %v1165 = vshrl.u32 %v1164, 7
    %v1166 = vsub.s32 0, %v1165
    %v1167 = vrot.slane %v821, %v1166
    %v1168 = vlaneseq
    %v1169 = vshrl.u32 %v1168, 7
    %v1170 = vsub.s32 1, %v1169
    %v1171 = vrot.slane %v821, %v1170
    %v1172 = vlaneseq
    %v1173 = vshrl.u32 %v1172, 7
    %v1174 = vsub.s32 2, %v1173
    %v1175 = vrot.slane %v821, %v1174
    %v1176 = vlaneseq
    %v1177 = vshrl.u32 %v1176, 7
    %v1178 = vsub.s32 3, %v1177
    %v1179 = vrot.slane %v821, %v1178
    %v1180 = vlaneseq
    %v1181 = vshrl.u32 %v1180, 7
    %v1182 = vsub.s32 4, %v1181
    %v1183 = vrot.slane %v821, %v1182
    %v1184 = vlaneseq
    %v1185 = vshrl.u32 %v1184, 7
    %v1186 = vsub.s32 5, %v1185
    %v1187 = vrot.slane %v821, %v1186
    %v1188 = vlaneseq
    %v1189 = vshrl.u32 %v1188, 7
    %v1190 = vsub.s32 6, %v1189
    %v1191 = vrot.slane %v821, %v1190
    %v1192 = vlaneseq
    %v1193 = vshrl.u32 %v1192, 7
    %v1194 = vsub.s32 7, %v1193
    %v1195 = vrot.slane %v821, %v1194
    %v1196 = vlaneseq
    %v1197 = vshrl.u32 %v1196, 7
    %v1198 = vsub.s32 0, %v1197
    %v1199 = vrot.slane %v822, %v1198
    %v1200 = vlaneseq
    %v1201 = vshrl.u32 %v1200, 7
    %v1202 = vsub.s32 1, %v1201
    %v1203 = vrot.slane %v822, %v1202
    %v1204 = vlaneseq
    %v1205 = vshrl.u32 %v1204, 7
    %v1206 = vsub.s32 2, %v1205
    %v1207 = vrot.slane %v822, %v1206
    %v1208 = vlaneseq
    %v1209 = vshrl.u32 %v1208, 7
    %v1210 = vsub.s32 3, %v1209
    %v1211 = vrot.slane %v822, %v1210
    %v1212 = vlaneseq
    %v1213 = vshrl.u32 %v1212, 7
    %v1214 = vsub.s32 4, %v1213
    %v1215 = vrot.slane %v822, %v1214
    %v1216 = vlaneseq
    %v1217 = vshrl.u32 %v1216, 7
    %v1218 = vsub.s32 5, %v1217
    %v1219 = vrot.slane %v822, %v1218
    %v1220 = vlaneseq
    %v1221 = vshrl.u32 %v1220, 7
    %v1222 = vsub.s32 6, %v1221
    %v1223 = vrot.slane %v822, %v1222
    %v1224 = vlaneseq
    %v1225 = vshrl.u32 %v1224, 7
    %v1226 = vsub.s32 7, %v1225
    %v1227 = vrot.slane %v822, %v1226
    %v1228 = vlaneseq
    %v1229 = vshrl.u32 %v1228, 7
    %v1230 = vsub.s32 0, %v1229
    %v1231 = vrot.slane %v823, %v1230
    %v1232 = vlaneseq
    %v1233 = vshrl.u32 %v1232, 7
    %v1234 = vsub.s32 1, %v1233
    %v1235 = vrot.slane %v823, %v1234
    %v1236 = vlaneseq
    %v1237 = vshrl.u32 %v1236, 7
    %v1238 = vsub.s32 2, %v1237
    %v1239 = vrot.slane %v823, %v1238
    %v1240 = vlaneseq
    %v1241 = vshrl.u32 %v1240, 7
    %v1242 = vsub.s32 3, %v1241
    %v1243 = vrot.slane %v823, %v1242
    %v1244 = vlaneseq
    %v1245 = vshrl.u32 %v1244, 7
    %v1246 = vsub.s32 4, %v1245
    %v1247 = vrot.slane %v823, %v1246
    %v1248 = vlaneseq
    %v1249 = vshrl.u32 %v1248, 7
    %v1250 = vsub.s32 5, %v1249
    %v1251 = vrot.slane %v823, %v1250
    %v1252 = vlaneseq
    %v1253 = vshrl.u32 %v1252, 7
    %v1254 = vsub.s32 6, %v1253
    %v1255 = vrot.slane %v823, %v1254
    %v1256 = vlaneseq
    %v1257 = vshrl.u32 %v1256, 7
    %v1258 = vsub.s32 7, %v1257
    %v1259 = vrot.slane %v823, %v1258
    %v1260 = vlaneseq
    %v1261 = vshrl.u32 %v1260, 7
    %v1262 = vsub.s32 0, %v1261
    %v1263 = vrot.slane %v824, %v1262
    %v1264 = vlaneseq
    %v1265 = vshrl.u32 %v1264, 7
    %v1266 = vsub.s32 1, %v1265
    %v1267 = vrot.slane %v824, %v1266
    %v1268 = vlaneseq
    %v1269 = vshrl.u32 %v1268, 7
    %v1270 = vsub.s32 2, %v1269
    %v1271 = vrot.slane %v824, %v1270
    %v1272 = vlaneseq
    %v1273 = vshrl.u32 %v1272, 7
    %v1274 = vsub.s32 3, %v1273
    %v1275 = vrot.slane %v824, %v1274
    %v1276 = vlaneseq
    %v1277 = vshrl.u32 %v1276, 7
    %v1278 = vsub.s32 4, %v1277
    %v1279 = vrot.slane %v824, %v1278
    %v1280 = vlaneseq
    %v1281 = vshrl.u32 %v1280, 7
    %v1282 = vsub.s32 5, %v1281
    %v1283 = vrot.slane %v824, %v1282
    %v1284 = vlaneseq
    %v1285 = vshrl.u32 %v1284, 7
    %v1286 = vsub.s32 6, %v1285
    %v1287 = vrot.slane %v824, %v1286
    %v1288 = vlaneseq
    %v1289 = vshrl.u32 %v1288, 7
    %v1290 = vsub.s32 7, %v1289
    %v1291 = vrot.slane %v824, %v1290
    %v1292 = vlaneseq
    %v1293 = vshrl.u32 %v1292, 7
    %v1294 = vsub.s32 0, %v1293
    %v1295 = vrot.slane %v825, %v1294
    %v1296 = vlaneseq
    %v1297 = vshrl.u32 %v1296, 7
    %v1298 = vsub.s32 1, %v1297
    %v1299 = vrot.slane %v825, %v1298
    %v1300 = vlaneseq
    %v1301 = vshrl.u32 %v1300, 7
    %v1302 = vsub.s32 2, %v1301
    %v1303 = vrot.slane %v825, %v1302
    %v1304 = vlaneseq
    %v1305 = vshrl.u32 %v1304, 7
    %v1306 = vsub.s32 3, %v1305
    %v1307 = vrot.slane %v825, %v1306
    %v1308 = vlaneseq
    %v1309 = vshrl.u32 %v1308, 7
    %v1310 = vsub.s32 4, %v1309
    %v1311 = vrot.slane %v825, %v1310
    %v1312 = vlaneseq
    %v1313 = vshrl.u32 %v1312, 7
    %v1314 = vsub.s32 5, %v1313
    %v1315 = vrot.slane %v825, %v1314
    %v1316 = vlaneseq
    %v1317 = vshrl.u32 %v1316, 7
    %v1318 = vsub.s32 6, %v1317
    %v1319 = vrot.slane %v825, %v1318
    %v1320 = vlaneseq
    %v1321 = vshrl.u32 %v1320, 7
    %v1322 = vsub.s32 7, %v1321
    %v1323 = vrot.slane %v825, %v1322
    %v1324 = vlaneseq
    %v1325 = vshrl.u32 %v1324, 7
    %v1326 = vsub.s32 0, %v1325
    %v1327 = vrot.slane %v826, %v1326
    %v1328 = vlaneseq
    %v1329 = vshrl.u32 %v1328, 7
    %v1330 = vsub.s32 1, %v1329
    %v1331 = vrot.slane %v826, %v1330
    %v1332 = vlaneseq
    %v1333 = vshrl.u32 %v1332, 7
    %v1334 = vsub.s32 2, %v1333
    %v1335 = vrot.slane %v826, %v1334
    %v1336 = vlaneseq
    %v1337 = vshrl.u32 %v1336, 7
    %v1338 = vsub.s32 3, %v1337
    %v1339 = vrot.slane %v826, %v1338
    %v1340 = vlaneseq
    %v1341 = vshrl.u32 %v1340, 7
    %v1342 = vsub.s32 4, %v1341
    %v1343 = vrot.slane %v826, %v1342
    %v1344 = vlaneseq
    %v1345 = vshrl.u32 %v1344, 7
    %v1346 = vsub.s32 5, %v1345
    %v1347 = vrot.slane %v826, %v1346
    %v1348 = vlaneseq
    %v1349 = vshrl.u32 %v1348, 7
    %v1350 = vsub.s32 6, %v1349
    %v1351 = vrot.slane %v826, %v1350
    %v1352 = vlaneseq
    %v1353 = vshrl.u32 %v1352, 7
    %v1354 = vsub.s32 7, %v1353
    %v1355 = vrot.slane %v826, %v1354
    %v1356 = vlaneseq
    %v1357 = vshrl.u32 %v1356, 7
    %v1358 = vsub.s32 0, %v1357
    %v1359 = vrot.slane %v827, %v1358
    %v1360 = vlaneseq
    %v1361 = vshrl.u32 %v1360, 7
    %v1362 = vsub.s32 1, %v1361
    %v1363 = vrot.slane %v827, %v1362
    %v1364 = vlaneseq
    %v1365 = vshrl.u32 %v1364, 7
    %v1366 = vsub.s32 2, %v1365
    %v1367 = vrot.slane %v827, %v1366
    %v1368 = vlaneseq
    %v1369 = vshrl.u32 %v1368, 7
    %v1370 = vsub.s32 3, %v1369
    %v1371 = vrot.slane %v827, %v1370
    %v1372 = vlaneseq
    %v1373 = vshrl.u32 %v1372, 7
    %v1374 = vsub.s32 4, %v1373
    %v1375 = vrot.slane %v827, %v1374
    %v1376 = vlaneseq
    %v1377 = vshrl.u32 %v1376, 7
    %v1378 = vsub.s32 5, %v1377
    %v1379 = vrot.slane %v827, %v1378
    %v1380 = vlaneseq
    %v1381 = vshrl.u32 %v1380, 7
    %v1382 = vsub.s32 6, %v1381
    %v1383 = vrot.slane %v827, %v1382
    %v1384 = vlaneseq
    %v1385 = vshrl.u32 %v1384, 7
    %v1386 = vsub.s32 7, %v1385
    %v1387 = vrot.slane %v827, %v1386
    %v1388 = vlaneseq
    %v1389 = vshrl.u32 %v1388, 7
    %v1390 = vsub.s32 0, %v1389
    %v1391 = vrot.slane %v828, %v1390
    %v1392 = vlaneseq
    %v1393 = vshrl.u32 %v1392, 7
    %v1394 = vsub.s32 1, %v1393
    %v1395 = vrot.slane %v828, %v1394
    %v1396 = vlaneseq
    %v1397 = vshrl.u32 %v1396, 7
    %v1398 = vsub.s32 2, %v1397
    %v1399 = vrot.slane %v828, %v1398
    %v1400 = vlaneseq
    %v1401 = vshrl.u32 %v1400, 7
    %v1402 = vsub.s32 3, %v1401
    %v1403 = vrot.slane %v828, %v1402
    %v1404 = vlaneseq
    %v1405 = vshrl.u32 %v1404, 7
    %v1406 = vsub.s32 4, %v1405
    %v1407 = vrot.slane %v828, %v1406
    %v1408 = vlaneseq
    %v1409 = vshrl.u32 %v1408, 7
    %v1410 = vsub.s32 5, %v1409
    %v1411 = vrot.slane %v828, %v1410
    %v1412 = vlaneseq
    %v1413 = vshrl.u32 %v1412, 7
    %v1414 = vsub.s32 6, %v1413
    %v1415 = vrot.slane %v828, %v1414
    %v1416 = vlaneseq
    %v1417 = vshrl.u32 %v1416, 7
    %v1418 = vsub.s32 7, %v1417
    %v1419 = vrot.slane %v828, %v1418
    %v1420 = vlaneseq
    %v1421 = vshrl.u32 %v1420, 7
    %v1422 = vsub.s32 0, %v1421
    %v1423 = vrot.slane %v829, %v1422
    %v1424 = vlaneseq
    %v1425 = vshrl.u32 %v1424, 7
    %v1426 = vsub.s32 1, %v1425
    %v1427 = vrot.slane %v829, %v1426
    %v1428 = vlaneseq
    %v1429 = vshrl.u32 %v1428, 7
    %v1430 = vsub.s32 2, %v1429
    %v1431 = vrot.slane %v829, %v1430
    %v1432 = vlaneseq
    %v1433 = vshrl.u32 %v1432, 7
    %v1434 = vsub.s32 3, %v1433
    %v1435 = vrot.slane %v829, %v1434
    %v1436 = vlaneseq
    %v1437 = vshrl.u32 %v1436, 7
    %v1438 = vsub.s32 4, %v1437
    %v1439 = vrot.slane %v829, %v1438
    %v1440 = vlaneseq
    %v1441 = vshrl.u32 %v1440, 7
    %v1442 = vsub.s32 5, %v1441
    %v1443 = vrot.slane %v829, %v1442
    %v1444 = vlaneseq
    %v1445 = vshrl.u32 %v1444, 7
    %v1446 = vsub.s32 6, %v1445
    %v1447 = vrot.slane %v829, %v1446
    %v1448 = vlaneseq
    %v1449 = vshrl.u32 %v1448, 7
    %v1450 = vsub.s32 7, %v1449
    %v1451 = vrot.slane %v829, %v1450
    %v1452 = vlaneseq
    %v1453 = vshrl.u32 %v1452, 7
    %v1454 = vsub.s32 0, %v1453
    %v1455 = vrot.slane %v830, %v1454
    %v1456 = vlaneseq
    %v1457 = vshrl.u32 %v1456, 7
    %v1458 = vsub.s32 1, %v1457
    %v1459 = vrot.slane %v830, %v1458
    %v1460 = vlaneseq
    %v1461 = vshrl.u32 %v1460, 7
    %v1462 = vsub.s32 2, %v1461
    %v1463 = vrot.slane %v830, %v1462
    %v1464 = vlaneseq
    %v1465 = vshrl.u32 %v1464, 7
    %v1466 = vsub.s32 3, %v1465
    %v1467 = vrot.slane %v830, %v1466
    %v1468 = vlaneseq
    %v1469 = vshrl.u32 %v1468, 7
    %v1470 = vsub.s32 4, %v1469
    %v1471 = vrot.slane %v830, %v1470
    %v1472 = vlaneseq
    %v1473 = vshrl.u32 %v1472, 7
    %v1474 = vsub.s32 5, %v1473
    %v1475 = vrot.slane %v830, %v1474
    %v1476 = vlaneseq
    %v1477 = vshrl.u32 %v1476, 7
    %v1478 = vsub.s32 6, %v1477
    %v1479 = vrot.slane %v830, %v1478
    %v1480 = vlaneseq
    %v1481 = vshrl.u32 %v1480, 7
    %v1482 = vsub.s32 7, %v1481
    %v1483 = vrot.slane %v830, %v1482
    %v1484 = vlaneseq
    %v1485 = vshrl.u32 %v1484, 7
    %v1486 = vsub.s32 0, %v1485
    %v1487 = vrot.slane %v831, %v1486
    %v1488 = vlaneseq
    %v1489 = vshrl.u32 %v1488, 7
    %v1490 = vsub.s32 1, %v1489
    %v1491 = vrot.slane %v831, %v1490
    %v1492 = vlaneseq
    %v1493 = vshrl.u32 %v1492, 7
    %v1494 = vsub.s32 2, %v1493
    %v1495 = vrot.slane %v831, %v1494
    %v1496 = vlaneseq
    %v1497 = vshrl.u32 %v1496, 7
    %v1498 = vsub.s32 3, %v1497
    %v1499 = vrot.slane %v831, %v1498
    %v1500 = vlaneseq
    %v1501 = vshrl.u32 %v1500, 7
    %v1502 = vsub.s32 4, %v1501
    %v1503 = vrot.slane %v831, %v1502
    %v1504 = vlaneseq
    %v1505 = vshrl.u32 %v1504, 7
    %v1506 = vsub.s32 5, %v1505
    %v1507 = vrot.slane %v831, %v1506
    %v1508 = vlaneseq
    %v1509 = vshrl.u32 %v1508, 7
    %v1510 = vsub.s32 6, %v1509
    %v1511 = vrot.slane %v831, %v1510
    %v1512 = vlaneseq
    %v1513 = vshrl.u32 %v1512, 7
    %v1514 = vsub.s32 7, %v1513
    %v1515 = vrot.slane %v831, %v1514
    %v1516 = vlaneseq
    %v1517 = vshrl.u32 %v1516, 7
    %v1518 = vsub.s32 0, %v1517
    %v1519 = vrot.slane %v832, %v1518
    %v1520 = vlaneseq
    %v1521 = vshrl.u32 %v1520, 7
    %v1522 = vsub.s32 1, %v1521
    %v1523 = vrot.slane %v832, %v1522
    %v1524 = vlaneseq
    %v1525 = vshrl.u32 %v1524, 7
    %v1526 = vsub.s32 2, %v1525
    %v1527 = vrot.slane %v832, %v1526
    %v1528 = vlaneseq
    %v1529 = vshrl.u32 %v1528, 7
    %v1530 = vsub.s32 3, %v1529
    %v1531 = vrot.slane %v832, %v1530
    %v1532 = vlaneseq
    %v1533 = vshrl.u32 %v1532, 7
    %v1534 = vsub.s32 4, %v1533
    %v1535 = vrot.slane %v832, %v1534
    %v1536 = vlaneseq
    %v1537 = vshrl.u32 %v1536, 7
    %v1538 = vsub.s32 5, %v1537
    %v1539 = vrot.slane %v832, %v1538
    %v1540 = vlaneseq
    %v1541 = vshrl.u32 %v1540, 7
    %v1542 = vsub.s32 6, %v1541
    %v1543 = vrot.slane %v832, %v1542
    %v1544 = vlaneseq
    %v1545 = vshrl.u32 %v1544, 7
    %v1546 = vsub.s32 7, %v1545
    %v1547 = vrot.slane %v832, %v1546
    %v1548 = vlaneseq
    %v1549 = vshrl.u32 %v1548, 7
    %v1550 = vsub.s32 0, %v1549
    %v1551 = vrot.slane %v833, %v1550
    %v1552 = vlaneseq
    %v1553 = vshrl.u32 %v1552, 7
    %v1554 = vsub.s32 1, %v1553
    %v1555 = vrot.slane %v833, %v1554
    %v1556 = vlaneseq
    %v1557 = vshrl.u32 %v1556, 7
    %v1558 = vsub.s32 2, %v1557
    %v1559 = vrot.slane %v833, %v1558
    %v1560 = vlaneseq
    %v1561 = vshrl.u32 %v1560, 7
    %v1562 = vsub.s32 3, %v1561
    %v1563 = vrot.slane %v833, %v1562
    %v1564 = vlaneseq
    %v1565 = vshrl.u32 %v1564, 7
    %v1566 = vsub.s32 4, %v1565
    %v1567 = vrot.slane %v833, %v1566
    %v1568 = vlaneseq
    %v1569 = vshrl.u32 %v1568, 7
    %v1570 = vsub.s32 5, %v1569
    %v1571 = vrot.slane %v833, %v1570
    %v1572 = vlaneseq
    %v1573 = vshrl.u32 %v1572, 7
    %v1574 = vsub.s32 6, %v1573
    %v1575 = vrot.slane %v833, %v1574
    %v1576 = vlaneseq
    %v1577 = vshrl.u32 %v1576, 7
    %v1578 = vsub.s32 7, %v1577
    %v1579 = vrot.slane %v833, %v1578
    %v1580 = vlaneseq
    %v1581 = vshrl.u32 %v1580, 7
    %v1582 = vsub.s32 0, %v1581
    %v1583 = vrot.slane %v834, %v1582
    %v1584 = vlaneseq
    %v1585 = vshrl.u32 %v1584, 7
    %v1586 = vsub.s32 1, %v1585
    %v1587 = vrot.slane %v834, %v1586
    %v1588 = vlaneseq
    %v1589 = vshrl.u32 %v1588, 7
    %v1590 = vsub.s32 2, %v1589
    %v1591 = vrot.slane %v834, %v1590
    %v1592 = vlaneseq
    %v1593 = vshrl.u32 %v1592, 7
    %v1594 = vsub.s32 3, %v1593
    %v1595 = vrot.slane %v834, %v1594
    %v1596 = vlaneseq
    %v1597 = vshrl.u32 %v1596, 7
    %v1598 = vsub.s32 4, %v1597
    %v1599 = vrot.slane %v834, %v1598
    %v1600 = vlaneseq
    %v1601 = vshrl.u32 %v1600, 7
    %v1602 = vsub.s32 5, %v1601
    %v1603 = vrot.slane %v834, %v1602
    %v1604 = vlaneseq
    %v1605 = vshrl.u32 %v1604, 7
    %v1606 = vsub.s32 6, %v1605
    %v1607 = vrot.slane %v834, %v1606
    %v1608 = vlaneseq
    %v1609 = vshrl.u32 %v1608, 7
    %v1610 = vsub.s32 7, %v1609
    %v1611 = vrot.slane %v834, %v1610
    %v1612 = vlaneseq
    %v1613 = vshrl.u32 %v1612, 7
    %v1614 = vsub.s32 0, %v1613
    %v1615 = vrot.slane %v835, %v1614
    %v1616 = vlaneseq
    %v1617 = vshrl.u32 %v1616, 7
    %v1618 = vsub.s32 1, %v1617
    %v1619 = vrot.slane %v835, %v1618
    %v1620 = vlaneseq
    %v1621 = vshrl.u32 %v1620, 7
    %v1622 = vsub.s32 2, %v1621
    %v1623 = vrot.slane %v835, %v1622
    %v1624 = vlaneseq
    %v1625 = vshrl.u32 %v1624, 7
    %v1626 = vsub.s32 3, %v1625
    %v1627 = vrot.slane %v835, %v1626
    %v1628 = vlaneseq
    %v1629 = vshrl.u32 %v1628, 7
    %v1630 = vsub.s32 4, %v1629
    %v1631 = vrot.slane %v835, %v1630
    %v1632 = vlaneseq
    %v1633 = vshrl.u32 %v1632, 7
    %v1634 = vsub.s32 5, %v1633
    %v1635 = vrot.slane %v835, %v1634
    %v1636 = vlaneseq
    %v1637 = vshrl.u32 %v1636, 7
    %v1638 = vsub.s32 6, %v1637
    %v1639 = vrot.slane %v835, %v1638
    %v1640 = vlaneseq
    %v1641 = vshrl.u32 %v1640, 7
    %v1642 = vsub.s32 7, %v1641
    %v1643 = vrot.slane %v835, %v1642
    %v1644 = vlaneseq
    %v1645 = vshrl.u32 %v1644, 7
    %v1646 = vsub.s32 0, %v1645
    %v1647 = vrot.slane %v836, %v1646
    %v1648 = vlaneseq
    %v1649 = vshrl.u32 %v1648, 7
    %v1650 = vsub.s32 1, %v1649
    %v1651 = vrot.slane %v836, %v1650
    %v1652 = vlaneseq
    %v1653 = vshrl.u32 %v1652, 7
    %v1654 = vsub.s32 2, %v1653
    %v1655 = vrot.slane %v836, %v1654
    %v1656 = vlaneseq
    %v1657 = vshrl.u32 %v1656, 7
    %v1658 = vsub.s32 3, %v1657
    %v1659 = vrot.slane %v836, %v1658
    %v1660 = vlaneseq
    %v1661 = vshrl.u32 %v1660, 7
    %v1662 = vsub.s32 4, %v1661
    %v1663 = vrot.slane %v836, %v1662
    %v1664 = vlaneseq
    %v1665 = vshrl.u32 %v1664, 7
    %v1666 = vsub.s32 5, %v1665
    %v1667 = vrot.slane %v836, %v1666
    %v1668 = vlaneseq
    %v1669 = vshrl.u32 %v1668, 7
    %v1670 = vsub.s32 6, %v1669
    %v1671 = vrot.slane %v836, %v1670
    %v1672 = vlaneseq
    %v1673 = vshrl.u32 %v1672, 7
    %v1674 = vsub.s32 7, %v1673
    %v1675 = vrot.slane %v836, %v1674
    %v1676 = vlaneseq
    %v1677 = vshrl.u32 %v1676, 7
    %v1678 = vsub.s32 0, %v1677
    %v1679 = vrot.slane %v837, %v1678
    %v1680 = vlaneseq
    %v1681 = vshrl.u32 %v1680, 7
    %v1682 = vsub.s32 1, %v1681
    %v1683 = vrot.slane %v837, %v1682
    %v1684 = vlaneseq
    %v1685 = vshrl.u32 %v1684, 7
    %v1686 = vsub.s32 2, %v1685
    %v1687 = vrot.slane %v837, %v1686
    %v1688 = vlaneseq
    %v1689 = vshrl.u32 %v1688, 7
    %v1690 = vsub.s32 3, %v1689
    %v1691 = vrot.slane %v837, %v1690
    %v1692 = vlaneseq
    %v1693 = vshrl.u32 %v1692, 7
    %v1694 = vsub.s32 4, %v1693
    %v1695 = vrot.slane %v837, %v1694
    %v1696 = vlaneseq
    %v1697 = vshrl.u32 %v1696, 7
    %v1698 = vsub.s32 5, %v1697
    %v1699 = vrot.slane %v837, %v1698
    %v1700 = vlaneseq
    %v1701 = vshrl.u32 %v1700, 7
    %v1702 = vsub.s32 6, %v1701
    %v1703 = vrot.slane %v837, %v1702
    %v1704 = vlaneseq
    %v1705 = vshrl.u32 %v1704, 7
    %v1706 = vsub.s32 7, %v1705
    %v1707 = vrot.slane %v837, %v1706
    %v1708 = vlaneseq
    %v1709 = vshrl.u32 %v1708, 7
    %v1710 = vsub.s32 0, %v1709
    %v1711 = vrot.slane %v838, %v1710
    %v1712 = vlaneseq
    %v1713 = vshrl.u32 %v1712, 7
    %v1714 = vsub.s32 1, %v1713
    %v1715 = vrot.slane %v838, %v1714
    %v1716 = vlaneseq
    %v1717 = vshrl.u32 %v1716, 7
    %v1718 = vsub.s32 2, %v1717
    %v1719 = vrot.slane %v838, %v1718
    %v1720 = vlaneseq
    %v1721 = vshrl.u32 %v1720, 7
    %v1722 = vsub.s32 3, %v1721
    %v1723 = vrot.slane %v838, %v1722
    %v1724 = vlaneseq
    %v1725 = vshrl.u32 %v1724, 7
    %v1726 = vsub.s32 4, %v1725
    %v1727 = vrot.slane %v838, %v1726
    %v1728 = vlaneseq
    %v1729 = vshrl.u32 %v1728, 7
    %v1730 = vsub.s32 5, %v1729
    %v1731 = vrot.slane %v838, %v1730
    %v1732 = vlaneseq
    %v1733 = vshrl.u32 %v1732, 7
    %v1734 = vsub.s32 6, %v1733
    %v1735 = vrot.slane %v838, %v1734
    %v1736 = vlaneseq
    %v1737 = vshrl.u32 %v1736, 7
    %v1738 = vsub.s32 7, %v1737
    %v1739 = vrot.slane %v838, %v1738
    %v1740 = vlaneseq
    %v1741 = vshrl.u32 %v1740, 7
    %v1742 = vsub.s32 0, %v1741
    %v1743 = vrot.slane %v839, %v1742
    %v1744 = vlaneseq
    %v1745 = vshrl.u32 %v1744, 7
    %v1746 = vsub.s32 1, %v1745
    %v1747 = vrot.slane %v839, %v1746
    %v1748 = vlaneseq
    %v1749 = vshrl.u32 %v1748, 7
    %v1750 = vsub.s32 2, %v1749
    %v1751 = vrot.slane %v839, %v1750
    %v1752 = vlaneseq
    %v1753 = vshrl.u32 %v1752, 7
    %v1754 = vsub.s32 3, %v1753
    %v1755 = vrot.slane %v839, %v1754
    %v1756 = vlaneseq
    %v1757 = vshrl.u32 %v1756, 7
    %v1758 = vsub.s32 4, %v1757
    %v1759 = vrot.slane %v839, %v1758
    %v1760 = vlaneseq
    %v1761 = vshrl.u32 %v1760, 7
    %v1762 = vsub.s32 5, %v1761
    %v1763 = vrot.slane %v839, %v1762
    %v1764 = vlaneseq
    %v1765 = vshrl.u32 %v1764, 7
    %v1766 = vsub.s32 6, %v1765
    %v1767 = vrot.slane %v839, %v1766
    %v1768 = vlaneseq
    %v1769 = vshrl.u32 %v1768, 7
    %v1770 = vsub.s32 7, %v1769
    %v1771 = vrot.slane %v839, %v1770
    %v1772 = vlaneseq
    %v1773 = vshrl.u32 %v1772, 7
    %v1774 = vsub.s32 0, %v1773
    %v1775 = vrot.slane %v840, %v1774
    %v1776 = vlaneseq
    %v1777 = vshrl.u32 %v1776, 7
    %v1778 = vsub.s32 1, %v1777
    %v1779 = vrot.slane %v840, %v1778
    %v1780 = vlaneseq
    %v1781 = vshrl.u32 %v1780, 7
    %v1782 = vsub.s32 2, %v1781
    %v1783 = vrot.slane %v840, %v1782
    %v1784 = vlaneseq
    %v1785 = vshrl.u32 %v1784, 7
    %v1786 = vsub.s32 3, %v1785
    %v1787 = vrot.slane %v840, %v1786
    %v1788 = vlaneseq
    %v1789 = vshrl.u32 %v1788, 7
    %v1790 = vsub.s32 4, %v1789
    %v1791 = vrot.slane %v840, %v1790
    %v1792 = vlaneseq
    %v1793 = vshrl.u32 %v1792, 7
    %v1794 = vsub.s32 5, %v1793
    %v1795 = vrot.slane %v840, %v1794
    %v1796 = vlaneseq
    %v1797 = vshrl.u32 %v1796, 7
    %v1798 = vsub.s32 6, %v1797
    %v1799 = vrot.slane %v840, %v1798
    %v1800 = vlaneseq
    %v1801 = vshrl.u32 %v1800, 7
    %v1802 = vsub.s32 7, %v1801
    %v1803 = vrot.slane %v840, %v1802
    %v1804 = vlaneseq
    %v1805 = vshrl.u32 %v1804, 7
    %v1806 = vsub.s32 0, %v1805
    %v1807 = vrot.slane %v841, %v1806
    %v1808 = vlaneseq
    %v1809 = vshrl.u32 %v1808, 7
    %v1810 = vsub.s32 1, %v1809
    %v1811 = vrot.slane %v841, %v1810
    %v1812 = vlaneseq
    %v1813 = vshrl.u32 %v1812, 7
    %v1814 = vsub.s32 2, %v1813
    %v1815 = vrot.slane %v841, %v1814
    %v1816 = vlaneseq
    %v1817 = vshrl.u32 %v1816, 7
    %v1818 = vsub.s32 3, %v1817
    %v1819 = vrot.slane %v841, %v1818
    %v1820 = vlaneseq
    %v1821 = vshrl.u32 %v1820, 7
    %v1822 = vsub.s32 4, %v1821
    %v1823 = vrot.slane %v841, %v1822
    %v1824 = vlaneseq
    %v1825 = vshrl.u32 %v1824, 7
    %v1826 = vsub.s32 5, %v1825
    %v1827 = vrot.slane %v841, %v1826
    %v1828 = vlaneseq
    %v1829 = vshrl.u32 %v1828, 7
    %v1830 = vsub.s32 6, %v1829
    %v1831 = vrot.slane %v841, %v1830
    %v1832 = vlaneseq
    %v1833 = vshrl.u32 %v1832, 7
    %v1834 = vsub.s32 7, %v1833
    %v1835 = vrot.slane %v841, %v1834
    %v1836 = vlaneseq
    %v1837 = vshrl.u32 %v1836, 7
    %v1838 = vsub.s32 0, %v1837
    %v1839 = vrot.slane %v842, %v1838
    %v1840 = vlaneseq
    %v1841 = vshrl.u32 %v1840, 7
    %v1842 = vsub.s32 1, %v1841
    %v1843 = vrot.slane %v842, %v1842
    %v1844 = vlaneseq
    %v1845 = vshrl.u32 %v1844, 7
    %v1846 = vsub.s32 2, %v1845
    %v1847 = vrot.slane %v842, %v1846
    %v1848 = vlaneseq
    %v1849 = vshrl.u32 %v1848, 7
    %v1850 = vsub.s32 3, %v1849
    %v1851 = vrot.slane %v842, %v1850
    %v1852 = vlaneseq
    %v1853 = vshrl.u32 %v1852, 7
    %v1854 = vsub.s32 4, %v1853
    %v1855 = vrot.slane %v842, %v1854
    %v1856 = vlaneseq
    %v1857 = vshrl.u32 %v1856, 7
    %v1858 = vsub.s32 5, %v1857
    %v1859 = vrot.slane %v842, %v1858
    %v1860 = vlaneseq
    %v1861 = vshrl.u32 %v1860, 7
    %v1862 = vsub.s32 6, %v1861
    %v1863 = vrot.slane %v842, %v1862
    %v1864 = vlaneseq
    %v1865 = vshrl.u32 %v1864, 7
    %v1866 = vsub.s32 7, %v1865
    %v1867 = vrot.slane %v842, %v1866
    %v1868 = vlaneseq
    %v1869 = vshrl.u32 %v1868, 7
    %v1870 = vsub.s32 0, %v1869
    %v1871 = vrot.slane %v843, %v1870
    %v1872 = vlaneseq
    %v1873 = vshrl.u32 %v1872, 7
    %v1874 = vsub.s32 1, %v1873
    %v1875 = vrot.slane %v843, %v1874
    %v1876 = vlaneseq
    %v1877 = vshrl.u32 %v1876, 7
    %v1878 = vsub.s32 2, %v1877
    %v1879 = vrot.slane %v843, %v1878
    %v1880 = vlaneseq
    %v1881 = vshrl.u32 %v1880, 7
    %v1882 = vsub.s32 3, %v1881
    %v1883 = vrot.slane %v843, %v1882
    %v1884 = vlaneseq
    %v1885 = vshrl.u32 %v1884, 7
    %v1886 = vsub.s32 4, %v1885
    %v1887 = vrot.slane %v843, %v1886
    %v1888 = vlaneseq
    %v1889 = vshrl.u32 %v1888, 7
    %v1890 = vsub.s32 5, %v1889
    %v1891 = vrot.slane %v843, %v1890
    %v1892 = vlaneseq
    %v1893 = vshrl.u32 %v1892, 7
    %v1894 = vsub.s32 6, %v1893
    %v1895 = vrot.slane %v843, %v1894
    %v1896 = vlaneseq
    %v1897 = vshrl.u32 %v1896, 7
    %v1898 = vsub.s32 7, %v1897
    %v1899 = vrot.slane %v843, %v1898
    %v1900 = vcombine.low %v879, %v883
    %v1901 = vcombine.low %v887, %v891
    %v1902 = vcombine.low %v895, %v899
    %v1903 = vcombine.low %v903, %v907
    %v1905 = vunpack.c.l.s4 1966171168
    %v1906 = vunpack.c.0.s8 %v1905
    %v1907 = vlaneseq
    %v1908 = vshrl.u32 %v1907, 7
    %v1909 = vsub.s32 %v1906, %v1908
    %v1910 = vrot.slane %v1900, %v1909
    %v1912 = vunpack.c.l.s4 1966171168
    %v1913 = vunpack.c.0.s8 %v1912
    %v1914 = vlaneseq
    %v1915 = vshrl.u32 %v1914, 7
    %v1916 = vsub.s32 %v1913, %v1915
    %v1917 = vrot.slane %v1901, %v1916
    %v1919 = vunpack.c.l.s4 1966171168
    %v1920 = vunpack.c.0.s8 %v1919
    %v1921 = vlaneseq
    %v1922 = vshrl.u32 %v1921, 7
    %v1923 = vsub.s32 %v1920, %v1922
    %v1924 = vrot.slane %v1902, %v1923
    %v1926 = vunpack.c.l.s4 1966171168
    %v1927 = vunpack.c.0.s8 %v1926
    %v1928 = vlaneseq
    %v1929 = vshrl.u32 %v1928, 7
    %v1930 = vsub.s32 %v1927, %v1929
    %v1931 = vrot.slane %v1903, %v1930
    %v1932 = vcombine.low %v1910, %v1917
    %v1933 = vcombine.low %v1924, %v1931
    %v1935 = vunpack.c.l.s4 1966171168
    %v1936 = vunpack.c.0.s8 %v1935
    %v1937 = vlaneseq
    %v1938 = vshrl.u32 %v1937, 7
    %v1939 = vsub.s32 %v1936, %v1938
    %v1940 = vrot.slane %v1932, %v1939
    %v1942 = vunpack.c.l.s4 1966171168
    %v1943 = vunpack.c.0.s8 %v1942
    %v1944 = vlaneseq
    %v1945 = vshrl.u32 %v1944, 7
    %v1946 = vsub.s32 %v1943, %v1945
    %v1947 = vrot.slane %v1933, %v1946
    %v1948 = vcombine.low %v1940, %v1947
    %v1949 = vcombine.low %v911, %v915
    %v1950 = vcombine.low %v919, %v923
    %v1951 = vcombine.low %v927, %v931
    %v1952 = vcombine.low %v935, %v939
    %v1954 = vunpack.c.l.s4 1966171168
    %v1955 = vunpack.c.0.s8 %v1954
    %v1956 = vlaneseq
    %v1957 = vshrl.u32 %v1956, 7
    %v1958 = vsub.s32 %v1955, %v1957
    %v1959 = vrot.slane %v1949, %v1958
    %v1961 = vunpack.c.l.s4 1966171168
    %v1962 = vunpack.c.0.s8 %v1961
    %v1963 = vlaneseq
    %v1964 = vshrl.u32 %v1963, 7
    %v1965 = vsub.s32 %v1962, %v1964
    %v1966 = vrot.slane %v1950, %v1965
    %v1968 = vunpack.c.l.s4 1966171168
    %v1969 = vunpack.c.0.s8 %v1968
    %v1970 = vlaneseq
    %v1971 = vshrl.u32 %v1970, 7
    %v1972 = vsub.s32 %v1969, %v1971
    %v1973 = vrot.slane %v1951, %v1972
    %v1975 = vunpack.c.l.s4 1966171168
    %v1976 = vunpack.c.0.s8 %v1975
    %v1977 = vlaneseq
    %v1978 = vshrl.u32 %v1977, 7
    %v1979 = vsub.s32 %v1976, %v1978
    %v1980 = vrot.slane %v1952, %v1979
    %v1981 = vcombine.low %v1959, %v1966
    %v1982 = vcombine.low %v1973, %v1980
    %v1984 = vunpack.c.l.s4 1966171168
    %v1985 = vunpack.c.0.s8 %v1984
    %v1986 = vlaneseq
    %v1987 = vshrl.u32 %v1986, 7
    %v1988 = vsub.s32 %v1985, %v1987
    %v1989 = vrot.slane %v1981, %v1988
    %v1991 = vunpack.c.l.s4 1966171168
    %v1992 = vunpack.c.0.s8 %v1991
    %v1993 = vlaneseq
    %v1994 = vshrl.u32 %v1993, 7
    %v1995 = vsub.s32 %v1992, %v1994
    %v1996 = vrot.slane %v1982, %v1995
    %v1997 = vcombine.low %v1989, %v1996
    %v1998 = vcombine.low %v943, %v947
    %v1999 = vcombine.low %v951, %v955
    %v2000 = vcombine.low %v959, %v963
    %v2001 = vcombine.low %v967, %v971
    %v2003 = vunpack.c.l.s4 1966171168
    %v2004 = vunpack.c.0.s8 %v2003
    %v2005 = vlaneseq
    %v2006 = vshrl.u32 %v2005, 7
    %v2007 = vsub.s32 %v2004, %v2006
    %v2008 = vrot.slane %v1998, %v2007
    %v2010 = vunpack.c.l.s4 1966171168
    %v2011 = vunpack.c.0.s8 %v2010
    %v2012 = vlaneseq
    %v2013 = vshrl.u32 %v2012, 7
    %v2014 = vsub.s32 %v2011, %v2013
    %v2015 = vrot.slane %v1999, %v2014
    %v2017 = vunpack.c.l.s4 1966171168
    %v2018 = vunpack.c.0.s8 %v2017
    %v2019 = vlaneseq
    %v2020 = vshrl.u32 %v2019, 7
    %v2021 = vsub.s32 %v2018, %v2020
    %v2022 = vrot.slane %v2000, %v2021
    %v2024 = vunpack.c.l.s4 1966171168
    %v2025 = vunpack.c.0.s8 %v2024
    %v2026 = vlaneseq
    %v2027 = vshrl.u32 %v2026, 7
    %v2028 = vsub.s32 %v2025, %v2027
    %v2029 = vrot.slane %v2001, %v2028
    %v2030 = vcombine.low %v2008, %v2015
    %v2031 = vcombine.low %v2022, %v2029
    %v2033 = vunpack.c.l.s4 1966171168
    %v2034 = vunpack.c.0.s8 %v2033
    %v2035 = vlaneseq
    %v2036 = vshrl.u32 %v2035, 7
    %v2037 = vsub.s32 %v2034, %v2036
    %v2038 = vrot.slane %v2030, %v2037
    %v2040 = vunpack.c.l.s4 1966171168
    %v2041 = vunpack.c.0.s8 %v2040
    %v2042 = vlaneseq
    %v2043 = vshrl.u32 %v2042, 7
    %v2044 = vsub.s32 %v2041, %v2043
    %v2045 = vrot.slane %v2031, %v2044
    %v2046 = vcombine.low %v2038, %v2045
    %v2047 = vcombine.low %v975, %v979
    %v2048 = vcombine.low %v983, %v987
    %v2049 = vcombine.low %v991, %v995
    %v2050 = vcombine.low %v999, %v1003
    %v2052 = vunpack.c.l.s4 1966171168
    %v2053 = vunpack.c.0.s8 %v2052
    %v2054 = vlaneseq
    %v2055 = vshrl.u32 %v2054, 7
    %v2056 = vsub.s32 %v2053, %v2055
    %v2057 = vrot.slane %v2047, %v2056
    %v2059 = vunpack.c.l.s4 1966171168
    %v2060 = vunpack.c.0.s8 %v2059
    %v2061 = vlaneseq
    %v2062 = vshrl.u32 %v2061, 7
    %v2063 = vsub.s32 %v2060, %v2062
    %v2064 = vrot.slane %v2048, %v2063
    %v2066 = vunpack.c.l.s4 1966171168
    %v2067 = vunpack.c.0.s8 %v2066
    %v2068 = vlaneseq
    %v2069 = vshrl.u32 %v2068, 7
    %v2070 = vsub.s32 %v2067, %v2069
    %v2071 = vrot.slane %v2049, %v2070
    %v2073 = vunpack.c.l.s4 1966171168
    %v2074 = vunpack.c.0.s8 %v2073
    %v2075 = vlaneseq
    %v2076 = vshrl.u32 %v2075, 7
    %v2077 = vsub.s32 %v2074, %v2076
    %v2078 = vrot.slane %v2050, %v2077
    %v2079 = vcombine.low %v2057, %v2064
    %v2080 = vcombine.low %v2071, %v2078
    %v2082 = vunpack.c.l.s4 1966171168
    %v2083 = vunpack.c.0.s8 %v2082
    %v2084 = vlaneseq
    %v2085 = vshrl.u32 %v2084, 7
    %v2086 = vsub.s32 %v2083, %v2085
    %v2087 = vrot.slane %v2079, %v2086
    %v2089 = vunpack.c.l.s4 1966171168
    %v2090 = vunpack.c.0.s8 %v2089
    %v2091 = vlaneseq
    %v2092 = vshrl.u32 %v2091, 7
    %v2093 = vsub.s32 %v2090, %v2092
    %v2094 = vrot.slane %v2080, %v2093
    %v2095 = vcombine.low %v2087, %v2094
    %v2096 = vcombine.low %v1007, %v1011
    %v2097 = vcombine.low %v1015, %v1019
    %v2098 = vcombine.low %v1023, %v1027
    %v2099 = vcombine.low %v1031, %v1035
    %v2101 = vunpack.c.l.s4 1966171168
    %v2102 = vunpack.c.0.s8 %v2101
    %v2103 = vlaneseq
    %v2104 = vshrl.u32 %v2103, 7
    %v2105 = vsub.s32 %v2102, %v2104
    %v2106 = vrot.slane %v2096, %v2105
    %v2108 = vunpack.c.l.s4 1966171168
    %v2109 = vunpack.c.0.s8 %v2108
    %v2110 = vlaneseq
    %v2111 = vshrl.u32 %v2110, 7
    %v2112 = vsub.s32 %v2109, %v2111
    %v2113 = vrot.slane %v2097, %v2112
    %v2115 = vunpack.c.l.s4 1966171168
    %v2116 = vunpack.c.0.s8 %v2115
    %v2117 = vlaneseq
    %v2118 = vshrl.u32 %v2117, 7
    %v2119 = vsub.s32 %v2116, %v2118
    %v2120 = vrot.slane %v2098, %v2119
    %v2122 = vunpack.c.l.s4 1966171168
    %v2123 = vunpack.c.0.s8 %v2122
    %v2124 = vlaneseq
    %v2125 = vshrl.u32 %v2124, 7
    %v2126 = vsub.s32 %v2123, %v2125
    %v2127 = vrot.slane %v2099, %v2126
    %v2128 = vcombine.low %v2106, %v2113
    %v2129 = vcombine.low %v2120, %v2127
    %v2131 = vunpack.c.l.s4 1966171168
    %v2132 = vunpack.c.0.s8 %v2131
    %v2133 = vlaneseq
    %v2134 = vshrl.u32 %v2133, 7
    %v2135 = vsub.s32 %v2132, %v2134
    %v2136 = vrot.slane %v2128, %v2135
    %v2138 = vunpack.c.l.s4 1966171168
    %v2139 = vunpack.c.0.s8 %v2138
    %v2140 = vlaneseq
    %v2141 = vshrl.u32 %v2140, 7
    %v2142 = vsub.s32 %v2139, %v2141
    %v2143 = vrot.slane %v2129, %v2142
    %v2144 = vcombine.low %v2136, %v2143
    %v2145 = vcombine.low %v1039, %v1043
    %v2146 = vcombine.low %v1047, %v1051
    %v2147 = vcombine.low %v1055, %v1059
    %v2148 = vcombine.low %v1063, %v1067
    %v2150 = vunpack.c.l.s4 1966171168
    %v2151 = vunpack.c.0.s8 %v2150
    %v2152 = vlaneseq
    %v2153 = vshrl.u32 %v2152, 7
    %v2154 = vsub.s32 %v2151, %v2153
    %v2155 = vrot.slane %v2145, %v2154
    %v2157 = vunpack.c.l.s4 1966171168
    %v2158 = vunpack.c.0.s8 %v2157
    %v2159 = vlaneseq
    %v2160 = vshrl.u32 %v2159, 7
    %v2161 = vsub.s32 %v2158, %v2160
    %v2162 = vrot.slane %v2146, %v2161
    %v2164 = vunpack.c.l.s4 1966171168
    %v2165 = vunpack.c.0.s8 %v2164
    %v2166 = vlaneseq
    %v2167 = vshrl.u32 %v2166, 7
    %v2168 = vsub.s32 %v2165, %v2167
    %v2169 = vrot.slane %v2147, %v2168
    %v2171 = vunpack.c.l.s4 1966171168
    %v2172 = vunpack.c.0.s8 %v2171
    %v2173 = vlaneseq
    %v2174 = vshrl.u32 %v2173, 7
    %v2175 = vsub.s32 %v2172, %v2174
    %v2176 = vrot.slane %v2148, %v2175
    %v2177 = vcombine.low %v2155, %v2162
    %v2178 = vcombine.low %v2169, %v2176
    %v2180 = vunpack.c.l.s4 1966171168
    %v2181 = vunpack.c.0.s8 %v2180
    %v2182 = vlaneseq
    %v2183 = vshrl.u32 %v2182, 7
    %v2184 = vsub.s32 %v2181, %v2183
    %v2185 = vrot.slane %v2177, %v2184
    %v2187 = vunpack.c.l.s4 1966171168
    %v2188 = vunpack.c.0.s8 %v2187
    %v2189 = vlaneseq
    %v2190 = vshrl.u32 %v2189, 7
    %v2191 = vsub.s32 %v2188, %v2190
    %v2192 = vrot.slane %v2178, %v2191
    %v2193 = vcombine.low %v2185, %v2192
    %v2194 = vcombine.low %v1071, %v1075
    %v2195 = vcombine.low %v1079, %v1083
    %v2196 = vcombine.low %v1087, %v1091
    %v2197 = vcombine.low %v1095, %v1099
    %v2199 = vunpack.c.l.s4 1966171168
    %v2200 = vunpack.c.0.s8 %v2199
    %v2201 = vlaneseq
    %v2202 = vshrl.u32 %v2201, 7
    %v2203 = vsub.s32 %v2200, %v2202
    %v2204 = vrot.slane %v2194, %v2203
    %v2206 = vunpack.c.l.s4 1966171168
    %v2207 = vunpack.c.0.s8 %v2206
    %v2208 = vlaneseq
    %v2209 = vshrl.u32 %v2208, 7
    %v2210 = vsub.s32 %v2207, %v2209
    %v2211 = vrot.slane %v2195, %v2210
    %v2213 = vunpack.c.l.s4 1966171168
    %v2214 = vunpack.c.0.s8 %v2213
    %v2215 = vlaneseq
    %v2216 = vshrl.u32 %v2215, 7
    %v2217 = vsub.s32 %v2214, %v2216
    %v2218 = vrot.slane %v2196, %v2217
    %v2220 = vunpack.c.l.s4 1966171168
    %v2221 = vunpack.c.0.s8 %v2220
    %v2222 = vlaneseq
    %v2223 = vshrl.u32 %v2222, 7
    %v2224 = vsub.s32 %v2221, %v2223
    %v2225 = vrot.slane %v2197, %v2224
    %v2226 = vcombine.low %v2204, %v2211
    %v2227 = vcombine.low %v2218, %v2225
    %v2229 = vunpack.c.l.s4 1966171168
    %v2230 = vunpack.c.0.s8 %v2229
    %v2231 = vlaneseq
    %v2232 = vshrl.u32 %v2231, 7
    %v2233 = vsub.s32 %v2230, %v2232
    %v2234 = vrot.slane %v2226, %v2233
    %v2236 = vunpack.c.l.s4 1966171168
    %v2237 = vunpack.c.0.s8 %v2236
    %v2238 = vlaneseq
    %v2239 = vshrl.u32 %v2238, 7
    %v2240 = vsub.s32 %v2237, %v2239
    %v2241 = vrot.slane %v2227, %v2240
    %v2242 = vcombine.low %v2234, %v2241
    %v2243 = vcombine.low %v1103, %v1107
    %v2244 = vcombine.low %v1111, %v1115
    %v2245 = vcombine.low %v1119, %v1123
    %v2246 = vcombine.low %v1127, %v1131
    %v2248 = vunpack.c.l.s4 1966171168
    %v2249 = vunpack.c.0.s8 %v2248
    %v2250 = vlaneseq
    %v2251 = vshrl.u32 %v2250, 7
    %v2252 = vsub.s32 %v2249, %v2251
    %v2253 = vrot.slane %v2243, %v2252
    %v2255 = vunpack.c.l.s4 1966171168
    %v2256 = vunpack.c.0.s8 %v2255
    %v2257 = vlaneseq
    %v2258 = vshrl.u32 %v2257, 7
    %v2259 = vsub.s32 %v2256, %v2258
    %v2260 = vrot.slane %v2244, %v2259
    %v2262 = vunpack.c.l.s4 1966171168
    %v2263 = vunpack.c.0.s8 %v2262
    %v2264 = vlaneseq
    %v2265 = vshrl.u32 %v2264, 7
    %v2266 = vsub.s32 %v2263, %v2265
    %v2267 = vrot.slane %v2245, %v2266
    %v2269 = vunpack.c.l.s4 1966171168
    %v2270 = vunpack.c.0.s8 %v2269
    %v2271 = vlaneseq
    %v2272 = vshrl.u32 %v2271, 7
    %v2273 = vsub.s32 %v2270, %v2272
    %v2274 = vrot.slane %v2246, %v2273
    %v2275 = vcombine.low %v2253, %v2260
    %v2276 = vcombine.low %v2267, %v2274
    %v2278 = vunpack.c.l.s4 1966171168
    %v2279 = vunpack.c.0.s8 %v2278
    %v2280 = vlaneseq
    %v2281 = vshrl.u32 %v2280, 7
    %v2282 = vsub.s32 %v2279, %v2281
    %v2283 = vrot.slane %v2275, %v2282
    %v2285 = vunpack.c.l.s4 1966171168
    %v2286 = vunpack.c.0.s8 %v2285
    %v2287 = vlaneseq
    %v2288 = vshrl.u32 %v2287, 7
    %v2289 = vsub.s32 %v2286, %v2288
    %v2290 = vrot.slane %v2276, %v2289
    %v2291 = vcombine.low %v2283, %v2290
    %v2292 = vcombine.low %v1135, %v1139
    %v2293 = vcombine.low %v1143, %v1147
    %v2294 = vcombine.low %v1151, %v1155
    %v2295 = vcombine.low %v1159, %v1163
    %v2297 = vunpack.c.l.s4 1966171168
    %v2298 = vunpack.c.0.s8 %v2297
    %v2299 = vlaneseq
    %v2300 = vshrl.u32 %v2299, 7
    %v2301 = vsub.s32 %v2298, %v2300
    %v2302 = vrot.slane %v2292, %v2301
    %v2304 = vunpack.c.l.s4 1966171168
    %v2305 = vunpack.c.0.s8 %v2304
    %v2306 = vlaneseq
    %v2307 = vshrl.u32 %v2306, 7
    %v2308 = vsub.s32 %v2305, %v2307
    %v2309 = vrot.slane %v2293, %v2308
    %v2311 = vunpack.c.l.s4 1966171168
    %v2312 = vunpack.c.0.s8 %v2311
    %v2313 = vlaneseq
    %v2314 = vshrl.u32 %v2313, 7
    %v2315 = vsub.s32 %v2312, %v2314
    %v2316 = vrot.slane %v2294, %v2315
    %v2318 = vunpack.c.l.s4 1966171168
    %v2319 = vunpack.c.0.s8 %v2318
    %v2320 = vlaneseq
    %v2321 = vshrl.u32 %v2320, 7
    %v2322 = vsub.s32 %v2319, %v2321
    %v2323 = vrot.slane %v2295, %v2322
    %v2324 = vcombine.low %v2302, %v2309
    %v2325 = vcombine.low %v2316, %v2323
    %v2327 = vunpack.c.l.s4 1966171168
    %v2328 = vunpack.c.0.s8 %v2327
    %v2329 = vlaneseq
    %v2330 = vshrl.u32 %v2329, 7
    %v2331 = vsub.s32 %v2328, %v2330
    %v2332 = vrot.slane %v2324, %v2331
    %v2334 = vunpack.c.l.s4 1966171168
    %v2335 = vunpack.c.0.s8 %v2334
    %v2336 = vlaneseq
    %v2337 = vshrl.u32 %v2336, 7
    %v2338 = vsub.s32 %v2335, %v2337
    %v2339 = vrot.slane %v2325, %v2338
    %v2340 = vcombine.low %v2332, %v2339
    %v2341 = vcombine.low %v1167, %v1171
    %v2342 = vcombine.low %v1175, %v1179
    %v2343 = vcombine.low %v1183, %v1187
    %v2344 = vcombine.low %v1191, %v1195
    %v2346 = vunpack.c.l.s4 1966171168
    %v2347 = vunpack.c.0.s8 %v2346
    %v2348 = vlaneseq
    %v2349 = vshrl.u32 %v2348, 7
    %v2350 = vsub.s32 %v2347, %v2349
    %v2351 = vrot.slane %v2341, %v2350
    %v2353 = vunpack.c.l.s4 1966171168
    %v2354 = vunpack.c.0.s8 %v2353
    %v2355 = vlaneseq
    %v2356 = vshrl.u32 %v2355, 7
    %v2357 = vsub.s32 %v2354, %v2356
    %v2358 = vrot.slane %v2342, %v2357
    %v2360 = vunpack.c.l.s4 1966171168
    %v2361 = vunpack.c.0.s8 %v2360
    %v2362 = vlaneseq
    %v2363 = vshrl.u32 %v2362, 7
    %v2364 = vsub.s32 %v2361, %v2363
    %v2365 = vrot.slane %v2343, %v2364
    %v2367 = vunpack.c.l.s4 1966171168
    %v2368 = vunpack.c.0.s8 %v2367
    %v2369 = vlaneseq
    %v2370 = vshrl.u32 %v2369, 7
    %v2371 = vsub.s32 %v2368, %v2370
    %v2372 = vrot.slane %v2344, %v2371
    %v2373 = vcombine.low %v2351, %v2358
    %v2374 = vcombine.low %v2365, %v2372
    %v2376 = vunpack.c.l.s4 1966171168
    %v2377 = vunpack.c.0.s8 %v2376
    %v2378 = vlaneseq
    %v2379 = vshrl.u32 %v2378, 7
    %v2380 = vsub.s32 %v2377, %v2379
    %v2381 = vrot.slane %v2373, %v2380
    %v2383 = vunpack.c.l.s4 1966171168
    %v2384 = vunpack.c.0.s8 %v2383
    %v2385 = vlaneseq
    %v2386 = vshrl.u32 %v2385, 7
    %v2387 = vsub.s32 %v2384, %v2386
    %v2388 = vrot.slane %v2374, %v2387
    %v2389 = vcombine.low %v2381, %v2388
    %v2390 = vcombine.low %v1199, %v1203
    %v2391 = vcombine.low %v1207, %v1211
    %v2392 = vcombine.low %v1215, %v1219
    %v2393 = vcombine.low %v1223, %v1227
    %v2395 = vunpack.c.l.s4 1966171168
    %v2396 = vunpack.c.0.s8 %v2395
    %v2397 = vlaneseq
    %v2398 = vshrl.u32 %v2397, 7
    %v2399 = vsub.s32 %v2396, %v2398
    %v2400 = vrot.slane %v2390, %v2399
    %v2402 = vunpack.c.l.s4 1966171168
    %v2403 = vunpack.c.0.s8 %v2402
    %v2404 = vlaneseq
    %v2405 = vshrl.u32 %v2404, 7
    %v2406 = vsub.s32 %v2403, %v2405
    %v2407 = vrot.slane %v2391, %v2406
    %v2409 = vunpack.c.l.s4 1966171168
    %v2410 = vunpack.c.0.s8 %v2409
    %v2411 = vlaneseq
    %v2412 = vshrl.u32 %v2411, 7
    %v2413 = vsub.s32 %v2410, %v2412
    %v2414 = vrot.slane %v2392, %v2413
    %v2416 = vunpack.c.l.s4 1966171168
    %v2417 = vunpack.c.0.s8 %v2416
    %v2418 = vlaneseq
    %v2419 = vshrl.u32 %v2418, 7
    %v2420 = vsub.s32 %v2417, %v2419
    %v2421 = vrot.slane %v2393, %v2420
    %v2422 = vcombine.low %v2400, %v2407
    %v2423 = vcombine.low %v2414, %v2421
    %v2425 = vunpack.c.l.s4 1966171168
    %v2426 = vunpack.c.0.s8 %v2425
    %v2427 = vlaneseq
    %v2428 = vshrl.u32 %v2427, 7
    %v2429 = vsub.s32 %v2426, %v2428
    %v2430 = vrot.slane %v2422, %v2429
    %v2432 = vunpack.c.l.s4 1966171168
    %v2433 = vunpack.c.0.s8 %v2432
    %v2434 = vlaneseq
    %v2435 = vshrl.u32 %v2434, 7
    %v2436 = vsub.s32 %v2433, %v2435
    %v2437 = vrot.slane %v2423, %v2436
    %v2438 = vcombine.low %v2430, %v2437
    %v2439 = vcombine.low %v1231, %v1235
    %v2440 = vcombine.low %v1239, %v1243
    %v2441 = vcombine.low %v1247, %v1251
    %v2442 = vcombine.low %v1255, %v1259
    %v2444 = vunpack.c.l.s4 1966171168
    %v2445 = vunpack.c.0.s8 %v2444
    %v2446 = vlaneseq
    %v2447 = vshrl.u32 %v2446, 7
    %v2448 = vsub.s32 %v2445, %v2447
    %v2449 = vrot.slane %v2439, %v2448
    %v2451 = vunpack.c.l.s4 1966171168
    %v2452 = vunpack.c.0.s8 %v2451
    %v2453 = vlaneseq
    %v2454 = vshrl.u32 %v2453, 7
    %v2455 = vsub.s32 %v2452, %v2454
    %v2456 = vrot.slane %v2440, %v2455
    %v2458 = vunpack.c.l.s4 1966171168
    %v2459 = vunpack.c.0.s8 %v2458
    %v2460 = vlaneseq
    %v2461 = vshrl.u32 %v2460, 7
    %v2462 = vsub.s32 %v2459, %v2461
    %v2463 = vrot.slane %v2441, %v2462
    %v2465 = vunpack.c.l.s4 1966171168
    %v2466 = vunpack.c.0.s8 %v2465
    %v2467 = vlaneseq
    %v2468 = vshrl.u32 %v2467, 7
    %v2469 = vsub.s32 %v2466, %v2468
    %v2470 = vrot.slane %v2442, %v2469
    %v2471 = vcombine.low %v2449, %v2456
    %v2472 = vcombine.low %v2463, %v2470
    %v2474 = vunpack.c.l.s4 1966171168
    %v2475 = vunpack.c.0.s8 %v2474
    %v2476 = vlaneseq
    %v2477 = vshrl.u32 %v2476, 7
    %v2478 = vsub.s32 %v2475, %v2477
    %v2479 = vrot.slane %v2471, %v2478
    %v2481 = vunpack.c.l.s4 1966171168
    %v2482 = vunpack.c.0.s8 %v2481
    %v2483 = vlaneseq
    %v2484 = vshrl.u32 %v2483, 7
    %v2485 = vsub.s32 %v2482, %v2484
    %v2486 = vrot.slane %v2472, %v2485
    %v2487 = vcombine.low %v2479, %v2486
    %v2488 = vcombine.low %v1263, %v1267
    %v2489 = vcombine.low %v1271, %v1275
    %v2490 = vcombine.low %v1279, %v1283
    %v2491 = vcombine.low %v1287, %v1291
    %v2493 = vunpack.c.l.s4 1966171168
    %v2494 = vunpack.c.0.s8 %v2493
    %v2495 = vlaneseq
    %v2496 = vshrl.u32 %v2495, 7
    %v2497 = vsub.s32 %v2494, %v2496
    %v2498 = vrot.slane %v2488, %v2497
    %v2500 = vunpack.c.l.s4 1966171168
    %v2501 = vunpack.c.0.s8 %v2500
    %v2502 = vlaneseq
    %v2503 = vshrl.u32 %v2502, 7
    %v2504 = vsub.s32 %v2501, %v2503
    %v2505 = vrot.slane %v2489, %v2504
    %v2507 = vunpack.c.l.s4 1966171168
    %v2508 = vunpack.c.0.s8 %v2507
    %v2509 = vlaneseq
    %v2510 = vshrl.u32 %v2509, 7
    %v2511 = vsub.s32 %v2508, %v2510
    %v2512 = vrot.slane %v2490, %v2511
    %v2514 = vunpack.c.l.s4 1966171168
    %v2515 = vunpack.c.0.s8 %v2514
    %v2516 = vlaneseq
    %v2517 = vshrl.u32 %v2516, 7
    %v2518 = vsub.s32 %v2515, %v2517
    %v2519 = vrot.slane %v2491, %v2518
    %v2520 = vcombine.low %v2498, %v2505
    %v2521 = vcombine.low %v2512, %v2519
    %v2523 = vunpack.c.l.s4 1966171168
    %v2524 = vunpack.c.0.s8 %v2523
    %v2525 = vlaneseq
    %v2526 = vshrl.u32 %v2525, 7
    %v2527 = vsub.s32 %v2524, %v2526
    %v2528 = vrot.slane %v2520, %v2527
    %v2530 = vunpack.c.l.s4 1966171168
    %v2531 = vunpack.c.0.s8 %v2530
    %v2532 = vlaneseq
    %v2533 = vshrl.u32 %v2532, 7
    %v2534 = vsub.s32 %v2531, %v2533
    %v2535 = vrot.slane %v2521, %v2534
    %v2536 = vcombine.low %v2528, %v2535
    %v2537 = vcombine.low %v1295, %v1299
    %v2538 = vcombine.low %v1303, %v1307
    %v2539 = vcombine.low %v1311, %v1315
    %v2540 = vcombine.low %v1319, %v1323
    %v2542 = vunpack.c.l.s4 1966171168
    %v2543 = vunpack.c.0.s8 %v2542
    %v2544 = vlaneseq
    %v2545 = vshrl.u32 %v2544, 7
    %v2546 = vsub.s32 %v2543, %v2545
    %v2547 = vrot.slane %v2537, %v2546
    %v2549 = vunpack.c.l.s4 1966171168
    %v2550 = vunpack.c.0.s8 %v2549
    %v2551 = vlaneseq
    %v2552 = vshrl.u32 %v2551, 7
    %v2553 = vsub.s32 %v2550, %v2552
    %v2554 = vrot.slane %v2538, %v2553
    %v2556 = vunpack.c.l.s4 1966171168
    %v2557 = vunpack.c.0.s8 %v2556
    %v2558 = vlaneseq
    %v2559 = vshrl.u32 %v2558, 7
    %v2560 = vsub.s32 %v2557, %v2559
    %v2561 = vrot.slane %v2539, %v2560
    %v2563 = vunpack.c.l.s4 1966171168
    %v2564 = vunpack.c.0.s8 %v2563
    %v2565 = vlaneseq
    %v2566 = vshrl.u32 %v2565, 7
    %v2567 = vsub.s32 %v2564, %v2566
    %v2568 = vrot.slane %v2540, %v2567
    %v2569 = vcombine.low %v2547, %v2554
    %v2570 = vcombine.low %v2561, %v2568
    %v2572 = vunpack.c.l.s4 1966171168
    %v2573 = vunpack.c.0.s8 %v2572
    %v2574 = vlaneseq
    %v2575 = vshrl.u32 %v2574, 7
    %v2576 = vsub.s32 %v2573, %v2575
    %v2577 = vrot.slane %v2569, %v2576
    %v2579 = vunpack.c.l.s4 1966171168
    %v2580 = vunpack.c.0.s8 %v2579
    %v2581 = vlaneseq
    %v2582 = vshrl.u32 %v2581, 7
    %v2583 = vsub.s32 %v2580, %v2582
    %v2584 = vrot.slane %v2570, %v2583
    %v2585 = vcombine.low %v2577, %v2584
    %v2586 = vcombine.low %v1327, %v1331
    %v2587 = vcombine.low %v1335, %v1339
    %v2588 = vcombine.low %v1343, %v1347
    %v2589 = vcombine.low %v1351, %v1355
    %v2591 = vunpack.c.l.s4 1966171168
    %v2592 = vunpack.c.0.s8 %v2591
    %v2593 = vlaneseq
    %v2594 = vshrl.u32 %v2593, 7
    %v2595 = vsub.s32 %v2592, %v2594
    %v2596 = vrot.slane %v2586, %v2595
    %v2598 = vunpack.c.l.s4 1966171168
    %v2599 = vunpack.c.0.s8 %v2598
    %v2600 = vlaneseq
    %v2601 = vshrl.u32 %v2600, 7
    %v2602 = vsub.s32 %v2599, %v2601
    %v2603 = vrot.slane %v2587, %v2602
    %v2605 = vunpack.c.l.s4 1966171168
    %v2606 = vunpack.c.0.s8 %v2605
    %v2607 = vlaneseq
    %v2608 = vshrl.u32 %v2607, 7
    %v2609 = vsub.s32 %v2606, %v2608
    %v2610 = vrot.slane %v2588, %v2609
    %v2612 = vunpack.c.l.s4 1966171168
    %v2613 = vunpack.c.0.s8 %v2612
    %v2614 = vlaneseq
    %v2615 = vshrl.u32 %v2614, 7
    %v2616 = vsub.s32 %v2613, %v2615
    %v2617 = vrot.slane %v2589, %v2616
    %v2618 = vcombine.low %v2596, %v2603
    %v2619 = vcombine.low %v2610, %v2617
    %v2621 = vunpack.c.l.s4 1966171168
    %v2622 = vunpack.c.0.s8 %v2621
    %v2623 = vlaneseq
    %v2624 = vshrl.u32 %v2623, 7
    %v2625 = vsub.s32 %v2622, %v2624
    %v2626 = vrot.slane %v2618, %v2625
    %v2628 = vunpack.c.l.s4 1966171168
    %v2629 = vunpack.c.0.s8 %v2628
    %v2630 = vlaneseq
    %v2631 = vshrl.u32 %v2630, 7
    %v2632 = vsub.s32 %v2629, %v2631
    %v2633 = vrot.slane %v2619, %v2632
    %v2634 = vcombine.low %v2626, %v2633
    %v2635 = vcombine.low %v1359, %v1363
    %v2636 = vcombine.low %v1367, %v1371
    %v2637 = vcombine.low %v1375, %v1379
    %v2638 = vcombine.low %v1383, %v1387
    %v2640 = vunpack.c.l.s4 1966171168
    %v2641 = vunpack.c.0.s8 %v2640
    %v2642 = vlaneseq
    %v2643 = vshrl.u32 %v2642, 7
    %v2644 = vsub.s32 %v2641, %v2643
    %v2645 = vrot.slane %v2635, %v2644
    %v2647 = vunpack.c.l.s4 1966171168
    %v2648 = vunpack.c.0.s8 %v2647
    %v2649 = vlaneseq
    %v2650 = vshrl.u32 %v2649, 7
    %v2651 = vsub.s32 %v2648, %v2650
    %v2652 = vrot.slane %v2636, %v2651
    %v2654 = vunpack.c.l.s4 1966171168
    %v2655 = vunpack.c.0.s8 %v2654
    %v2656 = vlaneseq
    %v2657 = vshrl.u32 %v2656, 7
    %v2658 = vsub.s32 %v2655, %v2657
    %v2659 = vrot.slane %v2637, %v2658
    %v2661 = vunpack.c.l.s4 1966171168
    %v2662 = vunpack.c.0.s8 %v2661
    %v2663 = vlaneseq
    %v2664 = vshrl.u32 %v2663, 7
    %v2665 = vsub.s32 %v2662, %v2664
    %v2666 = vrot.slane %v2638, %v2665
    %v2667 = vcombine.low %v2645, %v2652
    %v2668 = vcombine.low %v2659, %v2666
    %v2670 = vunpack.c.l.s4 1966171168
    %v2671 = vunpack.c.0.s8 %v2670
    %v2672 = vlaneseq
    %v2673 = vshrl.u32 %v2672, 7
    %v2674 = vsub.s32 %v2671, %v2673
    %v2675 = vrot.slane %v2667, %v2674
    %v2677 = vunpack.c.l.s4 1966171168
    %v2678 = vunpack.c.0.s8 %v2677
    %v2679 = vlaneseq
    %v2680 = vshrl.u32 %v2679, 7
    %v2681 = vsub.s32 %v2678, %v2680
    %v2682 = vrot.slane %v2668, %v2681
    %v2683 = vcombine.low %v2675, %v2682
    %v2684 = vcombine.low %v1391, %v1395
    %v2685 = vcombine.low %v1399, %v1403
    %v2686 = vcombine.low %v1407, %v1411
    %v2687 = vcombine.low %v1415, %v1419
    %v2689 = vunpack.c.l.s4 1966171168
    %v2690 = vunpack.c.0.s8 %v2689
    %v2691 = vlaneseq
    %v2692 = vshrl.u32 %v2691, 7
    %v2693 = vsub.s32 %v2690, %v2692
    %v2694 = vrot.slane %v2684, %v2693
    %v2696 = vunpack.c.l.s4 1966171168
    %v2697 = vunpack.c.0.s8 %v2696
    %v2698 = vlaneseq
    %v2699 = vshrl.u32 %v2698, 7
    %v2700 = vsub.s32 %v2697, %v2699
    %v2701 = vrot.slane %v2685, %v2700
    %v2703 = vunpack.c.l.s4 1966171168
    %v2704 = vunpack.c.0.s8 %v2703
    %v2705 = vlaneseq
    %v2706 = vshrl.u32 %v2705, 7
    %v2707 = vsub.s32 %v2704, %v2706
    %v2708 = vrot.slane %v2686, %v2707
    %v2710 = vunpack.c.l.s4 1966171168
    %v2711 = vunpack.c.0.s8 %v2710
    %v2712 = vlaneseq
    %v2713 = vshrl.u32 %v2712, 7
    %v2714 = vsub.s32 %v2711, %v2713
    %v2715 = vrot.slane %v2687, %v2714
    %v2716 = vcombine.low %v2694, %v2701
    %v2717 = vcombine.low %v2708, %v2715
    %v2719 = vunpack.c.l.s4 1966171168
    %v2720 = vunpack.c.0.s8 %v2719
    %v2721 = vlaneseq
    %v2722 = vshrl.u32 %v2721, 7
    %v2723 = vsub.s32 %v2720, %v2722
    %v2724 = vrot.slane %v2716, %v2723
    %v2726 = vunpack.c.l.s4 1966171168
    %v2727 = vunpack.c.0.s8 %v2726
    %v2728 = vlaneseq
    %v2729 = vshrl.u32 %v2728, 7
    %v2730 = vsub.s32 %v2727, %v2729
    %v2731 = vrot.slane %v2717, %v2730
    %v2732 = vcombine.low %v2724, %v2731
    %v2733 = vcombine.low %v1423, %v1427
    %v2734 = vcombine.low %v1431, %v1435
    %v2735 = vcombine.low %v1439, %v1443
    %v2736 = vcombine.low %v1447, %v1451
    %v2738 = vunpack.c.l.s4 1966171168
    %v2739 = vunpack.c.0.s8 %v2738
    %v2740 = vlaneseq
    %v2741 = vshrl.u32 %v2740, 7
    %v2742 = vsub.s32 %v2739, %v2741
    %v2743 = vrot.slane %v2733, %v2742
    %v2745 = vunpack.c.l.s4 1966171168
    %v2746 = vunpack.c.0.s8 %v2745
    %v2747 = vlaneseq
    %v2748 = vshrl.u32 %v2747, 7
    %v2749 = vsub.s32 %v2746, %v2748
    %v2750 = vrot.slane %v2734, %v2749
    %v2752 = vunpack.c.l.s4 1966171168
    %v2753 = vunpack.c.0.s8 %v2752
    %v2754 = vlaneseq
    %v2755 = vshrl.u32 %v2754, 7
    %v2756 = vsub.s32 %v2753, %v2755
    %v2757 = vrot.slane %v2735, %v2756
    %v2759 = vunpack.c.l.s4 1966171168
    %v2760 = vunpack.c.0.s8 %v2759
    %v2761 = vlaneseq
    %v2762 = vshrl.u32 %v2761, 7
    %v2763 = vsub.s32 %v2760, %v2762
    %v2764 = vrot.slane %v2736, %v2763
    %v2765 = vcombine.low %v2743, %v2750
    %v2766 = vcombine.low %v2757, %v2764
    %v2768 = vunpack.c.l.s4 1966171168
    %v2769 = vunpack.c.0.s8 %v2768
    %v2770 = vlaneseq
    %v2771 = vshrl.u32 %v2770, 7
    %v2772 = vsub.s32 %v2769, %v2771
    %v2773 = vrot.slane %v2765, %v2772
    %v2775 = vunpack.c.l.s4 1966171168
    %v2776 = vunpack.c.0.s8 %v2775
    %v2777 = vlaneseq
    %v2778 = vshrl.u32 %v2777, 7
    %v2779 = vsub.s32 %v2776, %v2778
    %v2780 = vrot.slane %v2766, %v2779
    %v2781 = vcombine.low %v2773, %v2780
    %v2782 = vcombine.low %v1455, %v1459
    %v2783 = vcombine.low %v1463, %v1467
    %v2784 = vcombine.low %v1471, %v1475
    %v2785 = vcombine.low %v1479, %v1483
    %v2787 = vunpack.c.l.s4 1966171168
    %v2788 = vunpack.c.0.s8 %v2787
    %v2789 = vlaneseq
    %v2790 = vshrl.u32 %v2789, 7
    %v2791 = vsub.s32 %v2788, %v2790
    %v2792 = vrot.slane %v2782, %v2791
    %v2794 = vunpack.c.l.s4 1966171168
    %v2795 = vunpack.c.0.s8 %v2794
    %v2796 = vlaneseq
    %v2797 = vshrl.u32 %v2796, 7
    %v2798 = vsub.s32 %v2795, %v2797
    %v2799 = vrot.slane %v2783, %v2798
    %v2801 = vunpack.c.l.s4 1966171168
    %v2802 = vunpack.c.0.s8 %v2801
    %v2803 = vlaneseq
    %v2804 = vshrl.u32 %v2803, 7
    %v2805 = vsub.s32 %v2802, %v2804
    %v2806 = vrot.slane %v2784, %v2805
    %v2808 = vunpack.c.l.s4 1966171168
    %v2809 = vunpack.c.0.s8 %v2808
    %v2810 = vlaneseq
    %v2811 = vshrl.u32 %v2810, 7
    %v2812 = vsub.s32 %v2809, %v2811
    %v2813 = vrot.slane %v2785, %v2812
    %v2814 = vcombine.low %v2792, %v2799
    %v2815 = vcombine.low %v2806, %v2813
    %v2817 = vunpack.c.l.s4 1966171168
    %v2818 = vunpack.c.0.s8 %v2817
    %v2819 = vlaneseq
    %v2820 = vshrl.u32 %v2819, 7
    %v2821 = vsub.s32 %v2818, %v2820
    %v2822 = vrot.slane %v2814, %v2821
    %v2824 = vunpack.c.l.s4 1966171168
    %v2825 = vunpack.c.0.s8 %v2824
    %v2826 = vlaneseq
    %v2827 = vshrl.u32 %v2826, 7
    %v2828 = vsub.s32 %v2825, %v2827
    %v2829 = vrot.slane %v2815, %v2828
    %v2830 = vcombine.low %v2822, %v2829
    %v2831 = vcombine.low %v1487, %v1491
    %v2832 = vcombine.low %v1495, %v1499
    %v2833 = vcombine.low %v1503, %v1507
    %v2834 = vcombine.low %v1511, %v1515
    %v2836 = vunpack.c.l.s4 1966171168
    %v2837 = vunpack.c.0.s8 %v2836
    %v2838 = vlaneseq
    %v2839 = vshrl.u32 %v2838, 7
    %v2840 = vsub.s32 %v2837, %v2839
    %v2841 = vrot.slane %v2831, %v2840
    %v2843 = vunpack.c.l.s4 1966171168
    %v2844 = vunpack.c.0.s8 %v2843
    %v2845 = vlaneseq
    %v2846 = vshrl.u32 %v2845, 7
    %v2847 = vsub.s32 %v2844, %v2846
    %v2848 = vrot.slane %v2832, %v2847
    %v2850 = vunpack.c.l.s4 1966171168
    %v2851 = vunpack.c.0.s8 %v2850
    %v2852 = vlaneseq
    %v2853 = vshrl.u32 %v2852, 7
    %v2854 = vsub.s32 %v2851, %v2853
    %v2855 = vrot.slane %v2833, %v2854
    %v2857 = vunpack.c.l.s4 1966171168
    %v2858 = vunpack.c.0.s8 %v2857
    %v2859 = vlaneseq
    %v2860 = vshrl.u32 %v2859, 7
    %v2861 = vsub.s32 %v2858, %v2860
    %v2862 = vrot.slane %v2834, %v2861
    %v2863 = vcombine.low %v2841, %v2848
    %v2864 = vcombine.low %v2855, %v2862
    %v2866 = vunpack.c.l.s4 1966171168
    %v2867 = vunpack.c.0.s8 %v2866
    %v2868 = vlaneseq
    %v2869 = vshrl.u32 %v2868, 7
    %v2870 = vsub.s32 %v2867, %v2869
    %v2871 = vrot.slane %v2863, %v2870
    %v2873 = vunpack.c.l.s4 1966171168
    %v2874 = vunpack.c.0.s8 %v2873
    %v2875 = vlaneseq
    %v2876 = vshrl.u32 %v2875, 7
    %v2877 = vsub.s32 %v2874, %v2876
    %v2878 = vrot.slane %v2864, %v2877
    %v2879 = vcombine.low %v2871, %v2878
    %v2880 = vcombine.low %v1519, %v1523
    %v2881 = vcombine.low %v1527, %v1531
    %v2882 = vcombine.low %v1535, %v1539
    %v2883 = vcombine.low %v1543, %v1547
    %v2885 = vunpack.c.l.s4 1966171168
    %v2886 = vunpack.c.0.s8 %v2885
    %v2887 = vlaneseq
    %v2888 = vshrl.u32 %v2887, 7
    %v2889 = vsub.s32 %v2886, %v2888
    %v2890 = vrot.slane %v2880, %v2889
    %v2892 = vunpack.c.l.s4 1966171168
    %v2893 = vunpack.c.0.s8 %v2892
    %v2894 = vlaneseq
    %v2895 = vshrl.u32 %v2894, 7
    %v2896 = vsub.s32 %v2893, %v2895
    %v2897 = vrot.slane %v2881, %v2896
    %v2899 = vunpack.c.l.s4 1966171168
    %v2900 = vunpack.c.0.s8 %v2899
    %v2901 = vlaneseq
    %v2902 = vshrl.u32 %v2901, 7
    %v2903 = vsub.s32 %v2900, %v2902
    %v2904 = vrot.slane %v2882, %v2903
    %v2906 = vunpack.c.l.s4 1966171168
    %v2907 = vunpack.c.0.s8 %v2906
    %v2908 = vlaneseq
    %v2909 = vshrl.u32 %v2908, 7
    %v2910 = vsub.s32 %v2907, %v2909
    %v2911 = vrot.slane %v2883, %v2910
    %v2912 = vcombine.low %v2890, %v2897
    %v2913 = vcombine.low %v2904, %v2911
    %v2915 = vunpack.c.l.s4 1966171168
    %v2916 = vunpack.c.0.s8 %v2915
    %v2917 = vlaneseq
    %v2918 = vshrl.u32 %v2917, 7
    %v2919 = vsub.s32 %v2916, %v2918
    %v2920 = vrot.slane %v2912, %v2919
    %v2922 = vunpack.c.l.s4 1966171168
    %v2923 = vunpack.c.0.s8 %v2922
    %v2924 = vlaneseq
    %v2925 = vshrl.u32 %v2924, 7
    %v2926 = vsub.s32 %v2923, %v2925
    %v2927 = vrot.slane %v2913, %v2926
    %v2928 = vcombine.low %v2920, %v2927
    %v2929 = vcombine.low %v1551, %v1555
    %v2930 = vcombine.low %v1559, %v1563
    %v2931 = vcombine.low %v1567, %v1571
    %v2932 = vcombine.low %v1575, %v1579
    %v2934 = vunpack.c.l.s4 1966171168
    %v2935 = vunpack.c.0.s8 %v2934
    %v2936 = vlaneseq
    %v2937 = vshrl.u32 %v2936, 7
    %v2938 = vsub.s32 %v2935, %v2937
    %v2939 = vrot.slane %v2929, %v2938
    %v2941 = vunpack.c.l.s4 1966171168
    %v2942 = vunpack.c.0.s8 %v2941
    %v2943 = vlaneseq
    %v2944 = vshrl.u32 %v2943, 7
    %v2945 = vsub.s32 %v2942, %v2944
    %v2946 = vrot.slane %v2930, %v2945
    %v2948 = vunpack.c.l.s4 1966171168
    %v2949 = vunpack.c.0.s8 %v2948
    %v2950 = vlaneseq
    %v2951 = vshrl.u32 %v2950, 7
    %v2952 = vsub.s32 %v2949, %v2951
    %v2953 = vrot.slane %v2931, %v2952
    %v2955 = vunpack.c.l.s4 1966171168
    %v2956 = vunpack.c.0.s8 %v2955
    %v2957 = vlaneseq
    %v2958 = vshrl.u32 %v2957, 7
    %v2959 = vsub.s32 %v2956, %v2958
    %v2960 = vrot.slane %v2932, %v2959
    %v2961 = vcombine.low %v2939, %v2946
    %v2962 = vcombine.low %v2953, %v2960
    %v2964 = vunpack.c.l.s4 1966171168
    %v2965 = vunpack.c.0.s8 %v2964
    %v2966 = vlaneseq
    %v2967 = vshrl.u32 %v2966, 7
    %v2968 = vsub.s32 %v2965, %v2967
    %v2969 = vrot.slane %v2961, %v2968
    %v2971 = vunpack.c.l.s4 1966171168
    %v2972 = vunpack.c.0.s8 %v2971
    %v2973 = vlaneseq
    %v2974 = vshrl.u32 %v2973, 7
    %v2975 = vsub.s32 %v2972, %v2974
    %v2976 = vrot.slane %v2962, %v2975
    %v2977 = vcombine.low %v2969, %v2976
    %v2978 = vcombine.low %v1583, %v1587
    %v2979 = vcombine.low %v1591, %v1595
    %v2980 = vcombine.low %v1599, %v1603
    %v2981 = vcombine.low %v1607, %v1611
    %v2983 = vunpack.c.l.s4 1966171168
    %v2984 = vunpack.c.0.s8 %v2983
    %v2985 = vlaneseq
    %v2986 = vshrl.u32 %v2985, 7
    %v2987 = vsub.s32 %v2984, %v2986
    %v2988 = vrot.slane %v2978, %v2987
    %v2990 = vunpack.c.l.s4 1966171168
    %v2991 = vunpack.c.0.s8 %v2990
    %v2992 = vlaneseq
    %v2993 = vshrl.u32 %v2992, 7
    %v2994 = vsub.s32 %v2991, %v2993
    %v2995 = vrot.slane %v2979, %v2994
    %v2997 = vunpack.c.l.s4 1966171168
    %v2998 = vunpack.c.0.s8 %v2997
    %v2999 = vlaneseq
    %v3000 = vshrl.u32 %v2999, 7
    %v3001 = vsub.s32 %v2998, %v3000
    %v3002 = vrot.slane %v2980, %v3001
    %v3004 = vunpack.c.l.s4 1966171168
    %v3005 = vunpack.c.0.s8 %v3004
    %v3006 = vlaneseq
    %v3007 = vshrl.u32 %v3006, 7
    %v3008 = vsub.s32 %v3005, %v3007
    %v3009 = vrot.slane %v2981, %v3008
    %v3010 = vcombine.low %v2988, %v2995
    %v3011 = vcombine.low %v3002, %v3009
    %v3013 = vunpack.c.l.s4 1966171168
    %v3014 = vunpack.c.0.s8 %v3013
    %v3015 = vlaneseq
    %v3016 = vshrl.u32 %v3015, 7
    %v3017 = vsub.s32 %v3014, %v3016
    %v3018 = vrot.slane %v3010, %v3017
    %v3020 = vunpack.c.l.s4 1966171168
    %v3021 = vunpack.c.0.s8 %v3020
    %v3022 = vlaneseq
    %v3023 = vshrl.u32 %v3022, 7
    %v3024 = vsub.s32 %v3021, %v3023
    %v3025 = vrot.slane %v3011, %v3024
    %v3026 = vcombine.low %v3018, %v3025
    %v3027 = vcombine.low %v1615, %v1619
    %v3028 = vcombine.low %v1623, %v1627
    %v3029 = vcombine.low %v1631, %v1635
    %v3030 = vcombine.low %v1639, %v1643
    %v3032 = vunpack.c.l.s4 1966171168
    %v3033 = vunpack.c.0.s8 %v3032
    %v3034 = vlaneseq
    %v3035 = vshrl.u32 %v3034, 7
    %v3036 = vsub.s32 %v3033, %v3035
    %v3037 = vrot.slane %v3027, %v3036
    %v3039 = vunpack.c.l.s4 1966171168
    %v3040 = vunpack.c.0.s8 %v3039
    %v3041 = vlaneseq
    %v3042 = vshrl.u32 %v3041, 7
    %v3043 = vsub.s32 %v3040, %v3042
    %v3044 = vrot.slane %v3028, %v3043
    %v3046 = vunpack.c.l.s4 1966171168
    %v3047 = vunpack.c.0.s8 %v3046
    %v3048 = vlaneseq
    %v3049 = vshrl.u32 %v3048, 7
    %v3050 = vsub.s32 %v3047, %v3049
    %v3051 = vrot.slane %v3029, %v3050
    %v3053 = vunpack.c.l.s4 1966171168
    %v3054 = vunpack.c.0.s8 %v3053
    %v3055 = vlaneseq
    %v3056 = vshrl.u32 %v3055, 7
    %v3057 = vsub.s32 %v3054, %v3056
    %v3058 = vrot.slane %v3030, %v3057
    %v3059 = vcombine.low %v3037, %v3044
    %v3060 = vcombine.low %v3051, %v3058
    %v3062 = vunpack.c.l.s4 1966171168
    %v3063 = vunpack.c.0.s8 %v3062
    %v3064 = vlaneseq
    %v3065 = vshrl.u32 %v3064, 7
    %v3066 = vsub.s32 %v3063, %v3065
    %v3067 = vrot.slane %v3059, %v3066
    %v3069 = vunpack.c.l.s4 1966171168
    %v3070 = vunpack.c.0.s8 %v3069
    %v3071 = vlaneseq
    %v3072 = vshrl.u32 %v3071, 7
    %v3073 = vsub.s32 %v3070, %v3072
    %v3074 = vrot.slane %v3060, %v3073
    %v3075 = vcombine.low %v3067, %v3074
    %v3076 = vcombine.low %v1647, %v1651
    %v3077 = vcombine.low %v1655, %v1659
    %v3078 = vcombine.low %v1663, %v1667
    %v3079 = vcombine.low %v1671, %v1675
    %v3081 = vunpack.c.l.s4 1966171168
    %v3082 = vunpack.c.0.s8 %v3081
    %v3083 = vlaneseq
    %v3084 = vshrl.u32 %v3083, 7
    %v3085 = vsub.s32 %v3082, %v3084
    %v3086 = vrot.slane %v3076, %v3085
    %v3088 = vunpack.c.l.s4 1966171168
    %v3089 = vunpack.c.0.s8 %v3088
    %v3090 = vlaneseq
    %v3091 = vshrl.u32 %v3090, 7
    %v3092 = vsub.s32 %v3089, %v3091
    %v3093 = vrot.slane %v3077, %v3092
    %v3095 = vunpack.c.l.s4 1966171168
    %v3096 = vunpack.c.0.s8 %v3095
    %v3097 = vlaneseq
    %v3098 = vshrl.u32 %v3097, 7
    %v3099 = vsub.s32 %v3096, %v3098
    %v3100 = vrot.slane %v3078, %v3099
    %v3102 = vunpack.c.l.s4 1966171168
    %v3103 = vunpack.c.0.s8 %v3102
    %v3104 = vlaneseq
    %v3105 = vshrl.u32 %v3104, 7
    %v3106 = vsub.s32 %v3103, %v3105
    %v3107 = vrot.slane %v3079, %v3106
    %v3108 = vcombine.low %v3086, %v3093
    %v3109 = vcombine.low %v3100, %v3107
    %v3111 = vunpack.c.l.s4 1966171168
    %v3112 = vunpack.c.0.s8 %v3111
    %v3113 = vlaneseq
    %v3114 = vshrl.u32 %v3113, 7
    %v3115 = vsub.s32 %v3112, %v3114
    %v3116 = vrot.slane %v3108, %v3115
    %v3118 = vunpack.c.l.s4 1966171168
    %v3119 = vunpack.c.0.s8 %v3118
    %v3120 = vlaneseq
    %v3121 = vshrl.u32 %v3120, 7
    %v3122 = vsub.s32 %v3119, %v3121
    %v3123 = vrot.slane %v3109, %v3122
    %v3124 = vcombine.low %v3116, %v3123
    %v3125 = vcombine.low %v1679, %v1683
    %v3126 = vcombine.low %v1687, %v1691
    %v3127 = vcombine.low %v1695, %v1699
    %v3128 = vcombine.low %v1703, %v1707
    %v3130 = vunpack.c.l.s4 1966171168
    %v3131 = vunpack.c.0.s8 %v3130
    %v3132 = vlaneseq
    %v3133 = vshrl.u32 %v3132, 7
    %v3134 = vsub.s32 %v3131, %v3133
    %v3135 = vrot.slane %v3125, %v3134
    %v3137 = vunpack.c.l.s4 1966171168
    %v3138 = vunpack.c.0.s8 %v3137
    %v3139 = vlaneseq
    %v3140 = vshrl.u32 %v3139, 7
    %v3141 = vsub.s32 %v3138, %v3140
    %v3142 = vrot.slane %v3126, %v3141
    %v3144 = vunpack.c.l.s4 1966171168
    %v3145 = vunpack.c.0.s8 %v3144
    %v3146 = vlaneseq
    %v3147 = vshrl.u32 %v3146, 7
    %v3148 = vsub.s32 %v3145, %v3147
    %v3149 = vrot.slane %v3127, %v3148
    %v3151 = vunpack.c.l.s4 1966171168
    %v3152 = vunpack.c.0.s8 %v3151
    %v3153 = vlaneseq
    %v3154 = vshrl.u32 %v3153, 7
    %v3155 = vsub.s32 %v3152, %v3154
    %v3156 = vrot.slane %v3128, %v3155
    %v3157 = vcombine.low %v3135, %v3142
    %v3158 = vcombine.low %v3149, %v3156
    %v3160 = vunpack.c.l.s4 1966171168
    %v3161 = vunpack.c.0.s8 %v3160
    %v3162 = vlaneseq
    %v3163 = vshrl.u32 %v3162, 7
    %v3164 = vsub.s32 %v3161, %v3163
    %v3165 = vrot.slane %v3157, %v3164
    %v3167 = vunpack.c.l.s4 1966171168
    %v3168 = vunpack.c.0.s8 %v3167
    %v3169 = vlaneseq
    %v3170 = vshrl.u32 %v3169, 7
    %v3171 = vsub.s32 %v3168, %v3170
    %v3172 = vrot.slane %v3158, %v3171
    %v3173 = vcombine.low %v3165, %v3172
    %v3174 = vcombine.low %v1711, %v1715
    %v3175 = vcombine.low %v1719, %v1723
    %v3176 = vcombine.low %v1727, %v1731
    %v3177 = vcombine.low %v1735, %v1739
    %v3179 = vunpack.c.l.s4 1966171168
    %v3180 = vunpack.c.0.s8 %v3179
    %v3181 = vlaneseq
    %v3182 = vshrl.u32 %v3181, 7
    %v3183 = vsub.s32 %v3180, %v3182
    %v3184 = vrot.slane %v3174, %v3183
    %v3186 = vunpack.c.l.s4 1966171168
    %v3187 = vunpack.c.0.s8 %v3186
    %v3188 = vlaneseq
    %v3189 = vshrl.u32 %v3188, 7
    %v3190 = vsub.s32 %v3187, %v3189
    %v3191 = vrot.slane %v3175, %v3190
    %v3193 = vunpack.c.l.s4 1966171168
    %v3194 = vunpack.c.0.s8 %v3193
    %v3195 = vlaneseq
    %v3196 = vshrl.u32 %v3195, 7
    %v3197 = vsub.s32 %v3194, %v3196
    %v3198 = vrot.slane %v3176, %v3197
    %v3200 = vunpack.c.l.s4 1966171168
    %v3201 = vunpack.c.0.s8 %v3200
    %v3202 = vlaneseq
    %v3203 = vshrl.u32 %v3202, 7
    %v3204 = vsub.s32 %v3201, %v3203
    %v3205 = vrot.slane %v3177, %v3204
    %v3206 = vcombine.low %v3184, %v3191
    %v3207 = vcombine.low %v3198, %v3205
    %v3209 = vunpack.c.l.s4 1966171168
    %v3210 = vunpack.c.0.s8 %v3209
    %v3211 = vlaneseq
    %v3212 = vshrl.u32 %v3211, 7
    %v3213 = vsub.s32 %v3210, %v3212
    %v3214 = vrot.slane %v3206, %v3213
    %v3216 = vunpack.c.l.s4 1966171168
    %v3217 = vunpack.c.0.s8 %v3216
    %v3218 = vlaneseq
    %v3219 = vshrl.u32 %v3218, 7
    %v3220 = vsub.s32 %v3217, %v3219
    %v3221 = vrot.slane %v3207, %v3220
    %v3222 = vcombine.low %v3214, %v3221
    %v3223 = vcombine.low %v1743, %v1747
    %v3224 = vcombine.low %v1751, %v1755
    %v3225 = vcombine.low %v1759, %v1763
    %v3226 = vcombine.low %v1767, %v1771
    %v3228 = vunpack.c.l.s4 1966171168
    %v3229 = vunpack.c.0.s8 %v3228
    %v3230 = vlaneseq
    %v3231 = vshrl.u32 %v3230, 7
    %v3232 = vsub.s32 %v3229, %v3231
    %v3233 = vrot.slane %v3223, %v3232
    %v3235 = vunpack.c.l.s4 1966171168
    %v3236 = vunpack.c.0.s8 %v3235
    %v3237 = vlaneseq
    %v3238 = vshrl.u32 %v3237, 7
    %v3239 = vsub.s32 %v3236, %v3238
    %v3240 = vrot.slane %v3224, %v3239
    %v3242 = vunpack.c.l.s4 1966171168
    %v3243 = vunpack.c.0.s8 %v3242
    %v3244 = vlaneseq
    %v3245 = vshrl.u32 %v3244, 7
    %v3246 = vsub.s32 %v3243, %v3245
    %v3247 = vrot.slane %v3225, %v3246
    %v3249 = vunpack.c.l.s4 1966171168
    %v3250 = vunpack.c.0.s8 %v3249
    %v3251 = vlaneseq
    %v3252 = vshrl.u32 %v3251, 7
    %v3253 = vsub.s32 %v3250, %v3252
    %v3254 = vrot.slane %v3226, %v3253
    %v3255 = vcombine.low %v3233, %v3240
    %v3256 = vcombine.low %v3247, %v3254
    %v3258 = vunpack.c.l.s4 1966171168
    %v3259 = vunpack.c.0.s8 %v3258
    %v3260 = vlaneseq
    %v3261 = vshrl.u32 %v3260, 7
    %v3262 = vsub.s32 %v3259, %v3261
    %v3263 = vrot.slane %v3255, %v3262
    %v3265 = vunpack.c.l.s4 1966171168
    %v3266 = vunpack.c.0.s8 %v3265
    %v3267 = vlaneseq
    %v3268 = vshrl.u32 %v3267, 7
    %v3269 = vsub.s32 %v3266, %v3268
    %v3270 = vrot.slane %v3256, %v3269
    %v3271 = vcombine.low %v3263, %v3270
    %v3272 = vcombine.low %v1775, %v1779
    %v3273 = vcombine.low %v1783, %v1787
    %v3274 = vcombine.low %v1791, %v1795
    %v3275 = vcombine.low %v1799, %v1803
    %v3277 = vunpack.c.l.s4 1966171168
    %v3278 = vunpack.c.0.s8 %v3277
    %v3279 = vlaneseq
    %v3280 = vshrl.u32 %v3279, 7
    %v3281 = vsub.s32 %v3278, %v3280
    %v3282 = vrot.slane %v3272, %v3281
    %v3284 = vunpack.c.l.s4 1966171168
    %v3285 = vunpack.c.0.s8 %v3284
    %v3286 = vlaneseq
    %v3287 = vshrl.u32 %v3286, 7
    %v3288 = vsub.s32 %v3285, %v3287
    %v3289 = vrot.slane %v3273, %v3288
    %v3291 = vunpack.c.l.s4 1966171168
    %v3292 = vunpack.c.0.s8 %v3291
    %v3293 = vlaneseq
    %v3294 = vshrl.u32 %v3293, 7
    %v3295 = vsub.s32 %v3292, %v3294
    %v3296 = vrot.slane %v3274, %v3295
    %v3298 = vunpack.c.l.s4 1966171168
    %v3299 = vunpack.c.0.s8 %v3298
    %v3300 = vlaneseq
    %v3301 = vshrl.u32 %v3300, 7
    %v3302 = vsub.s32 %v3299, %v3301
    %v3303 = vrot.slane %v3275, %v3302
    %v3304 = vcombine.low %v3282, %v3289
    %v3305 = vcombine.low %v3296, %v3303
    %v3307 = vunpack.c.l.s4 1966171168
    %v3308 = vunpack.c.0.s8 %v3307
    %v3309 = vlaneseq
    %v3310 = vshrl.u32 %v3309, 7
    %v3311 = vsub.s32 %v3308, %v3310
    %v3312 = vrot.slane %v3304, %v3311
    %v3314 = vunpack.c.l.s4 1966171168
    %v3315 = vunpack.c.0.s8 %v3314
    %v3316 = vlaneseq
    %v3317 = vshrl.u32 %v3316, 7
    %v3318 = vsub.s32 %v3315, %v3317
    %v3319 = vrot.slane %v3305, %v3318
    %v3320 = vcombine.low %v3312, %v3319
    %v3321 = vcombine.low %v1807, %v1811
    %v3322 = vcombine.low %v1815, %v1819
    %v3323 = vcombine.low %v1823, %v1827
    %v3324 = vcombine.low %v1831, %v1835
    %v3326 = vunpack.c.l.s4 1966171168
    %v3327 = vunpack.c.0.s8 %v3326
    %v3328 = vlaneseq
    %v3329 = vshrl.u32 %v3328, 7
    %v3330 = vsub.s32 %v3327, %v3329
    %v3331 = vrot.slane %v3321, %v3330
    %v3333 = vunpack.c.l.s4 1966171168
    %v3334 = vunpack.c.0.s8 %v3333
    %v3335 = vlaneseq
    %v3336 = vshrl.u32 %v3335, 7
    %v3337 = vsub.s32 %v3334, %v3336
    %v3338 = vrot.slane %v3322, %v3337
    %v3340 = vunpack.c.l.s4 1966171168
    %v3341 = vunpack.c.0.s8 %v3340
    %v3342 = vlaneseq
    %v3343 = vshrl.u32 %v3342, 7
    %v3344 = vsub.s32 %v3341, %v3343
    %v3345 = vrot.slane %v3323, %v3344
    %v3347 = vunpack.c.l.s4 1966171168
    %v3348 = vunpack.c.0.s8 %v3347
    %v3349 = vlaneseq
    %v3350 = vshrl.u32 %v3349, 7
    %v3351 = vsub.s32 %v3348, %v3350
    %v3352 = vrot.slane %v3324, %v3351
    %v3353 = vcombine.low %v3331, %v3338
    %v3354 = vcombine.low %v3345, %v3352
    %v3356 = vunpack.c.l.s4 1966171168
    %v3357 = vunpack.c.0.s8 %v3356
    %v3358 = vlaneseq
    %v3359 = vshrl.u32 %v3358, 7
    %v3360 = vsub.s32 %v3357, %v3359
    %v3361 = vrot.slane %v3353, %v3360
    %v3363 = vunpack.c.l.s4 1966171168
    %v3364 = vunpack.c.0.s8 %v3363
    %v3365 = vlaneseq
    %v3366 = vshrl.u32 %v3365, 7
    %v3367 = vsub.s32 %v3364, %v3366
    %v3368 = vrot.slane %v3354, %v3367
    %v3369 = vcombine.low %v3361, %v3368
    %v3370 = vcombine.low %v1839, %v1843
    %v3371 = vcombine.low %v1847, %v1851
    %v3372 = vcombine.low %v1855, %v1859
    %v3373 = vcombine.low %v1863, %v1867
    %v3375 = vunpack.c.l.s4 1966171168
    %v3376 = vunpack.c.0.s8 %v3375
    %v3377 = vlaneseq
    %v3378 = vshrl.u32 %v3377, 7
    %v3379 = vsub.s32 %v3376, %v3378
    %v3380 = vrot.slane %v3370, %v3379
    %v3382 = vunpack.c.l.s4 1966171168
    %v3383 = vunpack.c.0.s8 %v3382
    %v3384 = vlaneseq
    %v3385 = vshrl.u32 %v3384, 7
    %v3386 = vsub.s32 %v3383, %v3385
    %v3387 = vrot.slane %v3371, %v3386
    %v3389 = vunpack.c.l.s4 1966171168
    %v3390 = vunpack.c.0.s8 %v3389
    %v3391 = vlaneseq
    %v3392 = vshrl.u32 %v3391, 7
    %v3393 = vsub.s32 %v3390, %v3392
    %v3394 = vrot.slane %v3372, %v3393
    %v3396 = vunpack.c.l.s4 1966171168
    %v3397 = vunpack.c.0.s8 %v3396
    %v3398 = vlaneseq
    %v3399 = vshrl.u32 %v3398, 7
    %v3400 = vsub.s32 %v3397, %v3399
    %v3401 = vrot.slane %v3373, %v3400
    %v3402 = vcombine.low %v3380, %v3387
    %v3403 = vcombine.low %v3394, %v3401
    %v3405 = vunpack.c.l.s4 1966171168
    %v3406 = vunpack.c.0.s8 %v3405
    %v3407 = vlaneseq
    %v3408 = vshrl.u32 %v3407, 7
    %v3409 = vsub.s32 %v3406, %v3408
    %v3410 = vrot.slane %v3402, %v3409
    %v3412 = vunpack.c.l.s4 1966171168
    %v3413 = vunpack.c.0.s8 %v3412
    %v3414 = vlaneseq
    %v3415 = vshrl.u32 %v3414, 7
    %v3416 = vsub.s32 %v3413, %v3415
    %v3417 = vrot.slane %v3403, %v3416
    %v3418 = vcombine.low %v3410, %v3417
    %v3419 = vcombine.low %v1871, %v1875
    %v3420 = vcombine.low %v1879, %v1883
    %v3421 = vcombine.low %v1887, %v1891
    %v3422 = vcombine.low %v1895, %v1899
    %v3424 = vunpack.c.l.s4 1966171168
    %v3425 = vunpack.c.0.s8 %v3424
    %v3426 = vlaneseq
    %v3427 = vshrl.u32 %v3426, 7
    %v3428 = vsub.s32 %v3425, %v3427
    %v3429 = vrot.slane %v3419, %v3428
    %v3431 = vunpack.c.l.s4 1966171168
    %v3432 = vunpack.c.0.s8 %v3431
    %v3433 = vlaneseq
    %v3434 = vshrl.u32 %v3433, 7
    %v3435 = vsub.s32 %v3432, %v3434
    %v3436 = vrot.slane %v3420, %v3435
    %v3438 = vunpack.c.l.s4 1966171168
    %v3439 = vunpack.c.0.s8 %v3438
    %v3440 = vlaneseq
    %v3441 = vshrl.u32 %v3440, 7
    %v3442 = vsub.s32 %v3439, %v3441
    %v3443 = vrot.slane %v3421, %v3442
    %v3445 = vunpack.c.l.s4 1966171168
    %v3446 = vunpack.c.0.s8 %v3445
    %v3447 = vlaneseq
    %v3448 = vshrl.u32 %v3447, 7
    %v3449 = vsub.s32 %v3446, %v3448
    %v3450 = vrot.slane %v3422, %v3449
    %v3451 = vcombine.low %v3429, %v3436
    %v3452 = vcombine.low %v3443, %v3450
    %v3454 = vunpack.c.l.s4 1966171168
    %v3455 = vunpack.c.0.s8 %v3454
    %v3456 = vlaneseq
    %v3457 = vshrl.u32 %v3456, 7
    %v3458 = vsub.s32 %v3455, %v3457
    %v3459 = vrot.slane %v3451, %v3458
    %v3461 = vunpack.c.l.s4 1966171168
    %v3462 = vunpack.c.0.s8 %v3461
    %v3463 = vlaneseq
    %v3464 = vshrl.u32 %v3463, 7
    %v3465 = vsub.s32 %v3462, %v3464
    %v3466 = vrot.slane %v3452, %v3465
    %v3467 = vcombine.low %v3459, %v3466
    %3468 = vset.pattern.permute.xlu0 0
    %3469 = vperm.xlu0 %3468, %v1948
    %v3470 = vpop.permute.xlu0 %3469
    %3471 = vset.pattern.permute.xlu0 0
    %3472 = vperm.xlu0 %3471, %v1997
    %v3473 = vpop.permute.xlu0 %3472
    %3474 = vset.pattern.permute.xlu0 0
    %3475 = vperm.xlu0 %3474, %v2046
    %v3476 = vpop.permute.xlu0 %3475
    %3477 = vset.pattern.permute.xlu0 0
    %3478 = vperm.xlu0 %3477, %v2095
    %v3479 = vpop.permute.xlu0 %3478
    %3480 = vset.pattern.permute.xlu0 0
    %3481 = vperm.xlu0 %3480, %v2144
    %v3482 = vpop.permute.xlu0 %3481
    %3483 = vset.pattern.permute.xlu0 0
    %3484 = vperm.xlu0 %3483, %v2193
    %v3485 = vpop.permute.xlu0 %3484
    %3486 = vset.pattern.permute.xlu0 0
    %3487 = vperm.xlu0 %3486, %v2242
    %v3488 = vpop.permute.xlu0 %3487
    %3489 = vset.pattern.permute.xlu0 0
    %3490 = vperm.xlu0 %3489, %v2291
    %v3491 = vpop.permute.xlu0 %3490
    %3492 = vset.pattern.permute.xlu0 0
    %3493 = vperm.xlu0 %3492, %v2340
    %v3494 = vpop.permute.xlu0 %3493
    %3495 = vset.pattern.permute.xlu0 0
    %3496 = vperm.xlu0 %3495, %v2389
    %v3497 = vpop.permute.xlu0 %3496
    %3498 = vset.pattern.permute.xlu0 0
    %3499 = vperm.xlu0 %3498, %v2438
    %v3500 = vpop.permute.xlu0 %3499
    %3501 = vset.pattern.permute.xlu0 0
    %3502 = vperm.xlu0 %3501, %v2487
    %v3503 = vpop.permute.xlu0 %3502
    %3504 = vset.pattern.permute.xlu0 0
    %3505 = vperm.xlu0 %3504, %v2536
    %v3506 = vpop.permute.xlu0 %3505
    %3507 = vset.pattern.permute.xlu0 0
    %3508 = vperm.xlu0 %3507, %v2585
    %v3509 = vpop.permute.xlu0 %3508
    %3510 = vset.pattern.permute.xlu0 0
    %3511 = vperm.xlu0 %3510, %v2634
    %v3512 = vpop.permute.xlu0 %3511
    %3513 = vset.pattern.permute.xlu0 0
    %3514 = vperm.xlu0 %3513, %v2683
    %v3515 = vpop.permute.xlu0 %3514
    %3516 = vset.pattern.permute.xlu0 0
    %3517 = vperm.xlu0 %3516, %v2732
    %v3518 = vpop.permute.xlu0 %3517
    %3519 = vset.pattern.permute.xlu0 0
    %3520 = vperm.xlu0 %3519, %v2781
    %v3521 = vpop.permute.xlu0 %3520
    %3522 = vset.pattern.permute.xlu0 0
    %3523 = vperm.xlu0 %3522, %v2830
    %v3524 = vpop.permute.xlu0 %3523
    %3525 = vset.pattern.permute.xlu0 0
    %3526 = vperm.xlu0 %3525, %v2879
    %v3527 = vpop.permute.xlu0 %3526
    %3528 = vset.pattern.permute.xlu0 0
    %3529 = vperm.xlu0 %3528, %v2928
    %v3530 = vpop.permute.xlu0 %3529
    %3531 = vset.pattern.permute.xlu0 0
    %3532 = vperm.xlu0 %3531, %v2977
    %v3533 = vpop.permute.xlu0 %3532
    %3534 = vset.pattern.permute.xlu0 0
    %3535 = vperm.xlu0 %3534, %v3026
    %v3536 = vpop.permute.xlu0 %3535
    %3537 = vset.pattern.permute.xlu0 0
    %3538 = vperm.xlu0 %3537, %v3075
    %v3539 = vpop.permute.xlu0 %3538
    %3540 = vset.pattern.permute.xlu0 0
    %3541 = vperm.xlu0 %3540, %v3124
    %v3542 = vpop.permute.xlu0 %3541
    %3543 = vset.pattern.permute.xlu0 0
    %3544 = vperm.xlu0 %3543, %v3173
    %v3545 = vpop.permute.xlu0 %3544
    %3546 = vset.pattern.permute.xlu0 0
    %3547 = vperm.xlu0 %3546, %v3222
    %v3548 = vpop.permute.xlu0 %3547
    %3549 = vset.pattern.permute.xlu0 0
    %3550 = vperm.xlu0 %3549, %v3271
    %v3551 = vpop.permute.xlu0 %3550
    %3552 = vset.pattern.permute.xlu0 0
    %3553 = vperm.xlu0 %3552, %v3320
    %v3554 = vpop.permute.xlu0 %3553
    %3555 = vset.pattern.permute.xlu0 0
    %3556 = vperm.xlu0 %3555, %v3369
    %v3557 = vpop.permute.xlu0 %3556
    %3558 = vset.pattern.permute.xlu0 0
    %3559 = vperm.xlu0 %3558, %v3418
    %v3560 = vpop.permute.xlu0 %3559
    %3561 = vset.pattern.permute.xlu0 0
    %3562 = vperm.xlu0 %3561, %v3467
    %v3563 = vpop.permute.xlu0 %3562
    %v3564 = vlaneseq
    %v3565 = vand.u32 %v3564, 127
    %v3566 = vlaneseq
    %v3567 = vshrl.u32 %v3566, 7
    %v3568 = vsub.s32 %v3565, %v3567
    %v3569 = vrot.slane %v3470, %v3568
    %v3570 = vadd.s32 %v3565, 4294967288
    %v3571 = vlaneseq
    %v3572 = vshrl.u32 %v3571, 7
    %v3573 = vsub.s32 %v3570, %v3572
    %v3574 = vrot.slane %v3473, %v3573
    %vm3575 = vcmask 130112
    %v3576 = vsel %vm3575, %v3574, %v3569
    %v3577 = vadd.s32 %v3565, 4294967280
    %v3578 = vlaneseq
    %v3579 = vshrl.u32 %v3578, 7
    %v3580 = vsub.s32 %v3577, %v3579
    %v3581 = vrot.slane %v3476, %v3580
    %vm3582 = vcmask 195712
    %v3583 = vsel %vm3582, %v3581, %v3576
    %v3584 = vadd.s32 %v3565, 4294967272
    %v3585 = vlaneseq
    %v3586 = vshrl.u32 %v3585, 7
    %v3587 = vsub.s32 %v3584, %v3586
    %v3588 = vrot.slane %v3479, %v3587
    %vm3589 = vcmask 261312
    %v3590 = vsel %vm3589, %v3588, %v3583
    %v3591 = vadd.s32 %v3565, 4294967264
    %v3592 = vlaneseq
    %v3593 = vshrl.u32 %v3592, 7
    %v3594 = vsub.s32 %v3591, %v3593
    %v3595 = vrot.slane %v3482, %v3594
    %vm3596 = vcmask 326912
    %v3597 = vsel %vm3596, %v3595, %v3590
    %v3598 = vadd.s32 %v3565, 4294967256
    %v3599 = vlaneseq
    %v3600 = vshrl.u32 %v3599, 7
    %v3601 = vsub.s32 %v3598, %v3600
    %v3602 = vrot.slane %v3485, %v3601
    %vm3603 = vcmask 392512
    %v3604 = vsel %vm3603, %v3602, %v3597
    %v3605 = vadd.s32 %v3565, 4294967248
    %v3606 = vlaneseq
    %v3607 = vshrl.u32 %v3606, 7
    %v3608 = vsub.s32 %v3605, %v3607
    %v3609 = vrot.slane %v3488, %v3608
    %vm3610 = vcmask 458112
    %v3611 = vsel %vm3610, %v3609, %v3604
    %v3612 = vadd.s32 %v3565, 4294967240
    %v3613 = vlaneseq
    %v3614 = vshrl.u32 %v3613, 7
    %v3615 = vsub.s32 %v3612, %v3614
    %v3616 = vrot.slane %v3491, %v3615
    %vm3617 = vcmask 523712
    %v3618 = vsel %vm3617, %v3616, %v3611
    %v3619 = vadd.s32 %v3565, 4294967232
    %v3620 = vlaneseq
    %v3621 = vshrl.u32 %v3620, 7
    %v3622 = vsub.s32 %v3619, %v3621
    %v3623 = vrot.slane %v3494, %v3622
    %vm3624 = vcmask 589312
    %v3625 = vsel %vm3624, %v3623, %v3618
    %v3626 = vadd.s32 %v3565, 4294967224
    %v3627 = vlaneseq
    %v3628 = vshrl.u32 %v3627, 7
    %v3629 = vsub.s32 %v3626, %v3628
    %v3630 = vrot.slane %v3497, %v3629
    %vm3631 = vcmask 654912
    %v3632 = vsel %vm3631, %v3630, %v3625
    %v3633 = vadd.s32 %v3565, 4294967216
    %v3634 = vlaneseq
    %v3635 = vshrl.u32 %v3634, 7
    %v3636 = vsub.s32 %v3633, %v3635
    %v3637 = vrot.slane %v3500, %v3636
    %vm3638 = vcmask 720512
    %v3639 = vsel %vm3638, %v3637, %v3632
    %v3640 = vadd.s32 %v3565, 4294967208
    %v3641 = vlaneseq
    %v3642 = vshrl.u32 %v3641, 7
    %v3643 = vsub.s32 %v3640, %v3642
    %v3644 = vrot.slane %v3503, %v3643
    %vm3645 = vcmask 786112
    %v3646 = vsel %vm3645, %v3644, %v3639
    %v3647 = vadd.s32 %v3565, 4294967200
    %v3648 = vlaneseq
    %v3649 = vshrl.u32 %v3648, 7
    %v3650 = vsub.s32 %v3647, %v3649
    %v3651 = vrot.slane %v3506, %v3650
    %vm3652 = vcmask 851712
    %v3653 = vsel %vm3652, %v3651, %v3646
    %v3654 = vadd.s32 %v3565, 4294967192
    %v3655 = vlaneseq
    %v3656 = vshrl.u32 %v3655, 7
    %v3657 = vsub.s32 %v3654, %v3656
    %v3658 = vrot.slane %v3509, %v3657
    %vm3659 = vcmask 917312
    %v3660 = vsel %vm3659, %v3658, %v3653
    %v3661 = vadd.s32 %v3565, 4294967184
    %v3662 = vlaneseq
    %v3663 = vshrl.u32 %v3662, 7
    %v3664 = vsub.s32 %v3661, %v3663
    %v3665 = vrot.slane %v3512, %v3664
    %vm3666 = vcmask 982912
    %v3667 = vsel %vm3666, %v3665, %v3660
    %v3668 = vadd.s32 %v3565, 4294967176
    %v3669 = vlaneseq
    %v3670 = vshrl.u32 %v3669, 7
    %v3671 = vsub.s32 %v3668, %v3670
    %v3672 = vrot.slane %v3515, %v3671
    %vm3673 = vcmask 1048512
    %v3674 = vsel %vm3673, %v3672, %v3667
    %v3675 = vlaneseq
    %v3676 = vshrl.u32 %v3675, 7
    %v3677 = vsub.s32 %v3565, %v3676
    %v3678 = vrot.slane %v3518, %v3677
    %v3679 = vlaneseq
    %v3680 = vshrl.u32 %v3679, 7
    %v3681 = vsub.s32 %v3570, %v3680
    %v3682 = vrot.slane %v3521, %v3681
    %v3683 = vsel %vm3575, %v3682, %v3678
    %v3684 = vlaneseq
    %v3685 = vshrl.u32 %v3684, 7
    %v3686 = vsub.s32 %v3577, %v3685
    %v3687 = vrot.slane %v3524, %v3686
    %v3688 = vsel %vm3582, %v3687, %v3683
    %v3689 = vlaneseq
    %v3690 = vshrl.u32 %v3689, 7
    %v3691 = vsub.s32 %v3584, %v3690
    %v3692 = vrot.slane %v3527, %v3691
    %v3693 = vsel %vm3589, %v3692, %v3688
    %v3694 = vlaneseq
    %v3695 = vshrl.u32 %v3694, 7
    %v3696 = vsub.s32 %v3591, %v3695
    %v3697 = vrot.slane %v3530, %v3696
    %v3698 = vsel %vm3596, %v3697, %v3693
    %v3699 = vlaneseq
    %v3700 = vshrl.u32 %v3699, 7
    %v3701 = vsub.s32 %v3598, %v3700
    %v3702 = vrot.slane %v3533, %v3701
    %v3703 = vsel %vm3603, %v3702, %v3698
    %v3704 = vlaneseq
    %v3705 = vshrl.u32 %v3704, 7
    %v3706 = vsub.s32 %v3605, %v3705
    %v3707 = vrot.slane %v3536, %v3706
    %v3708 = vsel %vm3610, %v3707, %v3703
    %v3709 = vlaneseq
    %v3710 = vshrl.u32 %v3709, 7
    %v3711 = vsub.s32 %v3612, %v3710
    %v3712 = vrot.slane %v3539, %v3711
    %v3713 = vsel %vm3617, %v3712, %v3708
    %v3714 = vlaneseq
    %v3715 = vshrl.u32 %v3714, 7
    %v3716 = vsub.s32 %v3619, %v3715
    %v3717 = vrot.slane %v3542, %v3716
    %v3718 = vsel %vm3624, %v3717, %v3713
    %v3719 = vlaneseq
    %v3720 = vshrl.u32 %v3719, 7
    %v3721 = vsub.s32 %v3626, %v3720
    %v3722 = vrot.slane %v3545, %v3721
    %v3723 = vsel %vm3631, %v3722, %v3718
    %v3724 = vlaneseq
    %v3725 = vshrl.u32 %v3724, 7
    %v3726 = vsub.s32 %v3633, %v3725
    %v3727 = vrot.slane %v3548, %v3726
    %v3728 = vsel %vm3638, %v3727, %v3723
    %v3729 = vlaneseq
    %v3730 = vshrl.u32 %v3729, 7
    %v3731 = vsub.s32 %v3640, %v3730
    %v3732 = vrot.slane %v3551, %v3731
    %v3733 = vsel %vm3645, %v3732, %v3728
    %v3734 = vlaneseq
    %v3735 = vshrl.u32 %v3734, 7
    %v3736 = vsub.s32 %v3647, %v3735
    %v3737 = vrot.slane %v3554, %v3736
    %v3738 = vsel %vm3652, %v3737, %v3733
    %v3739 = vlaneseq
    %v3740 = vshrl.u32 %v3739, 7
    %v3741 = vsub.s32 %v3654, %v3740
    %v3742 = vrot.slane %v3557, %v3741
    %v3743 = vsel %vm3659, %v3742, %v3738
    %v3744 = vlaneseq
    %v3745 = vshrl.u32 %v3744, 7
    %v3746 = vsub.s32 %v3661, %v3745
    %v3747 = vrot.slane %v3560, %v3746
    %v3748 = vsel %vm3666, %v3747, %v3743
    %v3749 = vlaneseq
    %v3750 = vshrl.u32 %v3749, 7
    %v3751 = vsub.s32 %v3668, %v3750
    %v3752 = vrot.slane %v3563, %v3751
    %v3753 = vsel %vm3673, %v3752, %v3748
    %v3754 = vcombine.low %v3674, %v3753
    %v3756 = vunpack.c.l.s4 1966171168
    %v3757 = vunpack.c.0.s8 %v3756
    %v3758 = vlaneseq
    %v3759 = vshrl.u32 %v3758, 7
    %v3760 = vsub.s32 %v3757, %v3759
    %v3761 = vrot.slane %v3754, %v3760
    %v3763 = vunpack.c.l.s4 1966171168
    %v3764 = vunpack.c.0.s8 %v3763
    %v3765 = vlaneseq
    %v3766 = vshrl.u32 %v3765, 7
    %v3767 = vsub.s32 %v3764, %v3766
    %v3768 = vrot.slane %v3761, %v3767
    %v3770 = vlaneseq
    %vm3771 = vcmp.ge.s32.totalorder %v3770, 0
    %vm3772 = vcmp.lt.s32.totalorder %v3770, 256
    %vm3773 = vmand %vm3771, %vm3772
    %3774 = vst.msk [vmem:[#allocation3] sm:$0x3] %vm3773, %v3768
    %s3775 = scalar_lea.vmem %s0, 256
    %v3776 = vld [vmem:[%s3775] sm:$0xff]
    %v3777 = vld [vmem:[%s3775 + $0x8] sm:$0xff]
    %v3778 = vld [vmem:[%s3775 + $0x10] sm:$0xff]
    %v3779 = vld [vmem:[%s3775 + $0x18] sm:$0xff]
    %v3780 = vld [vmem:[%s3775 + $0x20] sm:$0xff]
    %v3781 = vld [vmem:[%s3775 + $0x28] sm:$0xff]
    %v3782 = vld [vmem:[%s3775 + $0x30] sm:$0xff]
    %v3783 = vld [vmem:[%s3775 + $0x38] sm:$0xff]
    %v3784 = vld [vmem:[%s3775 + $0x40] sm:$0xff]
    %v3785 = vld [vmem:[%s3775 + $0x48] sm:$0xff]
    %v3786 = vld [vmem:[%s3775 + $0x50] sm:$0xff]
    %v3787 = vld [vmem:[%s3775 + $0x58] sm:$0xff]
    %v3788 = vld [vmem:[%s3775 + $0x60] sm:$0xff]
    %v3789 = vld [vmem:[%s3775 + $0x68] sm:$0xff]
    %v3790 = vld [vmem:[%s3775 + $0x70] sm:$0xff]
    %v3791 = vld [vmem:[%s3775 + $0x78] sm:$0xff]
    %v3792 = vld [vmem:[%s3775 + $0x80] sm:$0xff]
    %v3793 = vld [vmem:[%s3775 + $0x88] sm:$0xff]
    %v3794 = vld [vmem:[%s3775 + $0x90] sm:$0xff]
    %v3795 = vld [vmem:[%s3775 + $0x98] sm:$0xff]
    %v3796 = vld [vmem:[%s3775 + $0xa0] sm:$0xff]
    %v3797 = vld [vmem:[%s3775 + $0xa8] sm:$0xff]
    %v3798 = vld [vmem:[%s3775 + $0xb0] sm:$0xff]
    %v3799 = vld [vmem:[%s3775 + $0xb8] sm:$0xff]
    %v3800 = vld [vmem:[%s3775 + $0xc0] sm:$0xff]
    %v3801 = vld [vmem:[%s3775 + $0xc8] sm:$0xff]
    %v3802 = vld [vmem:[%s3775 + $0xd0] sm:$0xff]
    %v3803 = vld [vmem:[%s3775 + $0xd8] sm:$0xff]
    %v3804 = vld [vmem:[%s3775 + $0xe0] sm:$0xff]
    %v3805 = vld [vmem:[%s3775 + $0xe8] sm:$0xff]
    %v3806 = vld [vmem:[%s3775 + $0xf0] sm:$0xff]
    %v3807 = vld [vmem:[%s3775 + $0xf8] sm:$0xff]
    %v3809 = vsel %vm67, %v3776, 0
    %v3812 = vsel %vm67, %v3777, 0
    %v3815 = vsel %vm67, %v3778, 0
    %v3818 = vsel %vm67, %v3779, 0
    %v3821 = vsel %vm67, %v3780, 0
    %v3824 = vsel %vm67, %v3781, 0
    %v3827 = vsel %vm67, %v3782, 0
    %v3830 = vsel %vm67, %v3783, 0
    %v3833 = vsel %vm67, %v3784, 0
    %v3836 = vsel %vm67, %v3785, 0
    %v3839 = vsel %vm67, %v3786, 0
    %v3842 = vsel %vm67, %v3787, 0
    %v3845 = vsel %vm67, %v3788, 0
    %v3848 = vsel %vm67, %v3789, 0
    %v3851 = vsel %vm67, %v3790, 0
    %v3854 = vsel %vm67, %v3791, 0
    %v3857 = vsel %vm67, %v3792, 0
    %v3860 = vsel %vm67, %v3793, 0
    %v3863 = vsel %vm67, %v3794, 0
    %v3866 = vsel %vm67, %v3795, 0
    %v3869 = vsel %vm67, %v3796, 0
    %v3872 = vsel %vm67, %v3797, 0
    %v3875 = vsel %vm67, %v3798, 0
    %v3878 = vsel %vm67, %v3799, 0
    %v3881 = vsel %vm67, %v3800, 0
    %v3884 = vsel %vm67, %v3801, 0
    %v3887 = vsel %vm67, %v3802, 0
    %v3890 = vsel %vm67, %v3803, 0
    %v3893 = vsel %vm67, %v3804, 0
    %v3896 = vsel %vm67, %v3805, 0
    %v3899 = vsel %vm67, %v3806, 0
    %v3902 = vsel %vm67, %v3807, 0
    %3904 = vmatprep.subr.mxu0 0.0
    %3905 = vmatpush1.msra.mxu0 %v22
    %3906 = vmatprep.subr.mxu0 0.0
    %3907 = vmatpush1.msra.mxu0 %v23
    %3908 = vmatprep.subr.mxu0 0.0
    %3909 = vmatpush1.msra.mxu0 %v24
    %3910 = vmatprep.subr.mxu0 0.0
    %3911 = vmatpush1.msra.mxu0 %v25
    %3912 = vmatprep.subr.mxu0 0.0
    %3913 = vmatpush1.msra.mxu0 0.0
    %3914 = vmatprep.subr.mxu0 0.0
    %3915 = vmatpush1.msra.mxu0 0.0
    %3916 = vmatprep.subr.mxu0 0.0
    %3917 = vmatpush1.msra.mxu0 0.0
    %3918 = vmatprep.subr.mxu0 0.0
    %3919 = vmatpush1.msra.mxu0 0.0
    %3920 = vmatprep.subr.mxu0 0.0
    %3921 = vmatpush1.msra.mxu0 0.0
    %3922 = vmatprep.subr.mxu0 0.0
    %3923 = vmatpush1.msra.mxu0 0.0
    %3924 = vmatprep.subr.mxu0 0.0
    %3925 = vmatpush1.msra.mxu0 0.0
    %3926 = vmatprep.subr.mxu0 0.0
    %3927 = vmatpush1.msra.mxu0 0.0
    %3928 = vmatprep.subr.mxu0 0.0
    %3929 = vmatpush1.msra.mxu0 0.0
    %3930 = vmatprep.subr.mxu0 0.0
    %3931 = vmatpush1.msra.mxu0 0.0
    %3932 = vmatprep.subr.mxu0 0.0
    %3933 = vmatpush1.msra.mxu0 0.0
    %3934 = vmatprep.subr.mxu0 0.0
    %3935 = vmatpush1.msra.mxu0 0.0
    %3936 = vmatprep.subr.mxu0 0.0
    %3937 = vmatpush1.msra.mxu0 0.0
    %3938 = vmatprep.subr.mxu0 0.0
    %3939 = vmatpush1.msra.mxu0 0.0
    %3940 = vmatprep.subr.mxu0 0.0
    %3941 = vmatpush1.msra.mxu0 0.0
    %3942 = vmatprep.subr.mxu0 0.0
    %3943 = vmatpush1.msra.mxu0 0.0
    %3944 = vmatprep.subr.mxu0 0.0
    %3945 = vmatpush1.msra.mxu0 0.0
    %3946 = vmatprep.subr.mxu0 0.0
    %3947 = vmatpush1.msra.mxu0 0.0
    %3948 = vmatprep.subr.mxu0 0.0
    %3949 = vmatpush1.msra.mxu0 0.0
    %3950 = vmatprep.subr.mxu0 0.0
    %3951 = vmatpush1.msra.mxu0 0.0
    %3952 = vmatprep.subr.mxu0 0.0
    %3953 = vmatpush1.msra.mxu0 0.0
    %3954 = vmatprep.subr.mxu0 0.0
    %3955 = vmatpush1.msra.mxu0 0.0
    %3956 = vmatprep.subr.mxu0 0.0
    %3957 = vmatpush1.msra.mxu0 0.0
    %3958 = vmatprep.subr.mxu0 0.0
    %3959 = vmatpush1.msra.mxu0 0.0
    %3960 = vmatprep.subr.mxu0 0.0
    %3961 = vmatpush1.msra.mxu0 0.0
    %3962 = vmatprep.subr.mxu0 0.0
    %3963 = vmatpush1.msra.mxu0 0.0
    %3964 = vmatprep.subr.mxu0 0.0
    %3965 = vmatpush1.msra.mxu0 0.0
    %3966 = vmatprep.subr.mxu0 0.0
    %3967 = vmatpush1.msra.mxu0 0.0
    %3968 = vmatprep.mubr.f32.mxu0 0.0
    %3969 = vmatmul.mubr.f32.gmra.mrb[0].mxu0 %v3809
    %v3970 = vpop.f32.mrb[0].mxu0
    %v3971 = vadd.f32 %v65, %v3970
    %v3972 = vpop.f32.mrb[0].mxu0
    %3973 = vmatprep.mubr.f32.mxu0 0.0
    %3974 = vmatmul.mubr.f32.gmra.mrb[0].mxu0 %v3812
    %v3975 = vpop.f32.mrb[0].mxu0
    %v3976 = vadd.f32 %v65, %v3975
    %v3977 = vpop.f32.mrb[0].mxu0
    %3978 = vmatprep.mubr.f32.mxu0 0.0
    %3979 = vmatmul.mubr.f32.gmra.mrb[0].mxu0 %v3815
    %v3980 = vpop.f32.mrb[0].mxu0
    %v3981 = vadd.f32 %v65, %v3980
    %v3982 = vpop.f32.mrb[0].mxu0
    %3983 = vmatprep.mubr.f32.mxu0 0.0
    %3984 = vmatmul.mubr.f32.gmra.mrb[0].mxu0 %v3818
    %v3985 = vpop.f32.mrb[0].mxu0
    %v3986 = vadd.f32 %v65, %v3985
    %v3987 = vpop.f32.mrb[0].mxu0
    %3988 = vmatprep.mubr.f32.mxu0 0.0
    %3989 = vmatmul.mubr.f32.gmra.mrb[0].mxu0 %v3821
    %v3990 = vpop.f32.mrb[0].mxu0
    %v3991 = vadd.f32 %v65, %v3990
    %v3992 = vpop.f32.mrb[0].mxu0
    %3993 = vmatprep.mubr.f32.mxu0 0.0
    %3994 = vmatmul.mubr.f32.gmra.mrb[0].mxu0 %v3824
    %v3995 = vpop.f32.mrb[0].mxu0
    %v3996 = vadd.f32 %v65, %v3995
    %v3997 = vpop.f32.mrb[0].mxu0
    %3998 = vmatprep.mubr.f32.mxu0 0.0
    %3999 = vmatmul.mubr.f32.gmra.mrb[0].mxu0 %v3827
    %v4000 = vpop.f32.mrb[0].mxu0
    %v4001 = vadd.f32 %v65, %v4000
    %v4002 = vpop.f32.mrb[0].mxu0
    %4003 = vmatprep.mubr.f32.mxu0 0.0
    %4004 = vmatmul.mubr.f32.gmra.mrb[0].mxu0 %v3830
    %v4005 = vpop.f32.mrb[0].mxu0
    %v4006 = vadd.f32 %v65, %v4005
    %v4007 = vpop.f32.mrb[0].mxu0
    %4008 = vmatprep.mubr.f32.mxu0 0.0
    %4009 = vmatmul.mubr.f32.gmra.mrb[0].mxu0 %v3833
    %v4010 = vpop.f32.mrb[0].mxu0
    %v4011 = vadd.f32 %v65, %v4010
    %v4012 = vpop.f32.mrb[0].mxu0
    %4013 = vmatprep.mubr.f32.mxu0 0.0
    %4014 = vmatmul.mubr.f32.gmra.mrb[0].mxu0 %v3836
    %v4015 = vpop.f32.mrb[0].mxu0
    %v4016 = vadd.f32 %v65, %v4015
    %v4017 = vpop.f32.mrb[0].mxu0
    %4018 = vmatprep.mubr.f32.mxu0 0.0
    %4019 = vmatmul.mubr.f32.gmra.mrb[0].mxu0 %v3839
    %v4020 = vpop.f32.mrb[0].mxu0
    %v4021 = vadd.f32 %v65, %v4020
    %v4022 = vpop.f32.mrb[0].mxu0
    %4023 = vmatprep.mubr.f32.mxu0 0.0
    %4024 = vmatmul.mubr.f32.gmra.mrb[0].mxu0 %v3842
    %v4025 = vpop.f32.mrb[0].mxu0
    %v4026 = vadd.f32 %v65, %v4025
    %v4027 = vpop.f32.mrb[0].mxu0
    %4028 = vmatprep.mubr.f32.mxu0 0.0
    %4029 = vmatmul.mubr.f32.gmra.mrb[0].mxu0 %v3845
    %v4030 = vpop.f32.mrb[0].mxu0
    %v4031 = vadd.f32 %v65, %v4030
    %v4032 = vpop.f32.mrb[0].mxu0
    %4033 = vmatprep.mubr.f32.mxu0 0.0
    %4034 = vmatmul.mubr.f32.gmra.mrb[0].mxu0 %v3848
    %v4035 = vpop.f32.mrb[0].mxu0
    %v4036 = vadd.f32 %v65, %v4035
    %v4037 = vpop.f32.mrb[0].mxu0
    %4038 = vmatprep.mubr.f32.mxu0 0.0
    %4039 = vmatmul.mubr.f32.gmra.mrb[0].mxu0 %v3851
    %v4040 = vpop.f32.mrb[0].mxu0
    %v4041 = vadd.f32 %v65, %v4040
    %v4042 = vpop.f32.mrb[0].mxu0
    %4043 = vmatprep.mubr.f32.mxu0 0.0
    %4044 = vmatmul.mubr.f32.gmra.mrb[0].mxu0 %v3854
    %v4045 = vpop.f32.mrb[0].mxu0
    %v4046 = vadd.f32 %v65, %v4045
    %v4047 = vpop.f32.mrb[0].mxu0
    %4048 = vmatprep.mubr.f32.mxu0 0.0
    %4049 = vmatmul.mubr.f32.gmra.mrb[0].mxu0 %v3857
    %v4050 = vpop.f32.mrb[0].mxu0
    %v4051 = vadd.f32 %v65, %v4050
    %v4052 = vpop.f32.mrb[0].mxu0
    %4053 = vmatprep.mubr.f32.mxu0 0.0
    %4054 = vmatmul.mubr.f32.gmra.mrb[0].mxu0 %v3860
    %v4055 = vpop.f32.mrb[0].mxu0
    %v4056 = vadd.f32 %v65, %v4055
    %v4057 = vpop.f32.mrb[0].mxu0
    %4058 = vmatprep.mubr.f32.mxu0 0.0
    %4059 = vmatmul.mubr.f32.gmra.mrb[0].mxu0 %v3863
    %v4060 = vpop.f32.mrb[0].mxu0
    %v4061 = vadd.f32 %v65, %v4060
    %v4062 = vpop.f32.mrb[0].mxu0
    %4063 = vmatprep.mubr.f32.mxu0 0.0
    %4064 = vmatmul.mubr.f32.gmra.mrb[0].mxu0 %v3866
    %v4065 = vpop.f32.mrb[0].mxu0
    %v4066 = vadd.f32 %v65, %v4065
    %v4067 = vpop.f32.mrb[0].mxu0
    %4068 = vmatprep.mubr.f32.mxu0 0.0
    %4069 = vmatmul.mubr.f32.gmra.mrb[0].mxu0 %v3869
    %v4070 = vpop.f32.mrb[0].mxu0
    %v4071 = vadd.f32 %v65, %v4070
    %v4072 = vpop.f32.mrb[0].mxu0
    %4073 = vmatprep.mubr.f32.mxu0 0.0
    %4074 = vmatmul.mubr.f32.gmra.mrb[0].mxu0 %v3872
    %v4075 = vpop.f32.mrb[0].mxu0
    %v4076 = vadd.f32 %v65, %v4075
    %v4077 = vpop.f32.mrb[0].mxu0
    %4078 = vmatprep.mubr.f32.mxu0 0.0
    %4079 = vmatmul.mubr.f32.gmra.mrb[0].mxu0 %v3875
    %v4080 = vpop.f32.mrb[0].mxu0
    %v4081 = vadd.f32 %v65, %v4080
    %v4082 = vpop.f32.mrb[0].mxu0
    %4083 = vmatprep.mubr.f32.mxu0 0.0
    %4084 = vmatmul.mubr.f32.gmra.mrb[0].mxu0 %v3878
    %v4085 = vpop.f32.mrb[0].mxu0
    %v4086 = vadd.f32 %v65, %v4085
    %v4087 = vpop.f32.mrb[0].mxu0
    %4088 = vmatprep.mubr.f32.mxu0 0.0
    %4089 = vmatmul.mubr.f32.gmra.mrb[0].mxu0 %v3881
    %v4090 = vpop.f32.mrb[0].mxu0
    %v4091 = vadd.f32 %v65, %v4090
    %v4092 = vpop.f32.mrb[0].mxu0
    %4093 = vmatprep.mubr.f32.mxu0 0.0
    %4094 = vmatmul.mubr.f32.gmra.mrb[0].mxu0 %v3884
    %v4095 = vpop.f32.mrb[0].mxu0
    %v4096 = vadd.f32 %v65, %v4095
    %v4097 = vpop.f32.mrb[0].mxu0
    %4098 = vmatprep.mubr.f32.mxu0 0.0
    %4099 = vmatmul.mubr.f32.gmra.mrb[0].mxu0 %v3887
    %v4100 = vpop.f32.mrb[0].mxu0
    %v4101 = vadd.f32 %v65, %v4100
    %v4102 = vpop.f32.mrb[0].mxu0
    %4103 = vmatprep.mubr.f32.mxu0 0.0
    %4104 = vmatmul.mubr.f32.gmra.mrb[0].mxu0 %v3890
    %v4105 = vpop.f32.mrb[0].mxu0
    %v4106 = vadd.f32 %v65, %v4105
    %v4107 = vpop.f32.mrb[0].mxu0
    %4108 = vmatprep.mubr.f32.mxu0 0.0
    %4109 = vmatmul.mubr.f32.gmra.mrb[0].mxu0 %v3893
    %v4110 = vpop.f32.mrb[0].mxu0
    %v4111 = vadd.f32 %v65, %v4110
    %v4112 = vpop.f32.mrb[0].mxu0
    %4113 = vmatprep.mubr.f32.mxu0 0.0
    %4114 = vmatmul.mubr.f32.gmra.mrb[0].mxu0 %v3896
    %v4115 = vpop.f32.mrb[0].mxu0
    %v4116 = vadd.f32 %v65, %v4115
    %v4117 = vpop.f32.mrb[0].mxu0
    %4118 = vmatprep.mubr.f32.mxu0 0.0
    %4119 = vmatmul.mubr.f32.gmra.mrb[0].mxu0 %v3899
    %v4120 = vpop.f32.mrb[0].mxu0
    %v4121 = vadd.f32 %v65, %v4120
    %v4122 = vpop.f32.mrb[0].mxu0
    %4123 = vmatprep.mubr.f32.mxu0 0.0
    %4124 = vmatmul.mubr.f32.gmra.mrb[0].mxu0 %v3902
    %v4125 = vpop.f32.mrb[0].mxu0
    %v4126 = vadd.f32 %v65, %v4125
    %v4127 = vpop.f32.mrb[0].mxu0
    %4128 = vdwg.mxu0
    %v4129 = vmin.f32 %v3971, 20.0
    %v4130 = vmin.f32 %v3976, 20.0
    %v4131 = vmin.f32 %v3981, 20.0
    %v4132 = vmin.f32 %v3986, 20.0
    %v4133 = vmin.f32 %v3991, 20.0
    %v4134 = vmin.f32 %v3996, 20.0
    %v4135 = vmin.f32 %v4001, 20.0
    %v4136 = vmin.f32 %v4006, 20.0
    %v4137 = vmin.f32 %v4011, 20.0
    %v4138 = vmin.f32 %v4016, 20.0
    %v4139 = vmin.f32 %v4021, 20.0
    %v4140 = vmin.f32 %v4026, 20.0
    %v4141 = vmin.f32 %v4031, 20.0
    %v4142 = vmin.f32 %v4036, 20.0
    %v4143 = vmin.f32 %v4041, 20.0
    %v4144 = vmin.f32 %v4046, 20.0
    %v4145 = vmin.f32 %v4051, 20.0
    %v4146 = vmin.f32 %v4056, 20.0
    %v4147 = vmin.f32 %v4061, 20.0
    %v4148 = vmin.f32 %v4066, 20.0
    %v4149 = vmin.f32 %v4071, 20.0
    %v4150 = vmin.f32 %v4076, 20.0
    %v4151 = vmin.f32 %v4081, 20.0
    %v4152 = vmin.f32 %v4086, 20.0
    %v4153 = vmin.f32 %v4091, 20.0
    %v4154 = vmin.f32 %v4096, 20.0
    %v4155 = vmin.f32 %v4101, 20.0
    %v4156 = vmin.f32 %v4106, 20.0
    %v4157 = vmin.f32 %v4111, 20.0
    %v4158 = vmin.f32 %v4116, 20.0
    %v4159 = vmin.f32 %v4121, 20.0
    %v4160 = vmin.f32 %v4126, 20.0
    %v4161 = vmul.f32 %v4129, 1.442695
    %v4162 = vpow.pop %v4161
    %v4163 = vmul.f32 %v4130, 1.442695
    %v4164 = vpow.pop %v4163
    %v4165 = vmul.f32 %v4131, 1.442695
    %v4166 = vpow.pop %v4165
    %v4167 = vmul.f32 %v4132, 1.442695
    %v4168 = vpow.pop %v4167
    %v4169 = vmul.f32 %v4133, 1.442695
    %v4170 = vpow.pop %v4169
    %v4171 = vmul.f32 %v4134, 1.442695
    %v4172 = vpow.pop %v4171
    %v4173 = vmul.f32 %v4135, 1.442695
    %v4174 = vpow.pop %v4173
    %v4175 = vmul.f32 %v4136, 1.442695
    %v4176 = vpow.pop %v4175
    %v4177 = vmul.f32 %v4137, 1.442695
    %v4178 = vpow.pop %v4177
    %v4179 = vmul.f32 %v4138, 1.442695
    %v4180 = vpow.pop %v4179
    %v4181 = vmul.f32 %v4139, 1.442695
    %v4182 = vpow.pop %v4181
    %v4183 = vmul.f32 %v4140, 1.442695
    %v4184 = vpow.pop %v4183
    %v4185 = vmul.f32 %v4141, 1.442695
    %v4186 = vpow.pop %v4185
    %v4187 = vmul.f32 %v4142, 1.442695
    %v4188 = vpow.pop %v4187
    %v4189 = vmul.f32 %v4143, 1.442695
    %v4190 = vpow.pop %v4189
    %v4191 = vmul.f32 %v4144, 1.442695
    %v4192 = vpow.pop %v4191
    %v4193 = vmul.f32 %v4145, 1.442695
    %v4194 = vpow.pop %v4193
    %v4195 = vmul.f32 %v4146, 1.442695
    %v4196 = vpow.pop %v4195
    %v4197 = vmul.f32 %v4147, 1.442695
    %v4198 = vpow.pop %v4197
    %v4199 = vmul.f32 %v4148, 1.442695
    %v4200 = vpow.pop %v4199
    %v4201 = vmul.f32 %v4149, 1.442695
    %v4202 = vpow.pop %v4201
    %v4203 = vmul.f32 %v4150, 1.442695
    %v4204 = vpow.pop %v4203
    %v4205 = vmul.f32 %v4151, 1.442695
    %v4206 = vpow.pop %v4205
    %v4207 = vmul.f32 %v4152, 1.442695
    %v4208 = vpow.pop %v4207
    %v4209 = vmul.f32 %v4153, 1.442695
    %v4210 = vpow.pop %v4209
    %v4211 = vmul.f32 %v4154, 1.442695
    %v4212 = vpow.pop %v4211
    %v4213 = vmul.f32 %v4155, 1.442695
    %v4214 = vpow.pop %v4213
    %v4215 = vmul.f32 %v4156, 1.442695
    %v4216 = vpow.pop %v4215
    %v4217 = vmul.f32 %v4157, 1.442695
    %v4218 = vpow.pop %v4217
    %v4219 = vmul.f32 %v4158, 1.442695
    %v4220 = vpow.pop %v4219
    %v4221 = vmul.f32 %v4159, 1.442695
    %v4222 = vpow.pop %v4221
    %v4223 = vmul.f32 %v4160, 1.442695
    %v4224 = vpow.pop %v4223
    %v4225 = vadd.f32 %v4162, 1.0
    %v4226 = vadd.f32 %v4164, 1.0
    %v4227 = vadd.f32 %v4166, 1.0
    %v4228 = vadd.f32 %v4168, 1.0
    %v4229 = vadd.f32 %v4170, 1.0
    %v4230 = vadd.f32 %v4172, 1.0
    %v4231 = vadd.f32 %v4174, 1.0
    %v4232 = vadd.f32 %v4176, 1.0
    %v4233 = vadd.f32 %v4178, 1.0
    %v4234 = vadd.f32 %v4180, 1.0
    %v4235 = vadd.f32 %v4182, 1.0
    %v4236 = vadd.f32 %v4184, 1.0
    %v4237 = vadd.f32 %v4186, 1.0
    %v4238 = vadd.f32 %v4188, 1.0
    %v4239 = vadd.f32 %v4190, 1.0
    %v4240 = vadd.f32 %v4192, 1.0
    %v4241 = vadd.f32 %v4194, 1.0
    %v4242 = vadd.f32 %v4196, 1.0
    %v4243 = vadd.f32 %v4198, 1.0
    %v4244 = vadd.f32 %v4200, 1.0
    %v4245 = vadd.f32 %v4202, 1.0
    %v4246 = vadd.f32 %v4204, 1.0
    %v4247 = vadd.f32 %v4206, 1.0
    %v4248 = vadd.f32 %v4208, 1.0
    %v4249 = vadd.f32 %v4210, 1.0
    %v4250 = vadd.f32 %v4212, 1.0
    %v4251 = vadd.f32 %v4214, 1.0
    %v4252 = vadd.f32 %v4216, 1.0
    %v4253 = vadd.f32 %v4218, 1.0
    %v4254 = vadd.f32 %v4220, 1.0
    %v4255 = vadd.f32 %v4222, 1.0
    %v4256 = vadd.f32 %v4224, 1.0
    %v4257 = vmul.f32 %v4225, %v4225
    %v4258 = vmul.f32 %v4226, %v4226
    %v4259 = vmul.f32 %v4227, %v4227
    %v4260 = vmul.f32 %v4228, %v4228
    %v4261 = vmul.f32 %v4229, %v4229
    %v4262 = vmul.f32 %v4230, %v4230
    %v4263 = vmul.f32 %v4231, %v4231
    %v4264 = vmul.f32 %v4232, %v4232
    %v4265 = vmul.f32 %v4233, %v4233
    %v4266 = vmul.f32 %v4234, %v4234
    %v4267 = vmul.f32 %v4235, %v4235
    %v4268 = vmul.f32 %v4236, %v4236
    %v4269 = vmul.f32 %v4237, %v4237
    %v4270 = vmul.f32 %v4238, %v4238
    %v4271 = vmul.f32 %v4239, %v4239
    %v4272 = vmul.f32 %v4240, %v4240
    %v4273 = vmul.f32 %v4241, %v4241
    %v4274 = vmul.f32 %v4242, %v4242
    %v4275 = vmul.f32 %v4243, %v4243
    %v4276 = vmul.f32 %v4244, %v4244
    %v4277 = vmul.f32 %v4245, %v4245
    %v4278 = vmul.f32 %v4246, %v4246
    %v4279 = vmul.f32 %v4247, %v4247
    %v4280 = vmul.f32 %v4248, %v4248
    %v4281 = vmul.f32 %v4249, %v4249
    %v4282 = vmul.f32 %v4250, %v4250
    %v4283 = vmul.f32 %v4251, %v4251
    %v4284 = vmul.f32 %v4252, %v4252
    %v4285 = vmul.f32 %v4253, %v4253
    %v4286 = vmul.f32 %v4254, %v4254
    %v4287 = vmul.f32 %v4255, %v4255
    %v4288 = vmul.f32 %v4256, %v4256
    %v4289 = vsub.f32 %v4257, 1.0
    %v4290 = vsub.f32 %v4258, 1.0
    %v4291 = vsub.f32 %v4259, 1.0
    %v4292 = vsub.f32 %v4260, 1.0
    %v4293 = vsub.f32 %v4261, 1.0
    %v4294 = vsub.f32 %v4262, 1.0
    %v4295 = vsub.f32 %v4263, 1.0
    %v4296 = vsub.f32 %v4264, 1.0
    %v4297 = vsub.f32 %v4265, 1.0
    %v4298 = vsub.f32 %v4266, 1.0
    %v4299 = vsub.f32 %v4267, 1.0
    %v4300 = vsub.f32 %v4268, 1.0
    %v4301 = vsub.f32 %v4269, 1.0
    %v4302 = vsub.f32 %v4270, 1.0
    %v4303 = vsub.f32 %v4271, 1.0
    %v4304 = vsub.f32 %v4272, 1.0
    %v4305 = vsub.f32 %v4273, 1.0
    %v4306 = vsub.f32 %v4274, 1.0
    %v4307 = vsub.f32 %v4275, 1.0
    %v4308 = vsub.f32 %v4276, 1.0
    %v4309 = vsub.f32 %v4277, 1.0
    %v4310 = vsub.f32 %v4278, 1.0
    %v4311 = vsub.f32 %v4279, 1.0
    %v4312 = vsub.f32 %v4280, 1.0
    %v4313 = vsub.f32 %v4281, 1.0
    %v4314 = vsub.f32 %v4282, 1.0
    %v4315 = vsub.f32 %v4283, 1.0
    %v4316 = vsub.f32 %v4284, 1.0
    %v4317 = vsub.f32 %v4285, 1.0
    %v4318 = vsub.f32 %v4286, 1.0
    %v4319 = vsub.f32 %v4287, 1.0
    %v4320 = vsub.f32 %v4288, 1.0
    %v4321 = vadd.f32 %v4257, 1.0
    %v4322 = vadd.f32 %v4258, 1.0
    %v4323 = vadd.f32 %v4259, 1.0
    %v4324 = vadd.f32 %v4260, 1.0
    %v4325 = vadd.f32 %v4261, 1.0
    %v4326 = vadd.f32 %v4262, 1.0
    %v4327 = vadd.f32 %v4263, 1.0
    %v4328 = vadd.f32 %v4264, 1.0
    %v4329 = vadd.f32 %v4265, 1.0
    %v4330 = vadd.f32 %v4266, 1.0
    %v4331 = vadd.f32 %v4267, 1.0
    %v4332 = vadd.f32 %v4268, 1.0
    %v4333 = vadd.f32 %v4269, 1.0
    %v4334 = vadd.f32 %v4270, 1.0
    %v4335 = vadd.f32 %v4271, 1.0
    %v4336 = vadd.f32 %v4272, 1.0
    %v4337 = vadd.f32 %v4273, 1.0
    %v4338 = vadd.f32 %v4274, 1.0
    %v4339 = vadd.f32 %v4275, 1.0
    %v4340 = vadd.f32 %v4276, 1.0
    %v4341 = vadd.f32 %v4277, 1.0
    %v4342 = vadd.f32 %v4278, 1.0
    %v4343 = vadd.f32 %v4279, 1.0
    %v4344 = vadd.f32 %v4280, 1.0
    %v4345 = vadd.f32 %v4281, 1.0
    %v4346 = vadd.f32 %v4282, 1.0
    %v4347 = vadd.f32 %v4283, 1.0
    %v4348 = vadd.f32 %v4284, 1.0
    %v4349 = vadd.f32 %v4285, 1.0
    %v4350 = vadd.f32 %v4286, 1.0
    %v4351 = vadd.f32 %v4287, 1.0
    %v4352 = vadd.f32 %v4288, 1.0
    %v4353 = vrcp.pop %v4321
    %v4354 = vrcp.pop %v4322
    %v4355 = vrcp.pop %v4323
    %v4356 = vrcp.pop %v4324
    %v4357 = vrcp.pop %v4325
    %v4358 = vrcp.pop %v4326
    %v4359 = vrcp.pop %v4327
    %v4360 = vrcp.pop %v4328
    %v4361 = vrcp.pop %v4329
    %v4362 = vrcp.pop %v4330
    %v4363 = vrcp.pop %v4331
    %v4364 = vrcp.pop %v4332
    %v4365 = vrcp.pop %v4333
    %v4366 = vrcp.pop %v4334
    %v4367 = vrcp.pop %v4335
    %v4368 = vrcp.pop %v4336
    %v4369 = vrcp.pop %v4337
    %v4370 = vrcp.pop %v4338
    %v4371 = vrcp.pop %v4339
    %v4372 = vrcp.pop %v4340
    %v4373 = vrcp.pop %v4341
    %v4374 = vrcp.pop %v4342
    %v4375 = vrcp.pop %v4343
    %v4376 = vrcp.pop %v4344
    %v4377 = vrcp.pop %v4345
    %v4378 = vrcp.pop %v4346
    %v4379 = vrcp.pop %v4347
    %v4380 = vrcp.pop %v4348
    %v4381 = vrcp.pop %v4349
    %v4382 = vrcp.pop %v4350
    %v4383 = vrcp.pop %v4351
    %v4384 = vrcp.pop %v4352
    %v4385 = vmul.f32 %v3971, %v4289
    %v4386 = vmul.f32 %v3976, %v4290
    %v4387 = vmul.f32 %v3981, %v4291
    %v4388 = vmul.f32 %v3986, %v4292
    %v4389 = vmul.f32 %v3991, %v4293
    %v4390 = vmul.f32 %v3996, %v4294
    %v4391 = vmul.f32 %v4001, %v4295
    %v4392 = vmul.f32 %v4006, %v4296
    %v4393 = vmul.f32 %v4011, %v4297
    %v4394 = vmul.f32 %v4016, %v4298
    %v4395 = vmul.f32 %v4021, %v4299
    %v4396 = vmul.f32 %v4026, %v4300
    %v4397 = vmul.f32 %v4031, %v4301
    %v4398 = vmul.f32 %v4036, %v4302
    %v4399 = vmul.f32 %v4041, %v4303
    %v4400 = vmul.f32 %v4046, %v4304
    %v4401 = vmul.f32 %v4051, %v4305
    %v4402 = vmul.f32 %v4056, %v4306
    %v4403 = vmul.f32 %v4061, %v4307
    %v4404 = vmul.f32 %v4066, %v4308
    %v4405 = vmul.f32 %v4071, %v4309
    %v4406 = vmul.f32 %v4076, %v4310
    %v4407 = vmul.f32 %v4081, %v4311
    %v4408 = vmul.f32 %v4086, %v4312
    %v4409 = vmul.f32 %v4091, %v4313
    %v4410 = vmul.f32 %v4096, %v4314
    %v4411 = vmul.f32 %v4101, %v4315
    %v4412 = vmul.f32 %v4106, %v4316
    %v4413 = vmul.f32 %v4111, %v4317
    %v4414 = vmul.f32 %v4116, %v4318
    %v4415 = vmul.f32 %v4121, %v4319
    %v4416 = vmul.f32 %v4126, %v4320
    %v4417 = vmul.f32 %v4385, %v4353
    %v4418 = vmul.f32 %v4386, %v4354
    %v4419 = vmul.f32 %v4387, %v4355
    %v4420 = vmul.f32 %v4388, %v4356
    %v4421 = vmul.f32 %v4389, %v4357
    %v4422 = vmul.f32 %v4390, %v4358
    %v4423 = vmul.f32 %v4391, %v4359
    %v4424 = vmul.f32 %v4392, %v4360
    %v4425 = vmul.f32 %v4393, %v4361
    %v4426 = vmul.f32 %v4394, %v4362
    %v4427 = vmul.f32 %v4395, %v4363
    %v4428 = vmul.f32 %v4396, %v4364
    %v4429 = vmul.f32 %v4397, %v4365
    %v4430 = vmul.f32 %v4398, %v4366
    %v4431 = vmul.f32 %v4399, %v4367
    %v4432 = vmul.f32 %v4400, %v4368
    %v4433 = vmul.f32 %v4401, %v4369
    %v4434 = vmul.f32 %v4402, %v4370
    %v4435 = vmul.f32 %v4403, %v4371
    %v4436 = vmul.f32 %v4404, %v4372
    %v4437 = vmul.f32 %v4405, %v4373
    %v4438 = vmul.f32 %v4406, %v4374
    %v4439 = vmul.f32 %v4407, %v4375
    %v4440 = vmul.f32 %v4408, %v4376
    %v4441 = vmul.f32 %v4409, %v4377
    %v4442 = vmul.f32 %v4410, %v4378
    %v4443 = vmul.f32 %v4411, %v4379
    %v4444 = vmul.f32 %v4412, %v4380
    %v4445 = vmul.f32 %v4413, %v4381
    %v4446 = vmul.f32 %v4414, %v4382
    %v4447 = vmul.f32 %v4415, %v4383
    %v4448 = vmul.f32 %v4416, %v4384
    %v4449 = vmul.f32 %v4417, %v713
    %v4450 = vmul.f32 %v4418, %v713
    %v4451 = vmul.f32 %v4419, %v713
    %v4452 = vmul.f32 %v4420, %v713
    %v4453 = vmul.f32 %v4421, %v713
    %v4454 = vmul.f32 %v4422, %v713
    %v4455 = vmul.f32 %v4423, %v713
    %v4456 = vmul.f32 %v4424, %v713
    %v4457 = vmul.f32 %v4425, %v713
    %v4458 = vmul.f32 %v4426, %v713
    %v4459 = vmul.f32 %v4427, %v713
    %v4460 = vmul.f32 %v4428, %v713
    %v4461 = vmul.f32 %v4429, %v713
    %v4462 = vmul.f32 %v4430, %v713
    %v4463 = vmul.f32 %v4431, %v713
    %v4464 = vmul.f32 %v4432, %v713
    %v4465 = vmul.f32 %v4433, %v713
    %v4466 = vmul.f32 %v4434, %v713
    %v4467 = vmul.f32 %v4435, %v713
    %v4468 = vmul.f32 %v4436, %v713
    %v4469 = vmul.f32 %v4437, %v713
    %v4470 = vmul.f32 %v4438, %v713
    %v4471 = vmul.f32 %v4439, %v713
    %v4472 = vmul.f32 %v4440, %v713
    %v4473 = vmul.f32 %v4441, %v713
    %v4474 = vmul.f32 %v4442, %v713
    %v4475 = vmul.f32 %v4443, %v713
    %v4476 = vmul.f32 %v4444, %v713
    %v4477 = vmul.f32 %v4445, %v713
    %v4478 = vmul.f32 %v4446, %v713
    %v4479 = vmul.f32 %v4447, %v713
    %v4480 = vmul.f32 %v4448, %v713
    %4481 = vadd.xlane.f32.xlu0 %v4449
    %v4482 = vpop.xlane.xlu0 %4481
    %4483 = vadd.xlane.f32.xlu0 %v4450
    %v4484 = vpop.xlane.xlu0 %4483
    %4485 = vadd.xlane.f32.xlu0 %v4451
    %v4486 = vpop.xlane.xlu0 %4485
    %4487 = vadd.xlane.f32.xlu0 %v4452
    %v4488 = vpop.xlane.xlu0 %4487
    %4489 = vadd.xlane.f32.xlu0 %v4453
    %v4490 = vpop.xlane.xlu0 %4489
    %4491 = vadd.xlane.f32.xlu0 %v4454
    %v4492 = vpop.xlane.xlu0 %4491
    %4493 = vadd.xlane.f32.xlu0 %v4455
    %v4494 = vpop.xlane.xlu0 %4493
    %4495 = vadd.xlane.f32.xlu0 %v4456
    %v4496 = vpop.xlane.xlu0 %4495
    %4497 = vadd.xlane.f32.xlu0 %v4457
    %v4498 = vpop.xlane.xlu0 %4497
    %4499 = vadd.xlane.f32.xlu0 %v4458
    %v4500 = vpop.xlane.xlu0 %4499
    %4501 = vadd.xlane.f32.xlu0 %v4459
    %v4502 = vpop.xlane.xlu0 %4501
    %4503 = vadd.xlane.f32.xlu0 %v4460
    %v4504 = vpop.xlane.xlu0 %4503
    %4505 = vadd.xlane.f32.xlu0 %v4461
    %v4506 = vpop.xlane.xlu0 %4505
    %4507 = vadd.xlane.f32.xlu0 %v4462
    %v4508 = vpop.xlane.xlu0 %4507
    %4509 = vadd.xlane.f32.xlu0 %v4463
    %v4510 = vpop.xlane.xlu0 %4509
    %4511 = vadd.xlane.f32.xlu0 %v4464
    %v4512 = vpop.xlane.xlu0 %4511
    %4513 = vadd.xlane.f32.xlu0 %v4465
    %v4514 = vpop.xlane.xlu0 %4513
    %4515 = vadd.xlane.f32.xlu0 %v4466
    %v4516 = vpop.xlane.xlu0 %4515
    %4517 = vadd.xlane.f32.xlu0 %v4467
    %v4518 = vpop.xlane.xlu0 %4517
    %4519 = vadd.xlane.f32.xlu0 %v4468
    %v4520 = vpop.xlane.xlu0 %4519
    %4521 = vadd.xlane.f32.xlu0 %v4469
    %v4522 = vpop.xlane.xlu0 %4521
    %4523 = vadd.xlane.f32.xlu0 %v4470
    %v4524 = vpop.xlane.xlu0 %4523
    %4525 = vadd.xlane.f32.xlu0 %v4471
    %v4526 = vpop.xlane.xlu0 %4525
    %4527 = vadd.xlane.f32.xlu0 %v4472
    %v4528 = vpop.xlane.xlu0 %4527
    %4529 = vadd.xlane.f32.xlu0 %v4473
    %v4530 = vpop.xlane.xlu0 %4529
    %4531 = vadd.xlane.f32.xlu0 %v4474
    %v4532 = vpop.xlane.xlu0 %4531
    %4533 = vadd.xlane.f32.xlu0 %v4475
    %v4534 = vpop.xlane.xlu0 %4533
    %4535 = vadd.xlane.f32.xlu0 %v4476
    %v4536 = vpop.xlane.xlu0 %4535
    %4537 = vadd.xlane.f32.xlu0 %v4477
    %v4538 = vpop.xlane.xlu0 %4537
    %4539 = vadd.xlane.f32.xlu0 %v4478
    %v4540 = vpop.xlane.xlu0 %4539
    %4541 = vadd.xlane.f32.xlu0 %v4479
    %v4542 = vpop.xlane.xlu0 %4541
    %4543 = vadd.xlane.f32.xlu0 %v4480
    %v4544 = vpop.xlane.xlu0 %4543
    %v4545 = vadd.f32 %v4482, %v811
    %v4546 = vadd.f32 %v4484, %v811
    %v4547 = vadd.f32 %v4486, %v811
    %v4548 = vadd.f32 %v4488, %v811
    %v4549 = vadd.f32 %v4490, %v811
    %v4550 = vadd.f32 %v4492, %v811
    %v4551 = vadd.f32 %v4494, %v811
    %v4552 = vadd.f32 %v4496, %v811
    %v4553 = vadd.f32 %v4498, %v811
    %v4554 = vadd.f32 %v4500, %v811
    %v4555 = vadd.f32 %v4502, %v811
    %v4556 = vadd.f32 %v4504, %v811
    %v4557 = vadd.f32 %v4506, %v811
    %v4558 = vadd.f32 %v4508, %v811
    %v4559 = vadd.f32 %v4510, %v811
    %v4560 = vadd.f32 %v4512, %v811
    %v4561 = vadd.f32 %v4514, %v811
    %v4562 = vadd.f32 %v4516, %v811
    %v4563 = vadd.f32 %v4518, %v811
    %v4564 = vadd.f32 %v4520, %v811
    %v4565 = vadd.f32 %v4522, %v811
    %v4566 = vadd.f32 %v4524, %v811
    %v4567 = vadd.f32 %v4526, %v811
    %v4568 = vadd.f32 %v4528, %v811
    %v4569 = vadd.f32 %v4530, %v811
    %v4570 = vadd.f32 %v4532, %v811
    %v4571 = vadd.f32 %v4534, %v811
    %v4572 = vadd.f32 %v4536, %v811
    %v4573 = vadd.f32 %v4538, %v811
    %v4574 = vadd.f32 %v4540, %v811
    %v4575 = vadd.f32 %v4542, %v811
    %v4576 = vadd.f32 %v4544, %v811
    %v4609 = vlaneseq
    %v4610 = vshrl.u32 %v4609, 7
    %v4611 = vsub.s32 0, %v4610
    %v4612 = vrot.slane %v4545, %v4611
    %v4613 = vlaneseq
    %v4614 = vshrl.u32 %v4613, 7
    %v4615 = vsub.s32 1, %v4614
    %v4616 = vrot.slane %v4545, %v4615
    %v4617 = vlaneseq
    %v4618 = vshrl.u32 %v4617, 7
    %v4619 = vsub.s32 2, %v4618
    %v4620 = vrot.slane %v4545, %v4619
    %v4621 = vlaneseq
    %v4622 = vshrl.u32 %v4621, 7
    %v4623 = vsub.s32 3, %v4622
    %v4624 = vrot.slane %v4545, %v4623
    %v4625 = vlaneseq
    %v4626 = vshrl.u32 %v4625, 7
    %v4627 = vsub.s32 4, %v4626
    %v4628 = vrot.slane %v4545, %v4627
    %v4629 = vlaneseq
    %v4630 = vshrl.u32 %v4629, 7
    %v4631 = vsub.s32 5, %v4630
    %v4632 = vrot.slane %v4545, %v4631
    %v4633 = vlaneseq
    %v4634 = vshrl.u32 %v4633, 7
    %v4635 = vsub.s32 6, %v4634
    %v4636 = vrot.slane %v4545, %v4635
    %v4637 = vlaneseq
    %v4638 = vshrl.u32 %v4637, 7
    %v4639 = vsub.s32 7, %v4638
    %v4640 = vrot.slane %v4545, %v4639
    %v4641 = vlaneseq
    %v4642 = vshrl.u32 %v4641, 7
    %v4643 = vsub.s32 0, %v4642
    %v4644 = vrot.slane %v4546, %v4643
    %v4645 = vlaneseq
    %v4646 = vshrl.u32 %v4645, 7
    %v4647 = vsub.s32 1, %v4646
    %v4648 = vrot.slane %v4546, %v4647
    %v4649 = vlaneseq
    %v4650 = vshrl.u32 %v4649, 7
    %v4651 = vsub.s32 2, %v4650
    %v4652 = vrot.slane %v4546, %v4651
    %v4653 = vlaneseq
    %v4654 = vshrl.u32 %v4653, 7
    %v4655 = vsub.s32 3, %v4654
    %v4656 = vrot.slane %v4546, %v4655
    %v4657 = vlaneseq
    %v4658 = vshrl.u32 %v4657, 7
    %v4659 = vsub.s32 4, %v4658
    %v4660 = vrot.slane %v4546, %v4659
    %v4661 = vlaneseq
    %v4662 = vshrl.u32 %v4661, 7
    %v4663 = vsub.s32 5, %v4662
    %v4664 = vrot.slane %v4546, %v4663
    %v4665 = vlaneseq
    %v4666 = vshrl.u32 %v4665, 7
    %v4667 = vsub.s32 6, %v4666
    %v4668 = vrot.slane %v4546, %v4667
    %v4669 = vlaneseq
    %v4670 = vshrl.u32 %v4669, 7
    %v4671 = vsub.s32 7, %v4670
    %v4672 = vrot.slane %v4546, %v4671
    %v4673 = vlaneseq
    %v4674 = vshrl.u32 %v4673, 7
    %v4675 = vsub.s32 0, %v4674
    %v4676 = vrot.slane %v4547, %v4675
    %v4677 = vlaneseq
    %v4678 = vshrl.u32 %v4677, 7
    %v4679 = vsub.s32 1, %v4678
    %v4680 = vrot.slane %v4547, %v4679
    %v4681 = vlaneseq
    %v4682 = vshrl.u32 %v4681, 7
    %v4683 = vsub.s32 2, %v4682
    %v4684 = vrot.slane %v4547, %v4683
    %v4685 = vlaneseq
    %v4686 = vshrl.u32 %v4685, 7
    %v4687 = vsub.s32 3, %v4686
    %v4688 = vrot.slane %v4547, %v4687
    %v4689 = vlaneseq
    %v4690 = vshrl.u32 %v4689, 7
    %v4691 = vsub.s32 4, %v4690
    %v4692 = vrot.slane %v4547, %v4691
    %v4693 = vlaneseq
    %v4694 = vshrl.u32 %v4693, 7
    %v4695 = vsub.s32 5, %v4694
    %v4696 = vrot.slane %v4547, %v4695
    %v4697 = vlaneseq
    %v4698 = vshrl.u32 %v4697, 7
    %v4699 = vsub.s32 6, %v4698
    %v4700 = vrot.slane %v4547, %v4699
    %v4701 = vlaneseq
    %v4702 = vshrl.u32 %v4701, 7
    %v4703 = vsub.s32 7, %v4702
    %v4704 = vrot.slane %v4547, %v4703
    %v4705 = vlaneseq
    %v4706 = vshrl.u32 %v4705, 7
    %v4707 = vsub.s32 0, %v4706
    %v4708 = vrot.slane %v4548, %v4707
    %v4709 = vlaneseq
    %v4710 = vshrl.u32 %v4709, 7
    %v4711 = vsub.s32 1, %v4710
    %v4712 = vrot.slane %v4548, %v4711
    %v4713 = vlaneseq
    %v4714 = vshrl.u32 %v4713, 7
    %v4715 = vsub.s32 2, %v4714
    %v4716 = vrot.slane %v4548, %v4715
    %v4717 = vlaneseq
    %v4718 = vshrl.u32 %v4717, 7
    %v4719 = vsub.s32 3, %v4718
    %v4720 = vrot.slane %v4548, %v4719
    %v4721 = vlaneseq
    %v4722 = vshrl.u32 %v4721, 7
    %v4723 = vsub.s32 4, %v4722
    %v4724 = vrot.slane %v4548, %v4723
    %v4725 = vlaneseq
    %v4726 = vshrl.u32 %v4725, 7
    %v4727 = vsub.s32 5, %v4726
    %v4728 = vrot.slane %v4548, %v4727
    %v4729 = vlaneseq
    %v4730 = vshrl.u32 %v4729, 7
    %v4731 = vsub.s32 6, %v4730
    %v4732 = vrot.slane %v4548, %v4731
    %v4733 = vlaneseq
    %v4734 = vshrl.u32 %v4733, 7
    %v4735 = vsub.s32 7, %v4734
    %v4736 = vrot.slane %v4548, %v4735
    %v4737 = vlaneseq
    %v4738 = vshrl.u32 %v4737, 7
    %v4739 = vsub.s32 0, %v4738
    %v4740 = vrot.slane %v4549, %v4739
    %v4741 = vlaneseq
    %v4742 = vshrl.u32 %v4741, 7
    %v4743 = vsub.s32 1, %v4742
    %v4744 = vrot.slane %v4549, %v4743
    %v4745 = vlaneseq
    %v4746 = vshrl.u32 %v4745, 7
    %v4747 = vsub.s32 2, %v4746
    %v4748 = vrot.slane %v4549, %v4747
    %v4749 = vlaneseq
    %v4750 = vshrl.u32 %v4749, 7
    %v4751 = vsub.s32 3, %v4750
    %v4752 = vrot.slane %v4549, %v4751
    %v4753 = vlaneseq
    %v4754 = vshrl.u32 %v4753, 7
    %v4755 = vsub.s32 4, %v4754
    %v4756 = vrot.slane %v4549, %v4755
    %v4757 = vlaneseq
    %v4758 = vshrl.u32 %v4757, 7
    %v4759 = vsub.s32 5, %v4758
    %v4760 = vrot.slane %v4549, %v4759
    %v4761 = vlaneseq
    %v4762 = vshrl.u32 %v4761, 7
    %v4763 = vsub.s32 6, %v4762
    %v4764 = vrot.slane %v4549, %v4763
    %v4765 = vlaneseq
    %v4766 = vshrl.u32 %v4765, 7
    %v4767 = vsub.s32 7, %v4766
    %v4768 = vrot.slane %v4549, %v4767
    %v4769 = vlaneseq
    %v4770 = vshrl.u32 %v4769, 7
    %v4771 = vsub.s32 0, %v4770
    %v4772 = vrot.slane %v4550, %v4771
    %v4773 = vlaneseq
    %v4774 = vshrl.u32 %v4773, 7
    %v4775 = vsub.s32 1, %v4774
    %v4776 = vrot.slane %v4550, %v4775
    %v4777 = vlaneseq
    %v4778 = vshrl.u32 %v4777, 7
    %v4779 = vsub.s32 2, %v4778
    %v4780 = vrot.slane %v4550, %v4779
    %v4781 = vlaneseq
    %v4782 = vshrl.u32 %v4781, 7
    %v4783 = vsub.s32 3, %v4782
    %v4784 = vrot.slane %v4550, %v4783
    %v4785 = vlaneseq
    %v4786 = vshrl.u32 %v4785, 7
    %v4787 = vsub.s32 4, %v4786
    %v4788 = vrot.slane %v4550, %v4787
    %v4789 = vlaneseq
    %v4790 = vshrl.u32 %v4789, 7
    %v4791 = vsub.s32 5, %v4790
    %v4792 = vrot.slane %v4550, %v4791
    %v4793 = vlaneseq
    %v4794 = vshrl.u32 %v4793, 7
    %v4795 = vsub.s32 6, %v4794
    %v4796 = vrot.slane %v4550, %v4795
    %v4797 = vlaneseq
    %v4798 = vshrl.u32 %v4797, 7
    %v4799 = vsub.s32 7, %v4798
    %v4800 = vrot.slane %v4550, %v4799
    %v4801 = vlaneseq
    %v4802 = vshrl.u32 %v4801, 7
    %v4803 = vsub.s32 0, %v4802
    %v4804 = vrot.slane %v4551, %v4803
    %v4805 = vlaneseq
    %v4806 = vshrl.u32 %v4805, 7
    %v4807 = vsub.s32 1, %v4806
    %v4808 = vrot.slane %v4551, %v4807
    %v4809 = vlaneseq
    %v4810 = vshrl.u32 %v4809, 7
    %v4811 = vsub.s32 2, %v4810
    %v4812 = vrot.slane %v4551, %v4811
    %v4813 = vlaneseq
    %v4814 = vshrl.u32 %v4813, 7
    %v4815 = vsub.s32 3, %v4814
    %v4816 = vrot.slane %v4551, %v4815
    %v4817 = vlaneseq
    %v4818 = vshrl.u32 %v4817, 7
    %v4819 = vsub.s32 4, %v4818
    %v4820 = vrot.slane %v4551, %v4819
    %v4821 = vlaneseq
    %v4822 = vshrl.u32 %v4821, 7
    %v4823 = vsub.s32 5, %v4822
    %v4824 = vrot.slane %v4551, %v4823
    %v4825 = vlaneseq
    %v4826 = vshrl.u32 %v4825, 7
    %v4827 = vsub.s32 6, %v4826
    %v4828 = vrot.slane %v4551, %v4827
    %v4829 = vlaneseq
    %v4830 = vshrl.u32 %v4829, 7
    %v4831 = vsub.s32 7, %v4830
    %v4832 = vrot.slane %v4551, %v4831
    %v4833 = vlaneseq
    %v4834 = vshrl.u32 %v4833, 7
    %v4835 = vsub.s32 0, %v4834
    %v4836 = vrot.slane %v4552, %v4835
    %v4837 = vlaneseq
    %v4838 = vshrl.u32 %v4837, 7
    %v4839 = vsub.s32 1, %v4838
    %v4840 = vrot.slane %v4552, %v4839
    %v4841 = vlaneseq
    %v4842 = vshrl.u32 %v4841, 7
    %v4843 = vsub.s32 2, %v4842
    %v4844 = vrot.slane %v4552, %v4843
    %v4845 = vlaneseq
    %v4846 = vshrl.u32 %v4845, 7
    %v4847 = vsub.s32 3, %v4846
    %v4848 = vrot.slane %v4552, %v4847
    %v4849 = vlaneseq
    %v4850 = vshrl.u32 %v4849, 7
    %v4851 = vsub.s32 4, %v4850
    %v4852 = vrot.slane %v4552, %v4851
    %v4853 = vlaneseq
    %v4854 = vshrl.u32 %v4853, 7
    %v4855 = vsub.s32 5, %v4854
    %v4856 = vrot.slane %v4552, %v4855
    %v4857 = vlaneseq
    %v4858 = vshrl.u32 %v4857, 7
    %v4859 = vsub.s32 6, %v4858
    %v4860 = vrot.slane %v4552, %v4859
    %v4861 = vlaneseq
    %v4862 = vshrl.u32 %v4861, 7
    %v4863 = vsub.s32 7, %v4862
    %v4864 = vrot.slane %v4552, %v4863
    %v4865 = vlaneseq
    %v4866 = vshrl.u32 %v4865, 7
    %v4867 = vsub.s32 0, %v4866
    %v4868 = vrot.slane %v4553, %v4867
    %v4869 = vlaneseq
    %v4870 = vshrl.u32 %v4869, 7
    %v4871 = vsub.s32 1, %v4870
    %v4872 = vrot.slane %v4553, %v4871
    %v4873 = vlaneseq
    %v4874 = vshrl.u32 %v4873, 7
    %v4875 = vsub.s32 2, %v4874
    %v4876 = vrot.slane %v4553, %v4875
    %v4877 = vlaneseq
    %v4878 = vshrl.u32 %v4877, 7
    %v4879 = vsub.s32 3, %v4878
    %v4880 = vrot.slane %v4553, %v4879
    %v4881 = vlaneseq
    %v4882 = vshrl.u32 %v4881, 7
    %v4883 = vsub.s32 4, %v4882
    %v4884 = vrot.slane %v4553, %v4883
    %v4885 = vlaneseq
    %v4886 = vshrl.u32 %v4885, 7
    %v4887 = vsub.s32 5, %v4886
    %v4888 = vrot.slane %v4553, %v4887
    %v4889 = vlaneseq
    %v4890 = vshrl.u32 %v4889, 7
    %v4891 = vsub.s32 6, %v4890
    %v4892 = vrot.slane %v4553, %v4891
    %v4893 = vlaneseq
    %v4894 = vshrl.u32 %v4893, 7
    %v4895 = vsub.s32 7, %v4894
    %v4896 = vrot.slane %v4553, %v4895
    %v4897 = vlaneseq
    %v4898 = vshrl.u32 %v4897, 7
    %v4899 = vsub.s32 0, %v4898
    %v4900 = vrot.slane %v4554, %v4899
    %v4901 = vlaneseq
    %v4902 = vshrl.u32 %v4901, 7
    %v4903 = vsub.s32 1, %v4902
    %v4904 = vrot.slane %v4554, %v4903
    %v4905 = vlaneseq
    %v4906 = vshrl.u32 %v4905, 7
    %v4907 = vsub.s32 2, %v4906
    %v4908 = vrot.slane %v4554, %v4907
    %v4909 = vlaneseq
    %v4910 = vshrl.u32 %v4909, 7
    %v4911 = vsub.s32 3, %v4910
    %v4912 = vrot.slane %v4554, %v4911
    %v4913 = vlaneseq
    %v4914 = vshrl.u32 %v4913, 7
    %v4915 = vsub.s32 4, %v4914
    %v4916 = vrot.slane %v4554, %v4915
    %v4917 = vlaneseq
    %v4918 = vshrl.u32 %v4917, 7
    %v4919 = vsub.s32 5, %v4918
    %v4920 = vrot.slane %v4554, %v4919
    %v4921 = vlaneseq
    %v4922 = vshrl.u32 %v4921, 7
    %v4923 = vsub.s32 6, %v4922
    %v4924 = vrot.slane %v4554, %v4923
    %v4925 = vlaneseq
    %v4926 = vshrl.u32 %v4925, 7
    %v4927 = vsub.s32 7, %v4926
    %v4928 = vrot.slane %v4554, %v4927
    %v4929 = vlaneseq
    %v4930 = vshrl.u32 %v4929, 7
    %v4931 = vsub.s32 0, %v4930
    %v4932 = vrot.slane %v4555, %v4931
    %v4933 = vlaneseq
    %v4934 = vshrl.u32 %v4933, 7
    %v4935 = vsub.s32 1, %v4934
    %v4936 = vrot.slane %v4555, %v4935
    %v4937 = vlaneseq
    %v4938 = vshrl.u32 %v4937, 7
    %v4939 = vsub.s32 2, %v4938
    %v4940 = vrot.slane %v4555, %v4939
    %v4941 = vlaneseq
    %v4942 = vshrl.u32 %v4941, 7
    %v4943 = vsub.s32 3, %v4942
    %v4944 = vrot.slane %v4555, %v4943
    %v4945 = vlaneseq
    %v4946 = vshrl.u32 %v4945, 7
    %v4947 = vsub.s32 4, %v4946
    %v4948 = vrot.slane %v4555, %v4947
    %v4949 = vlaneseq
    %v4950 = vshrl.u32 %v4949, 7
    %v4951 = vsub.s32 5, %v4950
    %v4952 = vrot.slane %v4555, %v4951
    %v4953 = vlaneseq
    %v4954 = vshrl.u32 %v4953, 7
    %v4955 = vsub.s32 6, %v4954
    %v4956 = vrot.slane %v4555, %v4955
    %v4957 = vlaneseq
    %v4958 = vshrl.u32 %v4957, 7
    %v4959 = vsub.s32 7, %v4958
    %v4960 = vrot.slane %v4555, %v4959
    %v4961 = vlaneseq
    %v4962 = vshrl.u32 %v4961, 7
    %v4963 = vsub.s32 0, %v4962
    %v4964 = vrot.slane %v4556, %v4963
    %v4965 = vlaneseq
    %v4966 = vshrl.u32 %v4965, 7
    %v4967 = vsub.s32 1, %v4966
    %v4968 = vrot.slane %v4556, %v4967
    %v4969 = vlaneseq
    %v4970 = vshrl.u32 %v4969, 7
    %v4971 = vsub.s32 2, %v4970
    %v4972 = vrot.slane %v4556, %v4971
    %v4973 = vlaneseq
    %v4974 = vshrl.u32 %v4973, 7
    %v4975 = vsub.s32 3, %v4974
    %v4976 = vrot.slane %v4556, %v4975
    %v4977 = vlaneseq
    %v4978 = vshrl.u32 %v4977, 7
    %v4979 = vsub.s32 4, %v4978
    %v4980 = vrot.slane %v4556, %v4979
    %v4981 = vlaneseq
    %v4982 = vshrl.u32 %v4981, 7
    %v4983 = vsub.s32 5, %v4982
    %v4984 = vrot.slane %v4556, %v4983
    %v4985 = vlaneseq
    %v4986 = vshrl.u32 %v4985, 7
    %v4987 = vsub.s32 6, %v4986
    %v4988 = vrot.slane %v4556, %v4987
    %v4989 = vlaneseq
    %v4990 = vshrl.u32 %v4989, 7
    %v4991 = vsub.s32 7, %v4990
    %v4992 = vrot.slane %v4556, %v4991
    %v4993 = vlaneseq
    %v4994 = vshrl.u32 %v4993, 7
    %v4995 = vsub.s32 0, %v4994
    %v4996 = vrot.slane %v4557, %v4995
    %v4997 = vlaneseq
    %v4998 = vshrl.u32 %v4997, 7
    %v4999 = vsub.s32 1, %v4998
    %v5000 = vrot.slane %v4557, %v4999
    %v5001 = vlaneseq
    %v5002 = vshrl.u32 %v5001, 7
    %v5003 = vsub.s32 2, %v5002
    %v5004 = vrot.slane %v4557, %v5003
    %v5005 = vlaneseq
    %v5006 = vshrl.u32 %v5005, 7
    %v5007 = vsub.s32 3, %v5006
    %v5008 = vrot.slane %v4557, %v5007
    %v5009 = vlaneseq
    %v5010 = vshrl.u32 %v5009, 7
    %v5011 = vsub.s32 4, %v5010
    %v5012 = vrot.slane %v4557, %v5011
    %v5013 = vlaneseq
    %v5014 = vshrl.u32 %v5013, 7
    %v5015 = vsub.s32 5, %v5014
    %v5016 = vrot.slane %v4557, %v5015
    %v5017 = vlaneseq
    %v5018 = vshrl.u32 %v5017, 7
    %v5019 = vsub.s32 6, %v5018
    %v5020 = vrot.slane %v4557, %v5019
    %v5021 = vlaneseq
    %v5022 = vshrl.u32 %v5021, 7
    %v5023 = vsub.s32 7, %v5022
    %v5024 = vrot.slane %v4557, %v5023
    %v5025 = vlaneseq
    %v5026 = vshrl.u32 %v5025, 7
    %v5027 = vsub.s32 0, %v5026
    %v5028 = vrot.slane %v4558, %v5027
    %v5029 = vlaneseq
    %v5030 = vshrl.u32 %v5029, 7
    %v5031 = vsub.s32 1, %v5030
    %v5032 = vrot.slane %v4558, %v5031
    %v5033 = vlaneseq
    %v5034 = vshrl.u32 %v5033, 7
    %v5035 = vsub.s32 2, %v5034
    %v5036 = vrot.slane %v4558, %v5035
    %v5037 = vlaneseq
    %v5038 = vshrl.u32 %v5037, 7
    %v5039 = vsub.s32 3, %v5038
    %v5040 = vrot.slane %v4558, %v5039
    %v5041 = vlaneseq
    %v5042 = vshrl.u32 %v5041, 7
    %v5043 = vsub.s32 4, %v5042
    %v5044 = vrot.slane %v4558, %v5043
    %v5045 = vlaneseq
    %v5046 = vshrl.u32 %v5045, 7
    %v5047 = vsub.s32 5, %v5046
    %v5048 = vrot.slane %v4558, %v5047
    %v5049 = vlaneseq
    %v5050 = vshrl.u32 %v5049, 7
    %v5051 = vsub.s32 6, %v5050
    %v5052 = vrot.slane %v4558, %v5051
    %v5053 = vlaneseq
    %v5054 = vshrl.u32 %v5053, 7
    %v5055 = vsub.s32 7, %v5054
    %v5056 = vrot.slane %v4558, %v5055
    %v5057 = vlaneseq
    %v5058 = vshrl.u32 %v5057, 7
    %v5059 = vsub.s32 0, %v5058
    %v5060 = vrot.slane %v4559, %v5059
    %v5061 = vlaneseq
    %v5062 = vshrl.u32 %v5061, 7
    %v5063 = vsub.s32 1, %v5062
    %v5064 = vrot.slane %v4559, %v5063
    %v5065 = vlaneseq
    %v5066 = vshrl.u32 %v5065, 7
    %v5067 = vsub.s32 2, %v5066
    %v5068 = vrot.slane %v4559, %v5067
    %v5069 = vlaneseq
    %v5070 = vshrl.u32 %v5069, 7
    %v5071 = vsub.s32 3, %v5070
    %v5072 = vrot.slane %v4559, %v5071
    %v5073 = vlaneseq
    %v5074 = vshrl.u32 %v5073, 7
    %v5075 = vsub.s32 4, %v5074
    %v5076 = vrot.slane %v4559, %v5075
    %v5077 = vlaneseq
    %v5078 = vshrl.u32 %v5077, 7
    %v5079 = vsub.s32 5, %v5078
    %v5080 = vrot.slane %v4559, %v5079
    %v5081 = vlaneseq
    %v5082 = vshrl.u32 %v5081, 7
    %v5083 = vsub.s32 6, %v5082
    %v5084 = vrot.slane %v4559, %v5083
    %v5085 = vlaneseq
    %v5086 = vshrl.u32 %v5085, 7
    %v5087 = vsub.s32 7, %v5086
    %v5088 = vrot.slane %v4559, %v5087
    %v5089 = vlaneseq
    %v5090 = vshrl.u32 %v5089, 7
    %v5091 = vsub.s32 0, %v5090
    %v5092 = vrot.slane %v4560, %v5091
    %v5093 = vlaneseq
    %v5094 = vshrl.u32 %v5093, 7
    %v5095 = vsub.s32 1, %v5094
    %v5096 = vrot.slane %v4560, %v5095
    %v5097 = vlaneseq
    %v5098 = vshrl.u32 %v5097, 7
    %v5099 = vsub.s32 2, %v5098
    %v5100 = vrot.slane %v4560, %v5099
    %v5101 = vlaneseq
    %v5102 = vshrl.u32 %v5101, 7
    %v5103 = vsub.s32 3, %v5102
    %v5104 = vrot.slane %v4560, %v5103
    %v5105 = vlaneseq
    %v5106 = vshrl.u32 %v5105, 7
    %v5107 = vsub.s32 4, %v5106
    %v5108 = vrot.slane %v4560, %v5107
    %v5109 = vlaneseq
    %v5110 = vshrl.u32 %v5109, 7
    %v5111 = vsub.s32 5, %v5110
    %v5112 = vrot.slane %v4560, %v5111
    %v5113 = vlaneseq
    %v5114 = vshrl.u32 %v5113, 7
    %v5115 = vsub.s32 6, %v5114
    %v5116 = vrot.slane %v4560, %v5115
    %v5117 = vlaneseq
    %v5118 = vshrl.u32 %v5117, 7
    %v5119 = vsub.s32 7, %v5118
    %v5120 = vrot.slane %v4560, %v5119
    %v5121 = vlaneseq
    %v5122 = vshrl.u32 %v5121, 7
    %v5123 = vsub.s32 0, %v5122
    %v5124 = vrot.slane %v4561, %v5123
    %v5125 = vlaneseq
    %v5126 = vshrl.u32 %v5125, 7
    %v5127 = vsub.s32 1, %v5126
    %v5128 = vrot.slane %v4561, %v5127
    %v5129 = vlaneseq
    %v5130 = vshrl.u32 %v5129, 7
    %v5131 = vsub.s32 2, %v5130
    %v5132 = vrot.slane %v4561, %v5131
    %v5133 = vlaneseq
    %v5134 = vshrl.u32 %v5133, 7
    %v5135 = vsub.s32 3, %v5134
    %v5136 = vrot.slane %v4561, %v5135
    %v5137 = vlaneseq
    %v5138 = vshrl.u32 %v5137, 7
    %v5139 = vsub.s32 4, %v5138
    %v5140 = vrot.slane %v4561, %v5139
    %v5141 = vlaneseq
    %v5142 = vshrl.u32 %v5141, 7
    %v5143 = vsub.s32 5, %v5142
    %v5144 = vrot.slane %v4561, %v5143
    %v5145 = vlaneseq
    %v5146 = vshrl.u32 %v5145, 7
    %v5147 = vsub.s32 6, %v5146
    %v5148 = vrot.slane %v4561, %v5147
    %v5149 = vlaneseq
    %v5150 = vshrl.u32 %v5149, 7
    %v5151 = vsub.s32 7, %v5150
    %v5152 = vrot.slane %v4561, %v5151
    %v5153 = vlaneseq
    %v5154 = vshrl.u32 %v5153, 7
    %v5155 = vsub.s32 0, %v5154
    %v5156 = vrot.slane %v4562, %v5155
    %v5157 = vlaneseq
    %v5158 = vshrl.u32 %v5157, 7
    %v5159 = vsub.s32 1, %v5158
    %v5160 = vrot.slane %v4562, %v5159
    %v5161 = vlaneseq
    %v5162 = vshrl.u32 %v5161, 7
    %v5163 = vsub.s32 2, %v5162
    %v5164 = vrot.slane %v4562, %v5163
    %v5165 = vlaneseq
    %v5166 = vshrl.u32 %v5165, 7
    %v5167 = vsub.s32 3, %v5166
    %v5168 = vrot.slane %v4562, %v5167
    %v5169 = vlaneseq
    %v5170 = vshrl.u32 %v5169, 7
    %v5171 = vsub.s32 4, %v5170
    %v5172 = vrot.slane %v4562, %v5171
    %v5173 = vlaneseq
    %v5174 = vshrl.u32 %v5173, 7
    %v5175 = vsub.s32 5, %v5174
    %v5176 = vrot.slane %v4562, %v5175
    %v5177 = vlaneseq
    %v5178 = vshrl.u32 %v5177, 7
    %v5179 = vsub.s32 6, %v5178
    %v5180 = vrot.slane %v4562, %v5179
    %v5181 = vlaneseq
    %v5182 = vshrl.u32 %v5181, 7
    %v5183 = vsub.s32 7, %v5182
    %v5184 = vrot.slane %v4562, %v5183
    %v5185 = vlaneseq
    %v5186 = vshrl.u32 %v5185, 7
    %v5187 = vsub.s32 0, %v5186
    %v5188 = vrot.slane %v4563, %v5187
    %v5189 = vlaneseq
    %v5190 = vshrl.u32 %v5189, 7
    %v5191 = vsub.s32 1, %v5190
    %v5192 = vrot.slane %v4563, %v5191
    %v5193 = vlaneseq
    %v5194 = vshrl.u32 %v5193, 7
    %v5195 = vsub.s32 2, %v5194
    %v5196 = vrot.slane %v4563, %v5195
    %v5197 = vlaneseq
    %v5198 = vshrl.u32 %v5197, 7
    %v5199 = vsub.s32 3, %v5198
    %v5200 = vrot.slane %v4563, %v5199
    %v5201 = vlaneseq
    %v5202 = vshrl.u32 %v5201, 7
    %v5203 = vsub.s32 4, %v5202
    %v5204 = vrot.slane %v4563, %v5203
    %v5205 = vlaneseq
    %v5206 = vshrl.u32 %v5205, 7
    %v5207 = vsub.s32 5, %v5206
    %v5208 = vrot.slane %v4563, %v5207
    %v5209 = vlaneseq
    %v5210 = vshrl.u32 %v5209, 7
    %v5211 = vsub.s32 6, %v5210
    %v5212 = vrot.slane %v4563, %v5211
    %v5213 = vlaneseq
    %v5214 = vshrl.u32 %v5213, 7
    %v5215 = vsub.s32 7, %v5214
    %v5216 = vrot.slane %v4563, %v5215
    %v5217 = vlaneseq
    %v5218 = vshrl.u32 %v5217, 7
    %v5219 = vsub.s32 0, %v5218
    %v5220 = vrot.slane %v4564, %v5219
    %v5221 = vlaneseq
    %v5222 = vshrl.u32 %v5221, 7
    %v5223 = vsub.s32 1, %v5222
    %v5224 = vrot.slane %v4564, %v5223
    %v5225 = vlaneseq
    %v5226 = vshrl.u32 %v5225, 7
    %v5227 = vsub.s32 2, %v5226
    %v5228 = vrot.slane %v4564, %v5227
    %v5229 = vlaneseq
    %v5230 = vshrl.u32 %v5229, 7
    %v5231 = vsub.s32 3, %v5230
    %v5232 = vrot.slane %v4564, %v5231
    %v5233 = vlaneseq
    %v5234 = vshrl.u32 %v5233, 7
    %v5235 = vsub.s32 4, %v5234
    %v5236 = vrot.slane %v4564, %v5235
    %v5237 = vlaneseq
    %v5238 = vshrl.u32 %v5237, 7
    %v5239 = vsub.s32 5, %v5238
    %v5240 = vrot.slane %v4564, %v5239
    %v5241 = vlaneseq
    %v5242 = vshrl.u32 %v5241, 7
    %v5243 = vsub.s32 6, %v5242
    %v5244 = vrot.slane %v4564, %v5243
    %v5245 = vlaneseq
    %v5246 = vshrl.u32 %v5245, 7
    %v5247 = vsub.s32 7, %v5246
    %v5248 = vrot.slane %v4564, %v5247
    %v5249 = vlaneseq
    %v5250 = vshrl.u32 %v5249, 7
    %v5251 = vsub.s32 0, %v5250
    %v5252 = vrot.slane %v4565, %v5251
    %v5253 = vlaneseq
    %v5254 = vshrl.u32 %v5253, 7
    %v5255 = vsub.s32 1, %v5254
    %v5256 = vrot.slane %v4565, %v5255
    %v5257 = vlaneseq
    %v5258 = vshrl.u32 %v5257, 7
    %v5259 = vsub.s32 2, %v5258
    %v5260 = vrot.slane %v4565, %v5259
    %v5261 = vlaneseq
    %v5262 = vshrl.u32 %v5261, 7
    %v5263 = vsub.s32 3, %v5262
    %v5264 = vrot.slane %v4565, %v5263
    %v5265 = vlaneseq
    %v5266 = vshrl.u32 %v5265, 7
    %v5267 = vsub.s32 4, %v5266
    %v5268 = vrot.slane %v4565, %v5267
    %v5269 = vlaneseq
    %v5270 = vshrl.u32 %v5269, 7
    %v5271 = vsub.s32 5, %v5270
    %v5272 = vrot.slane %v4565, %v5271
    %v5273 = vlaneseq
    %v5274 = vshrl.u32 %v5273, 7
    %v5275 = vsub.s32 6, %v5274
    %v5276 = vrot.slane %v4565, %v5275
    %v5277 = vlaneseq
    %v5278 = vshrl.u32 %v5277, 7
    %v5279 = vsub.s32 7, %v5278
    %v5280 = vrot.slane %v4565, %v5279
    %v5281 = vlaneseq
    %v5282 = vshrl.u32 %v5281, 7
    %v5283 = vsub.s32 0, %v5282
    %v5284 = vrot.slane %v4566, %v5283
    %v5285 = vlaneseq
    %v5286 = vshrl.u32 %v5285, 7
    %v5287 = vsub.s32 1, %v5286
    %v5288 = vrot.slane %v4566, %v5287
    %v5289 = vlaneseq
    %v5290 = vshrl.u32 %v5289, 7
    %v5291 = vsub.s32 2, %v5290
    %v5292 = vrot.slane %v4566, %v5291
    %v5293 = vlaneseq
    %v5294 = vshrl.u32 %v5293, 7
    %v5295 = vsub.s32 3, %v5294
    %v5296 = vrot.slane %v4566, %v5295
    %v5297 = vlaneseq
    %v5298 = vshrl.u32 %v5297, 7
    %v5299 = vsub.s32 4, %v5298
    %v5300 = vrot.slane %v4566, %v5299
    %v5301 = vlaneseq
    %v5302 = vshrl.u32 %v5301, 7
    %v5303 = vsub.s32 5, %v5302
    %v5304 = vrot.slane %v4566, %v5303
    %v5305 = vlaneseq
    %v5306 = vshrl.u32 %v5305, 7
    %v5307 = vsub.s32 6, %v5306
    %v5308 = vrot.slane %v4566, %v5307
    %v5309 = vlaneseq
    %v5310 = vshrl.u32 %v5309, 7
    %v5311 = vsub.s32 7, %v5310
    %v5312 = vrot.slane %v4566, %v5311
    %v5313 = vlaneseq
    %v5314 = vshrl.u32 %v5313, 7
    %v5315 = vsub.s32 0, %v5314
    %v5316 = vrot.slane %v4567, %v5315
    %v5317 = vlaneseq
    %v5318 = vshrl.u32 %v5317, 7
    %v5319 = vsub.s32 1, %v5318
    %v5320 = vrot.slane %v4567, %v5319
    %v5321 = vlaneseq
    %v5322 = vshrl.u32 %v5321, 7
    %v5323 = vsub.s32 2, %v5322
    %v5324 = vrot.slane %v4567, %v5323
    %v5325 = vlaneseq
    %v5326 = vshrl.u32 %v5325, 7
    %v5327 = vsub.s32 3, %v5326
    %v5328 = vrot.slane %v4567, %v5327
    %v5329 = vlaneseq
    %v5330 = vshrl.u32 %v5329, 7
    %v5331 = vsub.s32 4, %v5330
    %v5332 = vrot.slane %v4567, %v5331
    %v5333 = vlaneseq
    %v5334 = vshrl.u32 %v5333, 7
    %v5335 = vsub.s32 5, %v5334
    %v5336 = vrot.slane %v4567, %v5335
    %v5337 = vlaneseq
    %v5338 = vshrl.u32 %v5337, 7
    %v5339 = vsub.s32 6, %v5338
    %v5340 = vrot.slane %v4567, %v5339
    %v5341 = vlaneseq
    %v5342 = vshrl.u32 %v5341, 7
    %v5343 = vsub.s32 7, %v5342
    %v5344 = vrot.slane %v4567, %v5343
    %v5345 = vlaneseq
    %v5346 = vshrl.u32 %v5345, 7
    %v5347 = vsub.s32 0, %v5346
    %v5348 = vrot.slane %v4568, %v5347
    %v5349 = vlaneseq
    %v5350 = vshrl.u32 %v5349, 7
    %v5351 = vsub.s32 1, %v5350
    %v5352 = vrot.slane %v4568, %v5351
    %v5353 = vlaneseq
    %v5354 = vshrl.u32 %v5353, 7
    %v5355 = vsub.s32 2, %v5354
    %v5356 = vrot.slane %v4568, %v5355
    %v5357 = vlaneseq
    %v5358 = vshrl.u32 %v5357, 7
    %v5359 = vsub.s32 3, %v5358
    %v5360 = vrot.slane %v4568, %v5359
    %v5361 = vlaneseq
    %v5362 = vshrl.u32 %v5361, 7
    %v5363 = vsub.s32 4, %v5362
    %v5364 = vrot.slane %v4568, %v5363
    %v5365 = vlaneseq
    %v5366 = vshrl.u32 %v5365, 7
    %v5367 = vsub.s32 5, %v5366
    %v5368 = vrot.slane %v4568, %v5367
    %v5369 = vlaneseq
    %v5370 = vshrl.u32 %v5369, 7
    %v5371 = vsub.s32 6, %v5370
    %v5372 = vrot.slane %v4568, %v5371
    %v5373 = vlaneseq
    %v5374 = vshrl.u32 %v5373, 7
    %v5375 = vsub.s32 7, %v5374
    %v5376 = vrot.slane %v4568, %v5375
    %v5377 = vlaneseq
    %v5378 = vshrl.u32 %v5377, 7
    %v5379 = vsub.s32 0, %v5378
    %v5380 = vrot.slane %v4569, %v5379
    %v5381 = vlaneseq
    %v5382 = vshrl.u32 %v5381, 7
    %v5383 = vsub.s32 1, %v5382
    %v5384 = vrot.slane %v4569, %v5383
    %v5385 = vlaneseq
    %v5386 = vshrl.u32 %v5385, 7
    %v5387 = vsub.s32 2, %v5386
    %v5388 = vrot.slane %v4569, %v5387
    %v5389 = vlaneseq
    %v5390 = vshrl.u32 %v5389, 7
    %v5391 = vsub.s32 3, %v5390
    %v5392 = vrot.slane %v4569, %v5391
    %v5393 = vlaneseq
    %v5394 = vshrl.u32 %v5393, 7
    %v5395 = vsub.s32 4, %v5394
    %v5396 = vrot.slane %v4569, %v5395
    %v5397 = vlaneseq
    %v5398 = vshrl.u32 %v5397, 7
    %v5399 = vsub.s32 5, %v5398
    %v5400 = vrot.slane %v4569, %v5399
    %v5401 = vlaneseq
    %v5402 = vshrl.u32 %v5401, 7
    %v5403 = vsub.s32 6, %v5402
    %v5404 = vrot.slane %v4569, %v5403
    %v5405 = vlaneseq
    %v5406 = vshrl.u32 %v5405, 7
    %v5407 = vsub.s32 7, %v5406
    %v5408 = vrot.slane %v4569, %v5407
    %v5409 = vlaneseq
    %v5410 = vshrl.u32 %v5409, 7
    %v5411 = vsub.s32 0, %v5410
    %v5412 = vrot.slane %v4570, %v5411
    %v5413 = vlaneseq
    %v5414 = vshrl.u32 %v5413, 7
    %v5415 = vsub.s32 1, %v5414
    %v5416 = vrot.slane %v4570, %v5415
    %v5417 = vlaneseq
    %v5418 = vshrl.u32 %v5417, 7
    %v5419 = vsub.s32 2, %v5418
    %v5420 = vrot.slane %v4570, %v5419
    %v5421 = vlaneseq
    %v5422 = vshrl.u32 %v5421, 7
    %v5423 = vsub.s32 3, %v5422
    %v5424 = vrot.slane %v4570, %v5423
    %v5425 = vlaneseq
    %v5426 = vshrl.u32 %v5425, 7
    %v5427 = vsub.s32 4, %v5426
    %v5428 = vrot.slane %v4570, %v5427
    %v5429 = vlaneseq
    %v5430 = vshrl.u32 %v5429, 7
    %v5431 = vsub.s32 5, %v5430
    %v5432 = vrot.slane %v4570, %v5431
    %v5433 = vlaneseq
    %v5434 = vshrl.u32 %v5433, 7
    %v5435 = vsub.s32 6, %v5434
    %v5436 = vrot.slane %v4570, %v5435
    %v5437 = vlaneseq
    %v5438 = vshrl.u32 %v5437, 7
    %v5439 = vsub.s32 7, %v5438
    %v5440 = vrot.slane %v4570, %v5439
    %v5441 = vlaneseq
    %v5442 = vshrl.u32 %v5441, 7
    %v5443 = vsub.s32 0, %v5442
    %v5444 = vrot.slane %v4571, %v5443
    %v5445 = vlaneseq
    %v5446 = vshrl.u32 %v5445, 7
    %v5447 = vsub.s32 1, %v5446
    %v5448 = vrot.slane %v4571, %v5447
    %v5449 = vlaneseq
    %v5450 = vshrl.u32 %v5449, 7
    %v5451 = vsub.s32 2, %v5450
    %v5452 = vrot.slane %v4571, %v5451
    %v5453 = vlaneseq
    %v5454 = vshrl.u32 %v5453, 7
    %v5455 = vsub.s32 3, %v5454
    %v5456 = vrot.slane %v4571, %v5455
    %v5457 = vlaneseq
    %v5458 = vshrl.u32 %v5457, 7
    %v5459 = vsub.s32 4, %v5458
    %v5460 = vrot.slane %v4571, %v5459
    %v5461 = vlaneseq
    %v5462 = vshrl.u32 %v5461, 7
    %v5463 = vsub.s32 5, %v5462
    %v5464 = vrot.slane %v4571, %v5463
    %v5465 = vlaneseq
    %v5466 = vshrl.u32 %v5465, 7
    %v5467 = vsub.s32 6, %v5466
    %v5468 = vrot.slane %v4571, %v5467
    %v5469 = vlaneseq
    %v5470 = vshrl.u32 %v5469, 7
    %v5471 = vsub.s32 7, %v5470
    %v5472 = vrot.slane %v4571, %v5471
    %v5473 = vlaneseq
    %v5474 = vshrl.u32 %v5473, 7
    %v5475 = vsub.s32 0, %v5474
    %v5476 = vrot.slane %v4572, %v5475
    %v5477 = vlaneseq
    %v5478 = vshrl.u32 %v5477, 7
    %v5479 = vsub.s32 1, %v5478
    %v5480 = vrot.slane %v4572, %v5479
    %v5481 = vlaneseq
    %v5482 = vshrl.u32 %v5481, 7
    %v5483 = vsub.s32 2, %v5482
    %v5484 = vrot.slane %v4572, %v5483
    %v5485 = vlaneseq
    %v5486 = vshrl.u32 %v5485, 7
    %v5487 = vsub.s32 3, %v5486
    %v5488 = vrot.slane %v4572, %v5487
    %v5489 = vlaneseq
    %v5490 = vshrl.u32 %v5489, 7
    %v5491 = vsub.s32 4, %v5490
    %v5492 = vrot.slane %v4572, %v5491
    %v5493 = vlaneseq
    %v5494 = vshrl.u32 %v5493, 7
    %v5495 = vsub.s32 5, %v5494
    %v5496 = vrot.slane %v4572, %v5495
    %v5497 = vlaneseq
    %v5498 = vshrl.u32 %v5497, 7
    %v5499 = vsub.s32 6, %v5498
    %v5500 = vrot.slane %v4572, %v5499
    %v5501 = vlaneseq
    %v5502 = vshrl.u32 %v5501, 7
    %v5503 = vsub.s32 7, %v5502
    %v5504 = vrot.slane %v4572, %v5503
    %v5505 = vlaneseq
    %v5506 = vshrl.u32 %v5505, 7
    %v5507 = vsub.s32 0, %v5506
    %v5508 = vrot.slane %v4573, %v5507
    %v5509 = vlaneseq
    %v5510 = vshrl.u32 %v5509, 7
    %v5511 = vsub.s32 1, %v5510
    %v5512 = vrot.slane %v4573, %v5511
    %v5513 = vlaneseq
    %v5514 = vshrl.u32 %v5513, 7
    %v5515 = vsub.s32 2, %v5514
    %v5516 = vrot.slane %v4573, %v5515
    %v5517 = vlaneseq
    %v5518 = vshrl.u32 %v5517, 7
    %v5519 = vsub.s32 3, %v5518
    %v5520 = vrot.slane %v4573, %v5519
    %v5521 = vlaneseq
    %v5522 = vshrl.u32 %v5521, 7
    %v5523 = vsub.s32 4, %v5522
    %v5524 = vrot.slane %v4573, %v5523
    %v5525 = vlaneseq
    %v5526 = vshrl.u32 %v5525, 7
    %v5527 = vsub.s32 5, %v5526
    %v5528 = vrot.slane %v4573, %v5527
    %v5529 = vlaneseq
    %v5530 = vshrl.u32 %v5529, 7
    %v5531 = vsub.s32 6, %v5530
    %v5532 = vrot.slane %v4573, %v5531
    %v5533 = vlaneseq
    %v5534 = vshrl.u32 %v5533, 7
    %v5535 = vsub.s32 7, %v5534
    %v5536 = vrot.slane %v4573, %v5535
    %v5537 = vlaneseq
    %v5538 = vshrl.u32 %v5537, 7
    %v5539 = vsub.s32 0, %v5538
    %v5540 = vrot.slane %v4574, %v5539
    %v5541 = vlaneseq
    %v5542 = vshrl.u32 %v5541, 7
    %v5543 = vsub.s32 1, %v5542
    %v5544 = vrot.slane %v4574, %v5543
    %v5545 = vlaneseq
    %v5546 = vshrl.u32 %v5545, 7
    %v5547 = vsub.s32 2, %v5546
    %v5548 = vrot.slane %v4574, %v5547
    %v5549 = vlaneseq
    %v5550 = vshrl.u32 %v5549, 7
    %v5551 = vsub.s32 3, %v5550
    %v5552 = vrot.slane %v4574, %v5551
    %v5553 = vlaneseq
    %v5554 = vshrl.u32 %v5553, 7
    %v5555 = vsub.s32 4, %v5554
    %v5556 = vrot.slane %v4574, %v5555
    %v5557 = vlaneseq
    %v5558 = vshrl.u32 %v5557, 7
    %v5559 = vsub.s32 5, %v5558
    %v5560 = vrot.slane %v4574, %v5559
    %v5561 = vlaneseq
    %v5562 = vshrl.u32 %v5561, 7
    %v5563 = vsub.s32 6, %v5562
    %v5564 = vrot.slane %v4574, %v5563
    %v5565 = vlaneseq
    %v5566 = vshrl.u32 %v5565, 7
    %v5567 = vsub.s32 7, %v5566
    %v5568 = vrot.slane %v4574, %v5567
    %v5569 = vlaneseq
    %v5570 = vshrl.u32 %v5569, 7
    %v5571 = vsub.s32 0, %v5570
    %v5572 = vrot.slane %v4575, %v5571
    %v5573 = vlaneseq
    %v5574 = vshrl.u32 %v5573, 7
    %v5575 = vsub.s32 1, %v5574
    %v5576 = vrot.slane %v4575, %v5575
    %v5577 = vlaneseq
    %v5578 = vshrl.u32 %v5577, 7
    %v5579 = vsub.s32 2, %v5578
    %v5580 = vrot.slane %v4575, %v5579
    %v5581 = vlaneseq
    %v5582 = vshrl.u32 %v5581, 7
    %v5583 = vsub.s32 3, %v5582
    %v5584 = vrot.slane %v4575, %v5583
    %v5585 = vlaneseq
    %v5586 = vshrl.u32 %v5585, 7
    %v5587 = vsub.s32 4, %v5586
    %v5588 = vrot.slane %v4575, %v5587
    %v5589 = vlaneseq
    %v5590 = vshrl.u32 %v5589, 7
    %v5591 = vsub.s32 5, %v5590
    %v5592 = vrot.slane %v4575, %v5591
    %v5593 = vlaneseq
    %v5594 = vshrl.u32 %v5593, 7
    %v5595 = vsub.s32 6, %v5594
    %v5596 = vrot.slane %v4575, %v5595
    %v5597 = vlaneseq
    %v5598 = vshrl.u32 %v5597, 7
    %v5599 = vsub.s32 7, %v5598
    %v5600 = vrot.slane %v4575, %v5599
    %v5601 = vlaneseq
    %v5602 = vshrl.u32 %v5601, 7
    %v5603 = vsub.s32 0, %v5602
    %v5604 = vrot.slane %v4576, %v5603
    %v5605 = vlaneseq
    %v5606 = vshrl.u32 %v5605, 7
    %v5607 = vsub.s32 1, %v5606
    %v5608 = vrot.slane %v4576, %v5607
    %v5609 = vlaneseq
    %v5610 = vshrl.u32 %v5609, 7
    %v5611 = vsub.s32 2, %v5610
    %v5612 = vrot.slane %v4576, %v5611
    %v5613 = vlaneseq
    %v5614 = vshrl.u32 %v5613, 7
    %v5615 = vsub.s32 3, %v5614
    %v5616 = vrot.slane %v4576, %v5615
    %v5617 = vlaneseq
    %v5618 = vshrl.u32 %v5617, 7
    %v5619 = vsub.s32 4, %v5618
    %v5620 = vrot.slane %v4576, %v5619
    %v5621 = vlaneseq
    %v5622 = vshrl.u32 %v5621, 7
    %v5623 = vsub.s32 5, %v5622
    %v5624 = vrot.slane %v4576, %v5623
    %v5625 = vlaneseq
    %v5626 = vshrl.u32 %v5625, 7
    %v5627 = vsub.s32 6, %v5626
    %v5628 = vrot.slane %v4576, %v5627
    %v5629 = vlaneseq
    %v5630 = vshrl.u32 %v5629, 7
    %v5631 = vsub.s32 7, %v5630
    %v5632 = vrot.slane %v4576, %v5631
    %v5633 = vcombine.low %v4612, %v4616
    %v5634 = vcombine.low %v4620, %v4624
    %v5635 = vcombine.low %v4628, %v4632
    %v5636 = vcombine.low %v4636, %v4640
    %v5638 = vunpack.c.l.s4 1966171168
    %v5639 = vunpack.c.0.s8 %v5638
    %v5640 = vlaneseq
    %v5641 = vshrl.u32 %v5640, 7
    %v5642 = vsub.s32 %v5639, %v5641
    %v5643 = vrot.slane %v5633, %v5642
    %v5645 = vunpack.c.l.s4 1966171168
    %v5646 = vunpack.c.0.s8 %v5645
    %v5647 = vlaneseq
    %v5648 = vshrl.u32 %v5647, 7
    %v5649 = vsub.s32 %v5646, %v5648
    %v5650 = vrot.slane %v5634, %v5649
    %v5652 = vunpack.c.l.s4 1966171168
    %v5653 = vunpack.c.0.s8 %v5652
    %v5654 = vlaneseq
    %v5655 = vshrl.u32 %v5654, 7
    %v5656 = vsub.s32 %v5653, %v5655
    %v5657 = vrot.slane %v5635, %v5656
    %v5659 = vunpack.c.l.s4 1966171168
    %v5660 = vunpack.c.0.s8 %v5659
    %v5661 = vlaneseq
    %v5662 = vshrl.u32 %v5661, 7
    %v5663 = vsub.s32 %v5660, %v5662
    %v5664 = vrot.slane %v5636, %v5663
    %v5665 = vcombine.low %v5643, %v5650
    %v5666 = vcombine.low %v5657, %v5664
    %v5668 = vunpack.c.l.s4 1966171168
    %v5669 = vunpack.c.0.s8 %v5668
    %v5670 = vlaneseq
    %v5671 = vshrl.u32 %v5670, 7
    %v5672 = vsub.s32 %v5669, %v5671
    %v5673 = vrot.slane %v5665, %v5672
    %v5675 = vunpack.c.l.s4 1966171168
    %v5676 = vunpack.c.0.s8 %v5675
    %v5677 = vlaneseq
    %v5678 = vshrl.u32 %v5677, 7
    %v5679 = vsub.s32 %v5676, %v5678
    %v5680 = vrot.slane %v5666, %v5679
    %v5681 = vcombine.low %v5673, %v5680
    %v5682 = vcombine.low %v4644, %v4648
    %v5683 = vcombine.low %v4652, %v4656
    %v5684 = vcombine.low %v4660, %v4664
    %v5685 = vcombine.low %v4668, %v4672
    %v5687 = vunpack.c.l.s4 1966171168
    %v5688 = vunpack.c.0.s8 %v5687
    %v5689 = vlaneseq
    %v5690 = vshrl.u32 %v5689, 7
    %v5691 = vsub.s32 %v5688, %v5690
    %v5692 = vrot.slane %v5682, %v5691
    %v5694 = vunpack.c.l.s4 1966171168
    %v5695 = vunpack.c.0.s8 %v5694
    %v5696 = vlaneseq
    %v5697 = vshrl.u32 %v5696, 7
    %v5698 = vsub.s32 %v5695, %v5697
    %v5699 = vrot.slane %v5683, %v5698
    %v5701 = vunpack.c.l.s4 1966171168
    %v5702 = vunpack.c.0.s8 %v5701
    %v5703 = vlaneseq
    %v5704 = vshrl.u32 %v5703, 7
    %v5705 = vsub.s32 %v5702, %v5704
    %v5706 = vrot.slane %v5684, %v5705
    %v5708 = vunpack.c.l.s4 1966171168
    %v5709 = vunpack.c.0.s8 %v5708
    %v5710 = vlaneseq
    %v5711 = vshrl.u32 %v5710, 7
    %v5712 = vsub.s32 %v5709, %v5711
    %v5713 = vrot.slane %v5685, %v5712
    %v5714 = vcombine.low %v5692, %v5699
    %v5715 = vcombine.low %v5706, %v5713
    %v5717 = vunpack.c.l.s4 1966171168
    %v5718 = vunpack.c.0.s8 %v5717
    %v5719 = vlaneseq
    %v5720 = vshrl.u32 %v5719, 7
    %v5721 = vsub.s32 %v5718, %v5720
    %v5722 = vrot.slane %v5714, %v5721
    %v5724 = vunpack.c.l.s4 1966171168
    %v5725 = vunpack.c.0.s8 %v5724
    %v5726 = vlaneseq
    %v5727 = vshrl.u32 %v5726, 7
    %v5728 = vsub.s32 %v5725, %v5727
    %v5729 = vrot.slane %v5715, %v5728
    %v5730 = vcombine.low %v5722, %v5729
    %v5731 = vcombine.low %v4676, %v4680
    %v5732 = vcombine.low %v4684, %v4688
    %v5733 = vcombine.low %v4692, %v4696
    %v5734 = vcombine.low %v4700, %v4704
    %v5736 = vunpack.c.l.s4 1966171168
    %v5737 = vunpack.c.0.s8 %v5736
    %v5738 = vlaneseq
    %v5739 = vshrl.u32 %v5738, 7
    %v5740 = vsub.s32 %v5737, %v5739
    %v5741 = vrot.slane %v5731, %v5740
    %v5743 = vunpack.c.l.s4 1966171168
    %v5744 = vunpack.c.0.s8 %v5743
    %v5745 = vlaneseq
    %v5746 = vshrl.u32 %v5745, 7
    %v5747 = vsub.s32 %v5744, %v5746
    %v5748 = vrot.slane %v5732, %v5747
    %v5750 = vunpack.c.l.s4 1966171168
    %v5751 = vunpack.c.0.s8 %v5750
    %v5752 = vlaneseq
    %v5753 = vshrl.u32 %v5752, 7
    %v5754 = vsub.s32 %v5751, %v5753
    %v5755 = vrot.slane %v5733, %v5754
    %v5757 = vunpack.c.l.s4 1966171168
    %v5758 = vunpack.c.0.s8 %v5757
    %v5759 = vlaneseq
    %v5760 = vshrl.u32 %v5759, 7
    %v5761 = vsub.s32 %v5758, %v5760
    %v5762 = vrot.slane %v5734, %v5761
    %v5763 = vcombine.low %v5741, %v5748
    %v5764 = vcombine.low %v5755, %v5762
    %v5766 = vunpack.c.l.s4 1966171168
    %v5767 = vunpack.c.0.s8 %v5766
    %v5768 = vlaneseq
    %v5769 = vshrl.u32 %v5768, 7
    %v5770 = vsub.s32 %v5767, %v5769
    %v5771 = vrot.slane %v5763, %v5770
    %v5773 = vunpack.c.l.s4 1966171168
    %v5774 = vunpack.c.0.s8 %v5773
    %v5775 = vlaneseq
    %v5776 = vshrl.u32 %v5775, 7
    %v5777 = vsub.s32 %v5774, %v5776
    %v5778 = vrot.slane %v5764, %v5777
    %v5779 = vcombine.low %v5771, %v5778
    %v5780 = vcombine.low %v4708, %v4712
    %v5781 = vcombine.low %v4716, %v4720
    %v5782 = vcombine.low %v4724, %v4728
    %v5783 = vcombine.low %v4732, %v4736
    %v5785 = vunpack.c.l.s4 1966171168
    %v5786 = vunpack.c.0.s8 %v5785
    %v5787 = vlaneseq
    %v5788 = vshrl.u32 %v5787, 7
    %v5789 = vsub.s32 %v5786, %v5788
    %v5790 = vrot.slane %v5780, %v5789
    %v5792 = vunpack.c.l.s4 1966171168
    %v5793 = vunpack.c.0.s8 %v5792
    %v5794 = vlaneseq
    %v5795 = vshrl.u32 %v5794, 7
    %v5796 = vsub.s32 %v5793, %v5795
    %v5797 = vrot.slane %v5781, %v5796
    %v5799 = vunpack.c.l.s4 1966171168
    %v5800 = vunpack.c.0.s8 %v5799
    %v5801 = vlaneseq
    %v5802 = vshrl.u32 %v5801, 7
    %v5803 = vsub.s32 %v5800, %v5802
    %v5804 = vrot.slane %v5782, %v5803
    %v5806 = vunpack.c.l.s4 1966171168
    %v5807 = vunpack.c.0.s8 %v5806
    %v5808 = vlaneseq
    %v5809 = vshrl.u32 %v5808, 7
    %v5810 = vsub.s32 %v5807, %v5809
    %v5811 = vrot.slane %v5783, %v5810
    %v5812 = vcombine.low %v5790, %v5797
    %v5813 = vcombine.low %v5804, %v5811
    %v5815 = vunpack.c.l.s4 1966171168
    %v5816 = vunpack.c.0.s8 %v5815
    %v5817 = vlaneseq
    %v5818 = vshrl.u32 %v5817, 7
    %v5819 = vsub.s32 %v5816, %v5818
    %v5820 = vrot.slane %v5812, %v5819
    %v5822 = vunpack.c.l.s4 1966171168
    %v5823 = vunpack.c.0.s8 %v5822
    %v5824 = vlaneseq
    %v5825 = vshrl.u32 %v5824, 7
    %v5826 = vsub.s32 %v5823, %v5825
    %v5827 = vrot.slane %v5813, %v5826
    %v5828 = vcombine.low %v5820, %v5827
    %v5829 = vcombine.low %v4740, %v4744
    %v5830 = vcombine.low %v4748, %v4752
    %v5831 = vcombine.low %v4756, %v4760
    %v5832 = vcombine.low %v4764, %v4768
    %v5834 = vunpack.c.l.s4 1966171168
    %v5835 = vunpack.c.0.s8 %v5834
    %v5836 = vlaneseq
    %v5837 = vshrl.u32 %v5836, 7
    %v5838 = vsub.s32 %v5835, %v5837
    %v5839 = vrot.slane %v5829, %v5838
    %v5841 = vunpack.c.l.s4 1966171168
    %v5842 = vunpack.c.0.s8 %v5841
    %v5843 = vlaneseq
    %v5844 = vshrl.u32 %v5843, 7
    %v5845 = vsub.s32 %v5842, %v5844
    %v5846 = vrot.slane %v5830, %v5845
    %v5848 = vunpack.c.l.s4 1966171168
    %v5849 = vunpack.c.0.s8 %v5848
    %v5850 = vlaneseq
    %v5851 = vshrl.u32 %v5850, 7
    %v5852 = vsub.s32 %v5849, %v5851
    %v5853 = vrot.slane %v5831, %v5852
    %v5855 = vunpack.c.l.s4 1966171168
    %v5856 = vunpack.c.0.s8 %v5855
    %v5857 = vlaneseq
    %v5858 = vshrl.u32 %v5857, 7
    %v5859 = vsub.s32 %v5856, %v5858
    %v5860 = vrot.slane %v5832, %v5859
    %v5861 = vcombine.low %v5839, %v5846
    %v5862 = vcombine.low %v5853, %v5860
    %v5864 = vunpack.c.l.s4 1966171168
    %v5865 = vunpack.c.0.s8 %v5864
    %v5866 = vlaneseq
    %v5867 = vshrl.u32 %v5866, 7
    %v5868 = vsub.s32 %v5865, %v5867
    %v5869 = vrot.slane %v5861, %v5868
    %v5871 = vunpack.c.l.s4 1966171168
    %v5872 = vunpack.c.0.s8 %v5871
    %v5873 = vlaneseq
    %v5874 = vshrl.u32 %v5873, 7
    %v5875 = vsub.s32 %v5872, %v5874
    %v5876 = vrot.slane %v5862, %v5875
    %v5877 = vcombine.low %v5869, %v5876
    %v5878 = vcombine.low %v4772, %v4776
    %v5879 = vcombine.low %v4780, %v4784
    %v5880 = vcombine.low %v4788, %v4792
    %v5881 = vcombine.low %v4796, %v4800
    %v5883 = vunpack.c.l.s4 1966171168
    %v5884 = vunpack.c.0.s8 %v5883
    %v5885 = vlaneseq
    %v5886 = vshrl.u32 %v5885, 7
    %v5887 = vsub.s32 %v5884, %v5886
    %v5888 = vrot.slane %v5878, %v5887
    %v5890 = vunpack.c.l.s4 1966171168
    %v5891 = vunpack.c.0.s8 %v5890
    %v5892 = vlaneseq
    %v5893 = vshrl.u32 %v5892, 7
    %v5894 = vsub.s32 %v5891, %v5893
    %v5895 = vrot.slane %v5879, %v5894
    %v5897 = vunpack.c.l.s4 1966171168
    %v5898 = vunpack.c.0.s8 %v5897
    %v5899 = vlaneseq
    %v5900 = vshrl.u32 %v5899, 7
    %v5901 = vsub.s32 %v5898, %v5900
    %v5902 = vrot.slane %v5880, %v5901
    %v5904 = vunpack.c.l.s4 1966171168
    %v5905 = vunpack.c.0.s8 %v5904
    %v5906 = vlaneseq
    %v5907 = vshrl.u32 %v5906, 7
    %v5908 = vsub.s32 %v5905, %v5907
    %v5909 = vrot.slane %v5881, %v5908
    %v5910 = vcombine.low %v5888, %v5895
    %v5911 = vcombine.low %v5902, %v5909
    %v5913 = vunpack.c.l.s4 1966171168
    %v5914 = vunpack.c.0.s8 %v5913
    %v5915 = vlaneseq
    %v5916 = vshrl.u32 %v5915, 7
    %v5917 = vsub.s32 %v5914, %v5916
    %v5918 = vrot.slane %v5910, %v5917
    %v5920 = vunpack.c.l.s4 1966171168
    %v5921 = vunpack.c.0.s8 %v5920
    %v5922 = vlaneseq
    %v5923 = vshrl.u32 %v5922, 7
    %v5924 = vsub.s32 %v5921, %v5923
    %v5925 = vrot.slane %v5911, %v5924
    %v5926 = vcombine.low %v5918, %v5925
    %v5927 = vcombine.low %v4804, %v4808
    %v5928 = vcombine.low %v4812, %v4816
    %v5929 = vcombine.low %v4820, %v4824
    %v5930 = vcombine.low %v4828, %v4832
    %v5932 = vunpack.c.l.s4 1966171168
    %v5933 = vunpack.c.0.s8 %v5932
    %v5934 = vlaneseq
    %v5935 = vshrl.u32 %v5934, 7
    %v5936 = vsub.s32 %v5933, %v5935
    %v5937 = vrot.slane %v5927, %v5936
    %v5939 = vunpack.c.l.s4 1966171168
    %v5940 = vunpack.c.0.s8 %v5939
    %v5941 = vlaneseq
    %v5942 = vshrl.u32 %v5941, 7
    %v5943 = vsub.s32 %v5940, %v5942
    %v5944 = vrot.slane %v5928, %v5943
    %v5946 = vunpack.c.l.s4 1966171168
    %v5947 = vunpack.c.0.s8 %v5946
    %v5948 = vlaneseq
    %v5949 = vshrl.u32 %v5948, 7
    %v5950 = vsub.s32 %v5947, %v5949
    %v5951 = vrot.slane %v5929, %v5950
    %v5953 = vunpack.c.l.s4 1966171168
    %v5954 = vunpack.c.0.s8 %v5953
    %v5955 = vlaneseq
    %v5956 = vshrl.u32 %v5955, 7
    %v5957 = vsub.s32 %v5954, %v5956
    %v5958 = vrot.slane %v5930, %v5957
    %v5959 = vcombine.low %v5937, %v5944
    %v5960 = vcombine.low %v5951, %v5958
    %v5962 = vunpack.c.l.s4 1966171168
    %v5963 = vunpack.c.0.s8 %v5962
    %v5964 = vlaneseq
    %v5965 = vshrl.u32 %v5964, 7
    %v5966 = vsub.s32 %v5963, %v5965
    %v5967 = vrot.slane %v5959, %v5966
    %v5969 = vunpack.c.l.s4 1966171168
    %v5970 = vunpack.c.0.s8 %v5969
    %v5971 = vlaneseq
    %v5972 = vshrl.u32 %v5971, 7
    %v5973 = vsub.s32 %v5970, %v5972
    %v5974 = vrot.slane %v5960, %v5973
    %v5975 = vcombine.low %v5967, %v5974
    %v5976 = vcombine.low %v4836, %v4840
    %v5977 = vcombine.low %v4844, %v4848
    %v5978 = vcombine.low %v4852, %v4856
    %v5979 = vcombine.low %v4860, %v4864
    %v5981 = vunpack.c.l.s4 1966171168
    %v5982 = vunpack.c.0.s8 %v5981
    %v5983 = vlaneseq
    %v5984 = vshrl.u32 %v5983, 7
    %v5985 = vsub.s32 %v5982, %v5984
    %v5986 = vrot.slane %v5976, %v5985
    %v5988 = vunpack.c.l.s4 1966171168
    %v5989 = vunpack.c.0.s8 %v5988
    %v5990 = vlaneseq
    %v5991 = vshrl.u32 %v5990, 7
    %v5992 = vsub.s32 %v5989, %v5991
    %v5993 = vrot.slane %v5977, %v5992
    %v5995 = vunpack.c.l.s4 1966171168
    %v5996 = vunpack.c.0.s8 %v5995
    %v5997 = vlaneseq
    %v5998 = vshrl.u32 %v5997, 7
    %v5999 = vsub.s32 %v5996, %v5998
    %v6000 = vrot.slane %v5978, %v5999
    %v6002 = vunpack.c.l.s4 1966171168
    %v6003 = vunpack.c.0.s8 %v6002
    %v6004 = vlaneseq
    %v6005 = vshrl.u32 %v6004, 7
    %v6006 = vsub.s32 %v6003, %v6005
    %v6007 = vrot.slane %v5979, %v6006
    %v6008 = vcombine.low %v5986, %v5993
    %v6009 = vcombine.low %v6000, %v6007
    %v6011 = vunpack.c.l.s4 1966171168
    %v6012 = vunpack.c.0.s8 %v6011
    %v6013 = vlaneseq
    %v6014 = vshrl.u32 %v6013, 7
    %v6015 = vsub.s32 %v6012, %v6014
    %v6016 = vrot.slane %v6008, %v6015
    %v6018 = vunpack.c.l.s4 1966171168
    %v6019 = vunpack.c.0.s8 %v6018
    %v6020 = vlaneseq
    %v6021 = vshrl.u32 %v6020, 7
    %v6022 = vsub.s32 %v6019, %v6021
    %v6023 = vrot.slane %v6009, %v6022
    %v6024 = vcombine.low %v6016, %v6023
    %v6025 = vcombine.low %v4868, %v4872
    %v6026 = vcombine.low %v4876, %v4880
    %v6027 = vcombine.low %v4884, %v4888
    %v6028 = vcombine.low %v4892, %v4896
    %v6030 = vunpack.c.l.s4 1966171168
    %v6031 = vunpack.c.0.s8 %v6030
    %v6032 = vlaneseq
    %v6033 = vshrl.u32 %v6032, 7
    %v6034 = vsub.s32 %v6031, %v6033
    %v6035 = vrot.slane %v6025, %v6034
    %v6037 = vunpack.c.l.s4 1966171168
    %v6038 = vunpack.c.0.s8 %v6037
    %v6039 = vlaneseq
    %v6040 = vshrl.u32 %v6039, 7
    %v6041 = vsub.s32 %v6038, %v6040
    %v6042 = vrot.slane %v6026, %v6041
    %v6044 = vunpack.c.l.s4 1966171168
    %v6045 = vunpack.c.0.s8 %v6044
    %v6046 = vlaneseq
    %v6047 = vshrl.u32 %v6046, 7
    %v6048 = vsub.s32 %v6045, %v6047
    %v6049 = vrot.slane %v6027, %v6048
    %v6051 = vunpack.c.l.s4 1966171168
    %v6052 = vunpack.c.0.s8 %v6051
    %v6053 = vlaneseq
    %v6054 = vshrl.u32 %v6053, 7
    %v6055 = vsub.s32 %v6052, %v6054
    %v6056 = vrot.slane %v6028, %v6055
    %v6057 = vcombine.low %v6035, %v6042
    %v6058 = vcombine.low %v6049, %v6056
    %v6060 = vunpack.c.l.s4 1966171168
    %v6061 = vunpack.c.0.s8 %v6060
    %v6062 = vlaneseq
    %v6063 = vshrl.u32 %v6062, 7
    %v6064 = vsub.s32 %v6061, %v6063
    %v6065 = vrot.slane %v6057, %v6064
    %v6067 = vunpack.c.l.s4 1966171168
    %v6068 = vunpack.c.0.s8 %v6067
    %v6069 = vlaneseq
    %v6070 = vshrl.u32 %v6069, 7
    %v6071 = vsub.s32 %v6068, %v6070
    %v6072 = vrot.slane %v6058, %v6071
    %v6073 = vcombine.low %v6065, %v6072
    %v6074 = vcombine.low %v4900, %v4904
    %v6075 = vcombine.low %v4908, %v4912
    %v6076 = vcombine.low %v4916, %v4920
    %v6077 = vcombine.low %v4924, %v4928
    %v6079 = vunpack.c.l.s4 1966171168
    %v6080 = vunpack.c.0.s8 %v6079
    %v6081 = vlaneseq
    %v6082 = vshrl.u32 %v6081, 7
    %v6083 = vsub.s32 %v6080, %v6082
    %v6084 = vrot.slane %v6074, %v6083
    %v6086 = vunpack.c.l.s4 1966171168
    %v6087 = vunpack.c.0.s8 %v6086
    %v6088 = vlaneseq
    %v6089 = vshrl.u32 %v6088, 7
    %v6090 = vsub.s32 %v6087, %v6089
    %v6091 = vrot.slane %v6075, %v6090
    %v6093 = vunpack.c.l.s4 1966171168
    %v6094 = vunpack.c.0.s8 %v6093
    %v6095 = vlaneseq
    %v6096 = vshrl.u32 %v6095, 7
    %v6097 = vsub.s32 %v6094, %v6096
    %v6098 = vrot.slane %v6076, %v6097
    %v6100 = vunpack.c.l.s4 1966171168
    %v6101 = vunpack.c.0.s8 %v6100
    %v6102 = vlaneseq
    %v6103 = vshrl.u32 %v6102, 7
    %v6104 = vsub.s32 %v6101, %v6103
    %v6105 = vrot.slane %v6077, %v6104
    %v6106 = vcombine.low %v6084, %v6091
    %v6107 = vcombine.low %v6098, %v6105
    %v6109 = vunpack.c.l.s4 1966171168
    %v6110 = vunpack.c.0.s8 %v6109
    %v6111 = vlaneseq
    %v6112 = vshrl.u32 %v6111, 7
    %v6113 = vsub.s32 %v6110, %v6112
    %v6114 = vrot.slane %v6106, %v6113
    %v6116 = vunpack.c.l.s4 1966171168
    %v6117 = vunpack.c.0.s8 %v6116
    %v6118 = vlaneseq
    %v6119 = vshrl.u32 %v6118, 7
    %v6120 = vsub.s32 %v6117, %v6119
    %v6121 = vrot.slane %v6107, %v6120
    %v6122 = vcombine.low %v6114, %v6121
    %v6123 = vcombine.low %v4932, %v4936
    %v6124 = vcombine.low %v4940, %v4944
    %v6125 = vcombine.low %v4948, %v4952
    %v6126 = vcombine.low %v4956, %v4960
    %v6128 = vunpack.c.l.s4 1966171168
    %v6129 = vunpack.c.0.s8 %v6128
    %v6130 = vlaneseq
    %v6131 = vshrl.u32 %v6130, 7
    %v6132 = vsub.s32 %v6129, %v6131
    %v6133 = vrot.slane %v6123, %v6132
    %v6135 = vunpack.c.l.s4 1966171168
    %v6136 = vunpack.c.0.s8 %v6135
    %v6137 = vlaneseq
    %v6138 = vshrl.u32 %v6137, 7
    %v6139 = vsub.s32 %v6136, %v6138
    %v6140 = vrot.slane %v6124, %v6139
    %v6142 = vunpack.c.l.s4 1966171168
    %v6143 = vunpack.c.0.s8 %v6142
    %v6144 = vlaneseq
    %v6145 = vshrl.u32 %v6144, 7
    %v6146 = vsub.s32 %v6143, %v6145
    %v6147 = vrot.slane %v6125, %v6146
    %v6149 = vunpack.c.l.s4 1966171168
    %v6150 = vunpack.c.0.s8 %v6149
    %v6151 = vlaneseq
    %v6152 = vshrl.u32 %v6151, 7
    %v6153 = vsub.s32 %v6150, %v6152
    %v6154 = vrot.slane %v6126, %v6153
    %v6155 = vcombine.low %v6133, %v6140
    %v6156 = vcombine.low %v6147, %v6154
    %v6158 = vunpack.c.l.s4 1966171168
    %v6159 = vunpack.c.0.s8 %v6158
    %v6160 = vlaneseq
    %v6161 = vshrl.u32 %v6160, 7
    %v6162 = vsub.s32 %v6159, %v6161
    %v6163 = vrot.slane %v6155, %v6162
    %v6165 = vunpack.c.l.s4 1966171168
    %v6166 = vunpack.c.0.s8 %v6165
    %v6167 = vlaneseq
    %v6168 = vshrl.u32 %v6167, 7
    %v6169 = vsub.s32 %v6166, %v6168
    %v6170 = vrot.slane %v6156, %v6169
    %v6171 = vcombine.low %v6163, %v6170
    %v6172 = vcombine.low %v4964, %v4968
    %v6173 = vcombine.low %v4972, %v4976
    %v6174 = vcombine.low %v4980, %v4984
    %v6175 = vcombine.low %v4988, %v4992
    %v6177 = vunpack.c.l.s4 1966171168
    %v6178 = vunpack.c.0.s8 %v6177
    %v6179 = vlaneseq
    %v6180 = vshrl.u32 %v6179, 7
    %v6181 = vsub.s32 %v6178, %v6180
    %v6182 = vrot.slane %v6172, %v6181
    %v6184 = vunpack.c.l.s4 1966171168
    %v6185 = vunpack.c.0.s8 %v6184
    %v6186 = vlaneseq
    %v6187 = vshrl.u32 %v6186, 7
    %v6188 = vsub.s32 %v6185, %v6187
    %v6189 = vrot.slane %v6173, %v6188
    %v6191 = vunpack.c.l.s4 1966171168
    %v6192 = vunpack.c.0.s8 %v6191
    %v6193 = vlaneseq
    %v6194 = vshrl.u32 %v6193, 7
    %v6195 = vsub.s32 %v6192, %v6194
    %v6196 = vrot.slane %v6174, %v6195
    %v6198 = vunpack.c.l.s4 1966171168
    %v6199 = vunpack.c.0.s8 %v6198
    %v6200 = vlaneseq
    %v6201 = vshrl.u32 %v6200, 7
    %v6202 = vsub.s32 %v6199, %v6201
    %v6203 = vrot.slane %v6175, %v6202
    %v6204 = vcombine.low %v6182, %v6189
    %v6205 = vcombine.low %v6196, %v6203
    %v6207 = vunpack.c.l.s4 1966171168
    %v6208 = vunpack.c.0.s8 %v6207
    %v6209 = vlaneseq
    %v6210 = vshrl.u32 %v6209, 7
    %v6211 = vsub.s32 %v6208, %v6210
    %v6212 = vrot.slane %v6204, %v6211
    %v6214 = vunpack.c.l.s4 1966171168
    %v6215 = vunpack.c.0.s8 %v6214
    %v6216 = vlaneseq
    %v6217 = vshrl.u32 %v6216, 7
    %v6218 = vsub.s32 %v6215, %v6217
    %v6219 = vrot.slane %v6205, %v6218
    %v6220 = vcombine.low %v6212, %v6219
    %v6221 = vcombine.low %v4996, %v5000
    %v6222 = vcombine.low %v5004, %v5008
    %v6223 = vcombine.low %v5012, %v5016
    %v6224 = vcombine.low %v5020, %v5024
    %v6226 = vunpack.c.l.s4 1966171168
    %v6227 = vunpack.c.0.s8 %v6226
    %v6228 = vlaneseq
    %v6229 = vshrl.u32 %v6228, 7
    %v6230 = vsub.s32 %v6227, %v6229
    %v6231 = vrot.slane %v6221, %v6230
    %v6233 = vunpack.c.l.s4 1966171168
    %v6234 = vunpack.c.0.s8 %v6233
    %v6235 = vlaneseq
    %v6236 = vshrl.u32 %v6235, 7
    %v6237 = vsub.s32 %v6234, %v6236
    %v6238 = vrot.slane %v6222, %v6237
    %v6240 = vunpack.c.l.s4 1966171168
    %v6241 = vunpack.c.0.s8 %v6240
    %v6242 = vlaneseq
    %v6243 = vshrl.u32 %v6242, 7
    %v6244 = vsub.s32 %v6241, %v6243
    %v6245 = vrot.slane %v6223, %v6244
    %v6247 = vunpack.c.l.s4 1966171168
    %v6248 = vunpack.c.0.s8 %v6247
    %v6249 = vlaneseq
    %v6250 = vshrl.u32 %v6249, 7
    %v6251 = vsub.s32 %v6248, %v6250
    %v6252 = vrot.slane %v6224, %v6251
    %v6253 = vcombine.low %v6231, %v6238
    %v6254 = vcombine.low %v6245, %v6252
    %v6256 = vunpack.c.l.s4 1966171168
    %v6257 = vunpack.c.0.s8 %v6256
    %v6258 = vlaneseq
    %v6259 = vshrl.u32 %v6258, 7
    %v6260 = vsub.s32 %v6257, %v6259
    %v6261 = vrot.slane %v6253, %v6260
    %v6263 = vunpack.c.l.s4 1966171168
    %v6264 = vunpack.c.0.s8 %v6263
    %v6265 = vlaneseq
    %v6266 = vshrl.u32 %v6265, 7
    %v6267 = vsub.s32 %v6264, %v6266
    %v6268 = vrot.slane %v6254, %v6267
    %v6269 = vcombine.low %v6261, %v6268
    %v6270 = vcombine.low %v5028, %v5032
    %v6271 = vcombine.low %v5036, %v5040
    %v6272 = vcombine.low %v5044, %v5048
    %v6273 = vcombine.low %v5052, %v5056
    %v6275 = vunpack.c.l.s4 1966171168
    %v6276 = vunpack.c.0.s8 %v6275
    %v6277 = vlaneseq
    %v6278 = vshrl.u32 %v6277, 7
    %v6279 = vsub.s32 %v6276, %v6278
    %v6280 = vrot.slane %v6270, %v6279
    %v6282 = vunpack.c.l.s4 1966171168
    %v6283 = vunpack.c.0.s8 %v6282
    %v6284 = vlaneseq
    %v6285 = vshrl.u32 %v6284, 7
    %v6286 = vsub.s32 %v6283, %v6285
    %v6287 = vrot.slane %v6271, %v6286
    %v6289 = vunpack.c.l.s4 1966171168
    %v6290 = vunpack.c.0.s8 %v6289
    %v6291 = vlaneseq
    %v6292 = vshrl.u32 %v6291, 7
    %v6293 = vsub.s32 %v6290, %v6292
    %v6294 = vrot.slane %v6272, %v6293
    %v6296 = vunpack.c.l.s4 1966171168
    %v6297 = vunpack.c.0.s8 %v6296
    %v6298 = vlaneseq
    %v6299 = vshrl.u32 %v6298, 7
    %v6300 = vsub.s32 %v6297, %v6299
    %v6301 = vrot.slane %v6273, %v6300
    %v6302 = vcombine.low %v6280, %v6287
    %v6303 = vcombine.low %v6294, %v6301
    %v6305 = vunpack.c.l.s4 1966171168
    %v6306 = vunpack.c.0.s8 %v6305
    %v6307 = vlaneseq
    %v6308 = vshrl.u32 %v6307, 7
    %v6309 = vsub.s32 %v6306, %v6308
    %v6310 = vrot.slane %v6302, %v6309
    %v6312 = vunpack.c.l.s4 1966171168
    %v6313 = vunpack.c.0.s8 %v6312
    %v6314 = vlaneseq
    %v6315 = vshrl.u32 %v6314, 7
    %v6316 = vsub.s32 %v6313, %v6315
    %v6317 = vrot.slane %v6303, %v6316
    %v6318 = vcombine.low %v6310, %v6317
    %v6319 = vcombine.low %v5060, %v5064
    %v6320 = vcombine.low %v5068, %v5072
    %v6321 = vcombine.low %v5076, %v5080
    %v6322 = vcombine.low %v5084, %v5088
    %v6324 = vunpack.c.l.s4 1966171168
    %v6325 = vunpack.c.0.s8 %v6324
    %v6326 = vlaneseq
    %v6327 = vshrl.u32 %v6326, 7
    %v6328 = vsub.s32 %v6325, %v6327
    %v6329 = vrot.slane %v6319, %v6328
    %v6331 = vunpack.c.l.s4 1966171168
    %v6332 = vunpack.c.0.s8 %v6331
    %v6333 = vlaneseq
    %v6334 = vshrl.u32 %v6333, 7
    %v6335 = vsub.s32 %v6332, %v6334
    %v6336 = vrot.slane %v6320, %v6335
    %v6338 = vunpack.c.l.s4 1966171168
    %v6339 = vunpack.c.0.s8 %v6338
    %v6340 = vlaneseq
    %v6341 = vshrl.u32 %v6340, 7
    %v6342 = vsub.s32 %v6339, %v6341
    %v6343 = vrot.slane %v6321, %v6342
    %v6345 = vunpack.c.l.s4 1966171168
    %v6346 = vunpack.c.0.s8 %v6345
    %v6347 = vlaneseq
    %v6348 = vshrl.u32 %v6347, 7
    %v6349 = vsub.s32 %v6346, %v6348
    %v6350 = vrot.slane %v6322, %v6349
    %v6351 = vcombine.low %v6329, %v6336
    %v6352 = vcombine.low %v6343, %v6350
    %v6354 = vunpack.c.l.s4 1966171168
    %v6355 = vunpack.c.0.s8 %v6354
    %v6356 = vlaneseq
    %v6357 = vshrl.u32 %v6356, 7
    %v6358 = vsub.s32 %v6355, %v6357
    %v6359 = vrot.slane %v6351, %v6358
    %v6361 = vunpack.c.l.s4 1966171168
    %v6362 = vunpack.c.0.s8 %v6361
    %v6363 = vlaneseq
    %v6364 = vshrl.u32 %v6363, 7
    %v6365 = vsub.s32 %v6362, %v6364
    %v6366 = vrot.slane %v6352, %v6365
    %v6367 = vcombine.low %v6359, %v6366
    %v6368 = vcombine.low %v5092, %v5096
    %v6369 = vcombine.low %v5100, %v5104
    %v6370 = vcombine.low %v5108, %v5112
    %v6371 = vcombine.low %v5116, %v5120
    %v6373 = vunpack.c.l.s4 1966171168
    %v6374 = vunpack.c.0.s8 %v6373
    %v6375 = vlaneseq
    %v6376 = vshrl.u32 %v6375, 7
    %v6377 = vsub.s32 %v6374, %v6376
    %v6378 = vrot.slane %v6368, %v6377
    %v6380 = vunpack.c.l.s4 1966171168
    %v6381 = vunpack.c.0.s8 %v6380
    %v6382 = vlaneseq
    %v6383 = vshrl.u32 %v6382, 7
    %v6384 = vsub.s32 %v6381, %v6383
    %v6385 = vrot.slane %v6369, %v6384
    %v6387 = vunpack.c.l.s4 1966171168
    %v6388 = vunpack.c.0.s8 %v6387
    %v6389 = vlaneseq
    %v6390 = vshrl.u32 %v6389, 7
    %v6391 = vsub.s32 %v6388, %v6390
    %v6392 = vrot.slane %v6370, %v6391
    %v6394 = vunpack.c.l.s4 1966171168
    %v6395 = vunpack.c.0.s8 %v6394
    %v6396 = vlaneseq
    %v6397 = vshrl.u32 %v6396, 7
    %v6398 = vsub.s32 %v6395, %v6397
    %v6399 = vrot.slane %v6371, %v6398
    %v6400 = vcombine.low %v6378, %v6385
    %v6401 = vcombine.low %v6392, %v6399
    %v6403 = vunpack.c.l.s4 1966171168
    %v6404 = vunpack.c.0.s8 %v6403
    %v6405 = vlaneseq
    %v6406 = vshrl.u32 %v6405, 7
    %v6407 = vsub.s32 %v6404, %v6406
    %v6408 = vrot.slane %v6400, %v6407
    %v6410 = vunpack.c.l.s4 1966171168
    %v6411 = vunpack.c.0.s8 %v6410
    %v6412 = vlaneseq
    %v6413 = vshrl.u32 %v6412, 7
    %v6414 = vsub.s32 %v6411, %v6413
    %v6415 = vrot.slane %v6401, %v6414
    %v6416 = vcombine.low %v6408, %v6415
    %v6417 = vcombine.low %v5124, %v5128
    %v6418 = vcombine.low %v5132, %v5136
    %v6419 = vcombine.low %v5140, %v5144
    %v6420 = vcombine.low %v5148, %v5152
    %v6422 = vunpack.c.l.s4 1966171168
    %v6423 = vunpack.c.0.s8 %v6422
    %v6424 = vlaneseq
    %v6425 = vshrl.u32 %v6424, 7
    %v6426 = vsub.s32 %v6423, %v6425
    %v6427 = vrot.slane %v6417, %v6426
    %v6429 = vunpack.c.l.s4 1966171168
    %v6430 = vunpack.c.0.s8 %v6429
    %v6431 = vlaneseq
    %v6432 = vshrl.u32 %v6431, 7
    %v6433 = vsub.s32 %v6430, %v6432
    %v6434 = vrot.slane %v6418, %v6433
    %v6436 = vunpack.c.l.s4 1966171168
    %v6437 = vunpack.c.0.s8 %v6436
    %v6438 = vlaneseq
    %v6439 = vshrl.u32 %v6438, 7
    %v6440 = vsub.s32 %v6437, %v6439
    %v6441 = vrot.slane %v6419, %v6440
    %v6443 = vunpack.c.l.s4 1966171168
    %v6444 = vunpack.c.0.s8 %v6443
    %v6445 = vlaneseq
    %v6446 = vshrl.u32 %v6445, 7
    %v6447 = vsub.s32 %v6444, %v6446
    %v6448 = vrot.slane %v6420, %v6447
    %v6449 = vcombine.low %v6427, %v6434
    %v6450 = vcombine.low %v6441, %v6448
    %v6452 = vunpack.c.l.s4 1966171168
    %v6453 = vunpack.c.0.s8 %v6452
    %v6454 = vlaneseq
    %v6455 = vshrl.u32 %v6454, 7
    %v6456 = vsub.s32 %v6453, %v6455
    %v6457 = vrot.slane %v6449, %v6456
    %v6459 = vunpack.c.l.s4 1966171168
    %v6460 = vunpack.c.0.s8 %v6459
    %v6461 = vlaneseq
    %v6462 = vshrl.u32 %v6461, 7
    %v6463 = vsub.s32 %v6460, %v6462
    %v6464 = vrot.slane %v6450, %v6463
    %v6465 = vcombine.low %v6457, %v6464
    %v6466 = vcombine.low %v5156, %v5160
    %v6467 = vcombine.low %v5164, %v5168
    %v6468 = vcombine.low %v5172, %v5176
    %v6469 = vcombine.low %v5180, %v5184
    %v6471 = vunpack.c.l.s4 1966171168
    %v6472 = vunpack.c.0.s8 %v6471
    %v6473 = vlaneseq
    %v6474 = vshrl.u32 %v6473, 7
    %v6475 = vsub.s32 %v6472, %v6474
    %v6476 = vrot.slane %v6466, %v6475
    %v6478 = vunpack.c.l.s4 1966171168
    %v6479 = vunpack.c.0.s8 %v6478
    %v6480 = vlaneseq
    %v6481 = vshrl.u32 %v6480, 7
    %v6482 = vsub.s32 %v6479, %v6481
    %v6483 = vrot.slane %v6467, %v6482
    %v6485 = vunpack.c.l.s4 1966171168
    %v6486 = vunpack.c.0.s8 %v6485
    %v6487 = vlaneseq
    %v6488 = vshrl.u32 %v6487, 7
    %v6489 = vsub.s32 %v6486, %v6488
    %v6490 = vrot.slane %v6468, %v6489
    %v6492 = vunpack.c.l.s4 1966171168
    %v6493 = vunpack.c.0.s8 %v6492
    %v6494 = vlaneseq
    %v6495 = vshrl.u32 %v6494, 7
    %v6496 = vsub.s32 %v6493, %v6495
    %v6497 = vrot.slane %v6469, %v6496
    %v6498 = vcombine.low %v6476, %v6483
    %v6499 = vcombine.low %v6490, %v6497
    %v6501 = vunpack.c.l.s4 1966171168
    %v6502 = vunpack.c.0.s8 %v6501
    %v6503 = vlaneseq
    %v6504 = vshrl.u32 %v6503, 7
    %v6505 = vsub.s32 %v6502, %v6504
    %v6506 = vrot.slane %v6498, %v6505
    %v6508 = vunpack.c.l.s4 1966171168
    %v6509 = vunpack.c.0.s8 %v6508
    %v6510 = vlaneseq
    %v6511 = vshrl.u32 %v6510, 7
    %v6512 = vsub.s32 %v6509, %v6511
    %v6513 = vrot.slane %v6499, %v6512
    %v6514 = vcombine.low %v6506, %v6513
    %v6515 = vcombine.low %v5188, %v5192
    %v6516 = vcombine.low %v5196, %v5200
    %v6517 = vcombine.low %v5204, %v5208
    %v6518 = vcombine.low %v5212, %v5216
    %v6520 = vunpack.c.l.s4 1966171168
    %v6521 = vunpack.c.0.s8 %v6520
    %v6522 = vlaneseq
    %v6523 = vshrl.u32 %v6522, 7
    %v6524 = vsub.s32 %v6521, %v6523
    %v6525 = vrot.slane %v6515, %v6524
    %v6527 = vunpack.c.l.s4 1966171168
    %v6528 = vunpack.c.0.s8 %v6527
    %v6529 = vlaneseq
    %v6530 = vshrl.u32 %v6529, 7
    %v6531 = vsub.s32 %v6528, %v6530
    %v6532 = vrot.slane %v6516, %v6531
    %v6534 = vunpack.c.l.s4 1966171168
    %v6535 = vunpack.c.0.s8 %v6534
    %v6536 = vlaneseq
    %v6537 = vshrl.u32 %v6536, 7
    %v6538 = vsub.s32 %v6535, %v6537
    %v6539 = vrot.slane %v6517, %v6538
    %v6541 = vunpack.c.l.s4 1966171168
    %v6542 = vunpack.c.0.s8 %v6541
    %v6543 = vlaneseq
    %v6544 = vshrl.u32 %v6543, 7
    %v6545 = vsub.s32 %v6542, %v6544
    %v6546 = vrot.slane %v6518, %v6545
    %v6547 = vcombine.low %v6525, %v6532
    %v6548 = vcombine.low %v6539, %v6546
    %v6550 = vunpack.c.l.s4 1966171168
    %v6551 = vunpack.c.0.s8 %v6550
    %v6552 = vlaneseq
    %v6553 = vshrl.u32 %v6552, 7
    %v6554 = vsub.s32 %v6551, %v6553
    %v6555 = vrot.slane %v6547, %v6554
    %v6557 = vunpack.c.l.s4 1966171168
    %v6558 = vunpack.c.0.s8 %v6557
    %v6559 = vlaneseq
    %v6560 = vshrl.u32 %v6559, 7
    %v6561 = vsub.s32 %v6558, %v6560
    %v6562 = vrot.slane %v6548, %v6561
    %v6563 = vcombine.low %v6555, %v6562
    %v6564 = vcombine.low %v5220, %v5224
    %v6565 = vcombine.low %v5228, %v5232
    %v6566 = vcombine.low %v5236, %v5240
    %v6567 = vcombine.low %v5244, %v5248
    %v6569 = vunpack.c.l.s4 1966171168
    %v6570 = vunpack.c.0.s8 %v6569
    %v6571 = vlaneseq
    %v6572 = vshrl.u32 %v6571, 7
    %v6573 = vsub.s32 %v6570, %v6572
    %v6574 = vrot.slane %v6564, %v6573
    %v6576 = vunpack.c.l.s4 1966171168
    %v6577 = vunpack.c.0.s8 %v6576
    %v6578 = vlaneseq
    %v6579 = vshrl.u32 %v6578, 7
    %v6580 = vsub.s32 %v6577, %v6579
    %v6581 = vrot.slane %v6565, %v6580
    %v6583 = vunpack.c.l.s4 1966171168
    %v6584 = vunpack.c.0.s8 %v6583
    %v6585 = vlaneseq
    %v6586 = vshrl.u32 %v6585, 7
    %v6587 = vsub.s32 %v6584, %v6586
    %v6588 = vrot.slane %v6566, %v6587
    %v6590 = vunpack.c.l.s4 1966171168
    %v6591 = vunpack.c.0.s8 %v6590
    %v6592 = vlaneseq
    %v6593 = vshrl.u32 %v6592, 7
    %v6594 = vsub.s32 %v6591, %v6593
    %v6595 = vrot.slane %v6567, %v6594
    %v6596 = vcombine.low %v6574, %v6581
    %v6597 = vcombine.low %v6588, %v6595
    %v6599 = vunpack.c.l.s4 1966171168
    %v6600 = vunpack.c.0.s8 %v6599
    %v6601 = vlaneseq
    %v6602 = vshrl.u32 %v6601, 7
    %v6603 = vsub.s32 %v6600, %v6602
    %v6604 = vrot.slane %v6596, %v6603
    %v6606 = vunpack.c.l.s4 1966171168
    %v6607 = vunpack.c.0.s8 %v6606
    %v6608 = vlaneseq
    %v6609 = vshrl.u32 %v6608, 7
    %v6610 = vsub.s32 %v6607, %v6609
    %v6611 = vrot.slane %v6597, %v6610
    %v6612 = vcombine.low %v6604, %v6611
    %v6613 = vcombine.low %v5252, %v5256
    %v6614 = vcombine.low %v5260, %v5264
    %v6615 = vcombine.low %v5268, %v5272
    %v6616 = vcombine.low %v5276, %v5280
    %v6618 = vunpack.c.l.s4 1966171168
    %v6619 = vunpack.c.0.s8 %v6618
    %v6620 = vlaneseq
    %v6621 = vshrl.u32 %v6620, 7
    %v6622 = vsub.s32 %v6619, %v6621
    %v6623 = vrot.slane %v6613, %v6622
    %v6625 = vunpack.c.l.s4 1966171168
    %v6626 = vunpack.c.0.s8 %v6625
    %v6627 = vlaneseq
    %v6628 = vshrl.u32 %v6627, 7
    %v6629 = vsub.s32 %v6626, %v6628
    %v6630 = vrot.slane %v6614, %v6629
    %v6632 = vunpack.c.l.s4 1966171168
    %v6633 = vunpack.c.0.s8 %v6632
    %v6634 = vlaneseq
    %v6635 = vshrl.u32 %v6634, 7
    %v6636 = vsub.s32 %v6633, %v6635
    %v6637 = vrot.slane %v6615, %v6636
    %v6639 = vunpack.c.l.s4 1966171168
    %v6640 = vunpack.c.0.s8 %v6639
    %v6641 = vlaneseq
    %v6642 = vshrl.u32 %v6641, 7
    %v6643 = vsub.s32 %v6640, %v6642
    %v6644 = vrot.slane %v6616, %v6643
    %v6645 = vcombine.low %v6623, %v6630
    %v6646 = vcombine.low %v6637, %v6644
    %v6648 = vunpack.c.l.s4 1966171168
    %v6649 = vunpack.c.0.s8 %v6648
    %v6650 = vlaneseq
    %v6651 = vshrl.u32 %v6650, 7
    %v6652 = vsub.s32 %v6649, %v6651
    %v6653 = vrot.slane %v6645, %v6652
    %v6655 = vunpack.c.l.s4 1966171168
    %v6656 = vunpack.c.0.s8 %v6655
    %v6657 = vlaneseq
    %v6658 = vshrl.u32 %v6657, 7
    %v6659 = vsub.s32 %v6656, %v6658
    %v6660 = vrot.slane %v6646, %v6659
    %v6661 = vcombine.low %v6653, %v6660
    %v6662 = vcombine.low %v5284, %v5288
    %v6663 = vcombine.low %v5292, %v5296
    %v6664 = vcombine.low %v5300, %v5304
    %v6665 = vcombine.low %v5308, %v5312
    %v6667 = vunpack.c.l.s4 1966171168
    %v6668 = vunpack.c.0.s8 %v6667
    %v6669 = vlaneseq
    %v6670 = vshrl.u32 %v6669, 7
    %v6671 = vsub.s32 %v6668, %v6670
    %v6672 = vrot.slane %v6662, %v6671
    %v6674 = vunpack.c.l.s4 1966171168
    %v6675 = vunpack.c.0.s8 %v6674
    %v6676 = vlaneseq
    %v6677 = vshrl.u32 %v6676, 7
    %v6678 = vsub.s32 %v6675, %v6677
    %v6679 = vrot.slane %v6663, %v6678
    %v6681 = vunpack.c.l.s4 1966171168
    %v6682 = vunpack.c.0.s8 %v6681
    %v6683 = vlaneseq
    %v6684 = vshrl.u32 %v6683, 7
    %v6685 = vsub.s32 %v6682, %v6684
    %v6686 = vrot.slane %v6664, %v6685
    %v6688 = vunpack.c.l.s4 1966171168
    %v6689 = vunpack.c.0.s8 %v6688
    %v6690 = vlaneseq
    %v6691 = vshrl.u32 %v6690, 7
    %v6692 = vsub.s32 %v6689, %v6691
    %v6693 = vrot.slane %v6665, %v6692
    %v6694 = vcombine.low %v6672, %v6679
    %v6695 = vcombine.low %v6686, %v6693
    %v6697 = vunpack.c.l.s4 1966171168
    %v6698 = vunpack.c.0.s8 %v6697
    %v6699 = vlaneseq
    %v6700 = vshrl.u32 %v6699, 7
    %v6701 = vsub.s32 %v6698, %v6700
    %v6702 = vrot.slane %v6694, %v6701
    %v6704 = vunpack.c.l.s4 1966171168
    %v6705 = vunpack.c.0.s8 %v6704
    %v6706 = vlaneseq
    %v6707 = vshrl.u32 %v6706, 7
    %v6708 = vsub.s32 %v6705, %v6707
    %v6709 = vrot.slane %v6695, %v6708
    %v6710 = vcombine.low %v6702, %v6709
    %v6711 = vcombine.low %v5316, %v5320
    %v6712 = vcombine.low %v5324, %v5328
    %v6713 = vcombine.low %v5332, %v5336
    %v6714 = vcombine.low %v5340, %v5344
    %v6716 = vunpack.c.l.s4 1966171168
    %v6717 = vunpack.c.0.s8 %v6716
    %v6718 = vlaneseq
    %v6719 = vshrl.u32 %v6718, 7
    %v6720 = vsub.s32 %v6717, %v6719
    %v6721 = vrot.slane %v6711, %v6720
    %v6723 = vunpack.c.l.s4 1966171168
    %v6724 = vunpack.c.0.s8 %v6723
    %v6725 = vlaneseq
    %v6726 = vshrl.u32 %v6725, 7
    %v6727 = vsub.s32 %v6724, %v6726
    %v6728 = vrot.slane %v6712, %v6727
    %v6730 = vunpack.c.l.s4 1966171168
    %v6731 = vunpack.c.0.s8 %v6730
    %v6732 = vlaneseq
    %v6733 = vshrl.u32 %v6732, 7
    %v6734 = vsub.s32 %v6731, %v6733
    %v6735 = vrot.slane %v6713, %v6734
    %v6737 = vunpack.c.l.s4 1966171168
    %v6738 = vunpack.c.0.s8 %v6737
    %v6739 = vlaneseq
    %v6740 = vshrl.u32 %v6739, 7
    %v6741 = vsub.s32 %v6738, %v6740
    %v6742 = vrot.slane %v6714, %v6741
    %v6743 = vcombine.low %v6721, %v6728
    %v6744 = vcombine.low %v6735, %v6742
    %v6746 = vunpack.c.l.s4 1966171168
    %v6747 = vunpack.c.0.s8 %v6746
    %v6748 = vlaneseq
    %v6749 = vshrl.u32 %v6748, 7
    %v6750 = vsub.s32 %v6747, %v6749
    %v6751 = vrot.slane %v6743, %v6750
    %v6753 = vunpack.c.l.s4 1966171168
    %v6754 = vunpack.c.0.s8 %v6753
    %v6755 = vlaneseq
    %v6756 = vshrl.u32 %v6755, 7
    %v6757 = vsub.s32 %v6754, %v6756
    %v6758 = vrot.slane %v6744, %v6757
    %v6759 = vcombine.low %v6751, %v6758
    %v6760 = vcombine.low %v5348, %v5352
    %v6761 = vcombine.low %v5356, %v5360
    %v6762 = vcombine.low %v5364, %v5368
    %v6763 = vcombine.low %v5372, %v5376
    %v6765 = vunpack.c.l.s4 1966171168
    %v6766 = vunpack.c.0.s8 %v6765
    %v6767 = vlaneseq
    %v6768 = vshrl.u32 %v6767, 7
    %v6769 = vsub.s32 %v6766, %v6768
    %v6770 = vrot.slane %v6760, %v6769
    %v6772 = vunpack.c.l.s4 1966171168
    %v6773 = vunpack.c.0.s8 %v6772
    %v6774 = vlaneseq
    %v6775 = vshrl.u32 %v6774, 7
    %v6776 = vsub.s32 %v6773, %v6775
    %v6777 = vrot.slane %v6761, %v6776
    %v6779 = vunpack.c.l.s4 1966171168
    %v6780 = vunpack.c.0.s8 %v6779
    %v6781 = vlaneseq
    %v6782 = vshrl.u32 %v6781, 7
    %v6783 = vsub.s32 %v6780, %v6782
    %v6784 = vrot.slane %v6762, %v6783
    %v6786 = vunpack.c.l.s4 1966171168
    %v6787 = vunpack.c.0.s8 %v6786
    %v6788 = vlaneseq
    %v6789 = vshrl.u32 %v6788, 7
    %v6790 = vsub.s32 %v6787, %v6789
    %v6791 = vrot.slane %v6763, %v6790
    %v6792 = vcombine.low %v6770, %v6777
    %v6793 = vcombine.low %v6784, %v6791
    %v6795 = vunpack.c.l.s4 1966171168
    %v6796 = vunpack.c.0.s8 %v6795
    %v6797 = vlaneseq
    %v6798 = vshrl.u32 %v6797, 7
    %v6799 = vsub.s32 %v6796, %v6798
    %v6800 = vrot.slane %v6792, %v6799
    %v6802 = vunpack.c.l.s4 1966171168
    %v6803 = vunpack.c.0.s8 %v6802
    %v6804 = vlaneseq
    %v6805 = vshrl.u32 %v6804, 7
    %v6806 = vsub.s32 %v6803, %v6805
    %v6807 = vrot.slane %v6793, %v6806
    %v6808 = vcombine.low %v6800, %v6807
    %v6809 = vcombine.low %v5380, %v5384
    %v6810 = vcombine.low %v5388, %v5392
    %v6811 = vcombine.low %v5396, %v5400
    %v6812 = vcombine.low %v5404, %v5408
    %v6814 = vunpack.c.l.s4 1966171168
    %v6815 = vunpack.c.0.s8 %v6814
    %v6816 = vlaneseq
    %v6817 = vshrl.u32 %v6816, 7
    %v6818 = vsub.s32 %v6815, %v6817
    %v6819 = vrot.slane %v6809, %v6818
    %v6821 = vunpack.c.l.s4 1966171168
    %v6822 = vunpack.c.0.s8 %v6821
    %v6823 = vlaneseq
    %v6824 = vshrl.u32 %v6823, 7
    %v6825 = vsub.s32 %v6822, %v6824
    %v6826 = vrot.slane %v6810, %v6825
    %v6828 = vunpack.c.l.s4 1966171168
    %v6829 = vunpack.c.0.s8 %v6828
    %v6830 = vlaneseq
    %v6831 = vshrl.u32 %v6830, 7
    %v6832 = vsub.s32 %v6829, %v6831
    %v6833 = vrot.slane %v6811, %v6832
    %v6835 = vunpack.c.l.s4 1966171168
    %v6836 = vunpack.c.0.s8 %v6835
    %v6837 = vlaneseq
    %v6838 = vshrl.u32 %v6837, 7
    %v6839 = vsub.s32 %v6836, %v6838
    %v6840 = vrot.slane %v6812, %v6839
    %v6841 = vcombine.low %v6819, %v6826
    %v6842 = vcombine.low %v6833, %v6840
    %v6844 = vunpack.c.l.s4 1966171168
    %v6845 = vunpack.c.0.s8 %v6844
    %v6846 = vlaneseq
    %v6847 = vshrl.u32 %v6846, 7
    %v6848 = vsub.s32 %v6845, %v6847
    %v6849 = vrot.slane %v6841, %v6848
    %v6851 = vunpack.c.l.s4 1966171168
    %v6852 = vunpack.c.0.s8 %v6851
    %v6853 = vlaneseq
    %v6854 = vshrl.u32 %v6853, 7
    %v6855 = vsub.s32 %v6852, %v6854
    %v6856 = vrot.slane %v6842, %v6855
    %v6857 = vcombine.low %v6849, %v6856
    %v6858 = vcombine.low %v5412, %v5416
    %v6859 = vcombine.low %v5420, %v5424
    %v6860 = vcombine.low %v5428, %v5432
    %v6861 = vcombine.low %v5436, %v5440
    %v6863 = vunpack.c.l.s4 1966171168
    %v6864 = vunpack.c.0.s8 %v6863
    %v6865 = vlaneseq
    %v6866 = vshrl.u32 %v6865, 7
    %v6867 = vsub.s32 %v6864, %v6866
    %v6868 = vrot.slane %v6858, %v6867
    %v6870 = vunpack.c.l.s4 1966171168
    %v6871 = vunpack.c.0.s8 %v6870
    %v6872 = vlaneseq
    %v6873 = vshrl.u32 %v6872, 7
    %v6874 = vsub.s32 %v6871, %v6873
    %v6875 = vrot.slane %v6859, %v6874
    %v6877 = vunpack.c.l.s4 1966171168
    %v6878 = vunpack.c.0.s8 %v6877
    %v6879 = vlaneseq
    %v6880 = vshrl.u32 %v6879, 7
    %v6881 = vsub.s32 %v6878, %v6880
    %v6882 = vrot.slane %v6860, %v6881
    %v6884 = vunpack.c.l.s4 1966171168
    %v6885 = vunpack.c.0.s8 %v6884
    %v6886 = vlaneseq
    %v6887 = vshrl.u32 %v6886, 7
    %v6888 = vsub.s32 %v6885, %v6887
    %v6889 = vrot.slane %v6861, %v6888
    %v6890 = vcombine.low %v6868, %v6875
    %v6891 = vcombine.low %v6882, %v6889
    %v6893 = vunpack.c.l.s4 1966171168
    %v6894 = vunpack.c.0.s8 %v6893
    %v6895 = vlaneseq
    %v6896 = vshrl.u32 %v6895, 7
    %v6897 = vsub.s32 %v6894, %v6896
    %v6898 = vrot.slane %v6890, %v6897
    %v6900 = vunpack.c.l.s4 1966171168
    %v6901 = vunpack.c.0.s8 %v6900
    %v6902 = vlaneseq
    %v6903 = vshrl.u32 %v6902, 7
    %v6904 = vsub.s32 %v6901, %v6903
    %v6905 = vrot.slane %v6891, %v6904
    %v6906 = vcombine.low %v6898, %v6905
    %v6907 = vcombine.low %v5444, %v5448
    %v6908 = vcombine.low %v5452, %v5456
    %v6909 = vcombine.low %v5460, %v5464
    %v6910 = vcombine.low %v5468, %v5472
    %v6912 = vunpack.c.l.s4 1966171168
    %v6913 = vunpack.c.0.s8 %v6912
    %v6914 = vlaneseq
    %v6915 = vshrl.u32 %v6914, 7
    %v6916 = vsub.s32 %v6913, %v6915
    %v6917 = vrot.slane %v6907, %v6916
    %v6919 = vunpack.c.l.s4 1966171168
    %v6920 = vunpack.c.0.s8 %v6919
    %v6921 = vlaneseq
    %v6922 = vshrl.u32 %v6921, 7
    %v6923 = vsub.s32 %v6920, %v6922
    %v6924 = vrot.slane %v6908, %v6923
    %v6926 = vunpack.c.l.s4 1966171168
    %v6927 = vunpack.c.0.s8 %v6926
    %v6928 = vlaneseq
    %v6929 = vshrl.u32 %v6928, 7
    %v6930 = vsub.s32 %v6927, %v6929
    %v6931 = vrot.slane %v6909, %v6930
    %v6933 = vunpack.c.l.s4 1966171168
    %v6934 = vunpack.c.0.s8 %v6933
    %v6935 = vlaneseq
    %v6936 = vshrl.u32 %v6935, 7
    %v6937 = vsub.s32 %v6934, %v6936
    %v6938 = vrot.slane %v6910, %v6937
    %v6939 = vcombine.low %v6917, %v6924
    %v6940 = vcombine.low %v6931, %v6938
    %v6942 = vunpack.c.l.s4 1966171168
    %v6943 = vunpack.c.0.s8 %v6942
    %v6944 = vlaneseq
    %v6945 = vshrl.u32 %v6944, 7
    %v6946 = vsub.s32 %v6943, %v6945
    %v6947 = vrot.slane %v6939, %v6946
    %v6949 = vunpack.c.l.s4 1966171168
    %v6950 = vunpack.c.0.s8 %v6949
    %v6951 = vlaneseq
    %v6952 = vshrl.u32 %v6951, 7
    %v6953 = vsub.s32 %v6950, %v6952
    %v6954 = vrot.slane %v6940, %v6953
    %v6955 = vcombine.low %v6947, %v6954
    %v6956 = vcombine.low %v5476, %v5480
    %v6957 = vcombine.low %v5484, %v5488
    %v6958 = vcombine.low %v5492, %v5496
    %v6959 = vcombine.low %v5500, %v5504
    %v6961 = vunpack.c.l.s4 1966171168
    %v6962 = vunpack.c.0.s8 %v6961
    %v6963 = vlaneseq
    %v6964 = vshrl.u32 %v6963, 7
    %v6965 = vsub.s32 %v6962, %v6964
    %v6966 = vrot.slane %v6956, %v6965
    %v6968 = vunpack.c.l.s4 1966171168
    %v6969 = vunpack.c.0.s8 %v6968
    %v6970 = vlaneseq
    %v6971 = vshrl.u32 %v6970, 7
    %v6972 = vsub.s32 %v6969, %v6971
    %v6973 = vrot.slane %v6957, %v6972
    %v6975 = vunpack.c.l.s4 1966171168
    %v6976 = vunpack.c.0.s8 %v6975
    %v6977 = vlaneseq
    %v6978 = vshrl.u32 %v6977, 7
    %v6979 = vsub.s32 %v6976, %v6978
    %v6980 = vrot.slane %v6958, %v6979
    %v6982 = vunpack.c.l.s4 1966171168
    %v6983 = vunpack.c.0.s8 %v6982
    %v6984 = vlaneseq
    %v6985 = vshrl.u32 %v6984, 7
    %v6986 = vsub.s32 %v6983, %v6985
    %v6987 = vrot.slane %v6959, %v6986
    %v6988 = vcombine.low %v6966, %v6973
    %v6989 = vcombine.low %v6980, %v6987
    %v6991 = vunpack.c.l.s4 1966171168
    %v6992 = vunpack.c.0.s8 %v6991
    %v6993 = vlaneseq
    %v6994 = vshrl.u32 %v6993, 7
    %v6995 = vsub.s32 %v6992, %v6994
    %v6996 = vrot.slane %v6988, %v6995
    %v6998 = vunpack.c.l.s4 1966171168
    %v6999 = vunpack.c.0.s8 %v6998
    %v7000 = vlaneseq
    %v7001 = vshrl.u32 %v7000, 7
    %v7002 = vsub.s32 %v6999, %v7001
    %v7003 = vrot.slane %v6989, %v7002
    %v7004 = vcombine.low %v6996, %v7003
    %v7005 = vcombine.low %v5508, %v5512
    %v7006 = vcombine.low %v5516, %v5520
    %v7007 = vcombine.low %v5524, %v5528
    %v7008 = vcombine.low %v5532, %v5536
    %v7010 = vunpack.c.l.s4 1966171168
    %v7011 = vunpack.c.0.s8 %v7010
    %v7012 = vlaneseq
    %v7013 = vshrl.u32 %v7012, 7
    %v7014 = vsub.s32 %v7011, %v7013
    %v7015 = vrot.slane %v7005, %v7014
    %v7017 = vunpack.c.l.s4 1966171168
    %v7018 = vunpack.c.0.s8 %v7017
    %v7019 = vlaneseq
    %v7020 = vshrl.u32 %v7019, 7
    %v7021 = vsub.s32 %v7018, %v7020
    %v7022 = vrot.slane %v7006, %v7021
    %v7024 = vunpack.c.l.s4 1966171168
    %v7025 = vunpack.c.0.s8 %v7024
    %v7026 = vlaneseq
    %v7027 = vshrl.u32 %v7026, 7
    %v7028 = vsub.s32 %v7025, %v7027
    %v7029 = vrot.slane %v7007, %v7028
    %v7031 = vunpack.c.l.s4 1966171168
    %v7032 = vunpack.c.0.s8 %v7031
    %v7033 = vlaneseq
    %v7034 = vshrl.u32 %v7033, 7
    %v7035 = vsub.s32 %v7032, %v7034
    %v7036 = vrot.slane %v7008, %v7035
    %v7037 = vcombine.low %v7015, %v7022
    %v7038 = vcombine.low %v7029, %v7036
    %v7040 = vunpack.c.l.s4 1966171168
    %v7041 = vunpack.c.0.s8 %v7040
    %v7042 = vlaneseq
    %v7043 = vshrl.u32 %v7042, 7
    %v7044 = vsub.s32 %v7041, %v7043
    %v7045 = vrot.slane %v7037, %v7044
    %v7047 = vunpack.c.l.s4 1966171168
    %v7048 = vunpack.c.0.s8 %v7047
    %v7049 = vlaneseq
    %v7050 = vshrl.u32 %v7049, 7
    %v7051 = vsub.s32 %v7048, %v7050
    %v7052 = vrot.slane %v7038, %v7051
    %v7053 = vcombine.low %v7045, %v7052
    %v7054 = vcombine.low %v5540, %v5544
    %v7055 = vcombine.low %v5548, %v5552
    %v7056 = vcombine.low %v5556, %v5560
    %v7057 = vcombine.low %v5564, %v5568
    %v7059 = vunpack.c.l.s4 1966171168
    %v7060 = vunpack.c.0.s8 %v7059
    %v7061 = vlaneseq
    %v7062 = vshrl.u32 %v7061, 7
    %v7063 = vsub.s32 %v7060, %v7062
    %v7064 = vrot.slane %v7054, %v7063
    %v7066 = vunpack.c.l.s4 1966171168
    %v7067 = vunpack.c.0.s8 %v7066
    %v7068 = vlaneseq
    %v7069 = vshrl.u32 %v7068, 7
    %v7070 = vsub.s32 %v7067, %v7069
    %v7071 = vrot.slane %v7055, %v7070
    %v7073 = vunpack.c.l.s4 1966171168
    %v7074 = vunpack.c.0.s8 %v7073
    %v7075 = vlaneseq
    %v7076 = vshrl.u32 %v7075, 7
    %v7077 = vsub.s32 %v7074, %v7076
    %v7078 = vrot.slane %v7056, %v7077
    %v7080 = vunpack.c.l.s4 1966171168
    %v7081 = vunpack.c.0.s8 %v7080
    %v7082 = vlaneseq
    %v7083 = vshrl.u32 %v7082, 7
    %v7084 = vsub.s32 %v7081, %v7083
    %v7085 = vrot.slane %v7057, %v7084
    %v7086 = vcombine.low %v7064, %v7071
    %v7087 = vcombine.low %v7078, %v7085
    %v7089 = vunpack.c.l.s4 1966171168
    %v7090 = vunpack.c.0.s8 %v7089
    %v7091 = vlaneseq
    %v7092 = vshrl.u32 %v7091, 7
    %v7093 = vsub.s32 %v7090, %v7092
    %v7094 = vrot.slane %v7086, %v7093
    %v7096 = vunpack.c.l.s4 1966171168
    %v7097 = vunpack.c.0.s8 %v7096
    %v7098 = vlaneseq
    %v7099 = vshrl.u32 %v7098, 7
    %v7100 = vsub.s32 %v7097, %v7099
    %v7101 = vrot.slane %v7087, %v7100
    %v7102 = vcombine.low %v7094, %v7101
    %v7103 = vcombine.low %v5572, %v5576
    %v7104 = vcombine.low %v5580, %v5584
    %v7105 = vcombine.low %v5588, %v5592
    %v7106 = vcombine.low %v5596, %v5600
    %v7108 = vunpack.c.l.s4 1966171168
    %v7109 = vunpack.c.0.s8 %v7108
    %v7110 = vlaneseq
    %v7111 = vshrl.u32 %v7110, 7
    %v7112 = vsub.s32 %v7109, %v7111
    %v7113 = vrot.slane %v7103, %v7112
    %v7115 = vunpack.c.l.s4 1966171168
    %v7116 = vunpack.c.0.s8 %v7115
    %v7117 = vlaneseq
    %v7118 = vshrl.u32 %v7117, 7
    %v7119 = vsub.s32 %v7116, %v7118
    %v7120 = vrot.slane %v7104, %v7119
    %v7122 = vunpack.c.l.s4 1966171168
    %v7123 = vunpack.c.0.s8 %v7122
    %v7124 = vlaneseq
    %v7125 = vshrl.u32 %v7124, 7
    %v7126 = vsub.s32 %v7123, %v7125
    %v7127 = vrot.slane %v7105, %v7126
    %v7129 = vunpack.c.l.s4 1966171168
    %v7130 = vunpack.c.0.s8 %v7129
    %v7131 = vlaneseq
    %v7132 = vshrl.u32 %v7131, 7
    %v7133 = vsub.s32 %v7130, %v7132
    %v7134 = vrot.slane %v7106, %v7133
    %v7135 = vcombine.low %v7113, %v7120
    %v7136 = vcombine.low %v7127, %v7134
    %v7138 = vunpack.c.l.s4 1966171168
    %v7139 = vunpack.c.0.s8 %v7138
    %v7140 = vlaneseq
    %v7141 = vshrl.u32 %v7140, 7
    %v7142 = vsub.s32 %v7139, %v7141
    %v7143 = vrot.slane %v7135, %v7142
    %v7145 = vunpack.c.l.s4 1966171168
    %v7146 = vunpack.c.0.s8 %v7145
    %v7147 = vlaneseq
    %v7148 = vshrl.u32 %v7147, 7
    %v7149 = vsub.s32 %v7146, %v7148
    %v7150 = vrot.slane %v7136, %v7149
    %v7151 = vcombine.low %v7143, %v7150
    %v7152 = vcombine.low %v5604, %v5608
    %v7153 = vcombine.low %v5612, %v5616
    %v7154 = vcombine.low %v5620, %v5624
    %v7155 = vcombine.low %v5628, %v5632
    %v7157 = vunpack.c.l.s4 1966171168
    %v7158 = vunpack.c.0.s8 %v7157
    %v7159 = vlaneseq
    %v7160 = vshrl.u32 %v7159, 7
    %v7161 = vsub.s32 %v7158, %v7160
    %v7162 = vrot.slane %v7152, %v7161
    %v7164 = vunpack.c.l.s4 1966171168
    %v7165 = vunpack.c.0.s8 %v7164
    %v7166 = vlaneseq
    %v7167 = vshrl.u32 %v7166, 7
    %v7168 = vsub.s32 %v7165, %v7167
    %v7169 = vrot.slane %v7153, %v7168
    %v7171 = vunpack.c.l.s4 1966171168
    %v7172 = vunpack.c.0.s8 %v7171
    %v7173 = vlaneseq
    %v7174 = vshrl.u32 %v7173, 7
    %v7175 = vsub.s32 %v7172, %v7174
    %v7176 = vrot.slane %v7154, %v7175
    %v7178 = vunpack.c.l.s4 1966171168
    %v7179 = vunpack.c.0.s8 %v7178
    %v7180 = vlaneseq
    %v7181 = vshrl.u32 %v7180, 7
    %v7182 = vsub.s32 %v7179, %v7181
    %v7183 = vrot.slane %v7155, %v7182
    %v7184 = vcombine.low %v7162, %v7169
    %v7185 = vcombine.low %v7176, %v7183
    %v7187 = vunpack.c.l.s4 1966171168
    %v7188 = vunpack.c.0.s8 %v7187
    %v7189 = vlaneseq
    %v7190 = vshrl.u32 %v7189, 7
    %v7191 = vsub.s32 %v7188, %v7190
    %v7192 = vrot.slane %v7184, %v7191
    %v7194 = vunpack.c.l.s4 1966171168
    %v7195 = vunpack.c.0.s8 %v7194
    %v7196 = vlaneseq
    %v7197 = vshrl.u32 %v7196, 7
    %v7198 = vsub.s32 %v7195, %v7197
    %v7199 = vrot.slane %v7185, %v7198
    %v7200 = vcombine.low %v7192, %v7199
    %7201 = vset.pattern.permute.xlu0 0
    %7202 = vperm.xlu0 %7201, %v5681
    %v7203 = vpop.permute.xlu0 %7202
    %7204 = vset.pattern.permute.xlu0 0
    %7205 = vperm.xlu0 %7204, %v5730
    %v7206 = vpop.permute.xlu0 %7205
    %7207 = vset.pattern.permute.xlu0 0
    %7208 = vperm.xlu0 %7207, %v5779
    %v7209 = vpop.permute.xlu0 %7208
    %7210 = vset.pattern.permute.xlu0 0
    %7211 = vperm.xlu0 %7210, %v5828
    %v7212 = vpop.permute.xlu0 %7211
    %7213 = vset.pattern.permute.xlu0 0
    %7214 = vperm.xlu0 %7213, %v5877
    %v7215 = vpop.permute.xlu0 %7214
    %7216 = vset.pattern.permute.xlu0 0
    %7217 = vperm.xlu0 %7216, %v5926
    %v7218 = vpop.permute.xlu0 %7217
    %7219 = vset.pattern.permute.xlu0 0
    %7220 = vperm.xlu0 %7219, %v5975
    %v7221 = vpop.permute.xlu0 %7220
    %7222 = vset.pattern.permute.xlu0 0
    %7223 = vperm.xlu0 %7222, %v6024
    %v7224 = vpop.permute.xlu0 %7223
    %7225 = vset.pattern.permute.xlu0 0
    %7226 = vperm.xlu0 %7225, %v6073
    %v7227 = vpop.permute.xlu0 %7226
    %7228 = vset.pattern.permute.xlu0 0
    %7229 = vperm.xlu0 %7228, %v6122
    %v7230 = vpop.permute.xlu0 %7229
    %7231 = vset.pattern.permute.xlu0 0
    %7232 = vperm.xlu0 %7231, %v6171
    %v7233 = vpop.permute.xlu0 %7232
    %7234 = vset.pattern.permute.xlu0 0
    %7235 = vperm.xlu0 %7234, %v6220
    %v7236 = vpop.permute.xlu0 %7235
    %7237 = vset.pattern.permute.xlu0 0
    %7238 = vperm.xlu0 %7237, %v6269
    %v7239 = vpop.permute.xlu0 %7238
    %7240 = vset.pattern.permute.xlu0 0
    %7241 = vperm.xlu0 %7240, %v6318
    %v7242 = vpop.permute.xlu0 %7241
    %7243 = vset.pattern.permute.xlu0 0
    %7244 = vperm.xlu0 %7243, %v6367
    %v7245 = vpop.permute.xlu0 %7244
    %7246 = vset.pattern.permute.xlu0 0
    %7247 = vperm.xlu0 %7246, %v6416
    %v7248 = vpop.permute.xlu0 %7247
    %7249 = vset.pattern.permute.xlu0 0
    %7250 = vperm.xlu0 %7249, %v6465
    %v7251 = vpop.permute.xlu0 %7250
    %7252 = vset.pattern.permute.xlu0 0
    %7253 = vperm.xlu0 %7252, %v6514
    %v7254 = vpop.permute.xlu0 %7253
    %7255 = vset.pattern.permute.xlu0 0
    %7256 = vperm.xlu0 %7255, %v6563
    %v7257 = vpop.permute.xlu0 %7256
    %7258 = vset.pattern.permute.xlu0 0
    %7259 = vperm.xlu0 %7258, %v6612
    %v7260 = vpop.permute.xlu0 %7259
    %7261 = vset.pattern.permute.xlu0 0
    %7262 = vperm.xlu0 %7261, %v6661
    %v7263 = vpop.permute.xlu0 %7262
    %7264 = vset.pattern.permute.xlu0 0
    %7265 = vperm.xlu0 %7264, %v6710
    %v7266 = vpop.permute.xlu0 %7265
    %7267 = vset.pattern.permute.xlu0 0
    %7268 = vperm.xlu0 %7267, %v6759
    %v7269 = vpop.permute.xlu0 %7268
    %7270 = vset.pattern.permute.xlu0 0
    %7271 = vperm.xlu0 %7270, %v6808
    %v7272 = vpop.permute.xlu0 %7271
    %7273 = vset.pattern.permute.xlu0 0
    %7274 = vperm.xlu0 %7273, %v6857
    %v7275 = vpop.permute.xlu0 %7274
    %7276 = vset.pattern.permute.xlu0 0
    %7277 = vperm.xlu0 %7276, %v6906
    %v7278 = vpop.permute.xlu0 %7277
    %7279 = vset.pattern.permute.xlu0 0
    %7280 = vperm.xlu0 %7279, %v6955
    %v7281 = vpop.permute.xlu0 %7280
    %7282 = vset.pattern.permute.xlu0 0
    %7283 = vperm.xlu0 %7282, %v7004
    %v7284 = vpop.permute.xlu0 %7283
    %7285 = vset.pattern.permute.xlu0 0
    %7286 = vperm.xlu0 %7285, %v7053
    %v7287 = vpop.permute.xlu0 %7286
    %7288 = vset.pattern.permute.xlu0 0
    %7289 = vperm.xlu0 %7288, %v7102
    %v7290 = vpop.permute.xlu0 %7289
    %7291 = vset.pattern.permute.xlu0 0
    %7292 = vperm.xlu0 %7291, %v7151
    %v7293 = vpop.permute.xlu0 %7292
    %7294 = vset.pattern.permute.xlu0 0
    %7295 = vperm.xlu0 %7294, %v7200
    %v7296 = vpop.permute.xlu0 %7295
    %v7297 = vlaneseq
    %v7298 = vshrl.u32 %v7297, 7
    %v7299 = vsub.s32 %v3565, %v7298
    %v7300 = vrot.slane %v7203, %v7299
    %v7301 = vlaneseq
    %v7302 = vshrl.u32 %v7301, 7
    %v7303 = vsub.s32 %v3570, %v7302
    %v7304 = vrot.slane %v7206, %v7303
    %v7305 = vsel %vm3575, %v7304, %v7300
    %v7306 = vlaneseq
    %v7307 = vshrl.u32 %v7306, 7
    %v7308 = vsub.s32 %v3577, %v7307
    %v7309 = vrot.slane %v7209, %v7308
    %v7310 = vsel %vm3582, %v7309, %v7305
    %v7311 = vlaneseq
    %v7312 = vshrl.u32 %v7311, 7
    %v7313 = vsub.s32 %v3584, %v7312
    %v7314 = vrot.slane %v7212, %v7313
    %v7315 = vsel %vm3589, %v7314, %v7310
    %v7316 = vlaneseq
    %v7317 = vshrl.u32 %v7316, 7
    %v7318 = vsub.s32 %v3591, %v7317
    %v7319 = vrot.slane %v7215, %v7318
    %v7320 = vsel %vm3596, %v7319, %v7315
    %v7321 = vlaneseq
    %v7322 = vshrl.u32 %v7321, 7
    %v7323 = vsub.s32 %v3598, %v7322
    %v7324 = vrot.slane %v7218, %v7323
    %v7325 = vsel %vm3603, %v7324, %v7320
    %v7326 = vlaneseq
    %v7327 = vshrl.u32 %v7326, 7
    %v7328 = vsub.s32 %v3605, %v7327
    %v7329 = vrot.slane %v7221, %v7328
    %v7330 = vsel %vm3610, %v7329, %v7325
    %v7331 = vlaneseq
    %v7332 = vshrl.u32 %v7331, 7
    %v7333 = vsub.s32 %v3612, %v7332
    %v7334 = vrot.slane %v7224, %v7333
    %v7335 = vsel %vm3617, %v7334, %v7330
    %v7336 = vlaneseq
    %v7337 = vshrl.u32 %v7336, 7
    %v7338 = vsub.s32 %v3619, %v7337
    %v7339 = vrot.slane %v7227, %v7338
    %v7340 = vsel %vm3624, %v7339, %v7335
    %v7341 = vlaneseq
    %v7342 = vshrl.u32 %v7341, 7
    %v7343 = vsub.s32 %v3626, %v7342
    %v7344 = vrot.slane %v7230, %v7343
    %v7345 = vsel %vm3631, %v7344, %v7340
    %v7346 = vlaneseq
    %v7347 = vshrl.u32 %v7346, 7
    %v7348 = vsub.s32 %v3633, %v7347
    %v7349 = vrot.slane %v7233, %v7348
    %v7350 = vsel %vm3638, %v7349, %v7345
    %v7351 = vlaneseq
    %v7352 = vshrl.u32 %v7351, 7
    %v7353 = vsub.s32 %v3640, %v7352
    %v7354 = vrot.slane %v7236, %v7353
    %v7355 = vsel %vm3645, %v7354, %v7350
    %v7356 = vlaneseq
    %v7357 = vshrl.u32 %v7356, 7
    %v7358 = vsub.s32 %v3647, %v7357
    %v7359 = vrot.slane %v7239, %v7358
    %v7360 = vsel %vm3652, %v7359, %v7355
    %v7361 = vlaneseq
    %v7362 = vshrl.u32 %v7361, 7
    %v7363 = vsub.s32 %v3654, %v7362
    %v7364 = vrot.slane %v7242, %v7363
    %v7365 = vsel %vm3659, %v7364, %v7360
    %v7366 = vlaneseq
    %v7367 = vshrl.u32 %v7366, 7
    %v7368 = vsub.s32 %v3661, %v7367
    %v7369 = vrot.slane %v7245, %v7368
    %v7370 = vsel %vm3666, %v7369, %v7365
    %v7371 = vlaneseq
    %v7372 = vshrl.u32 %v7371, 7
    %v7373 = vsub.s32 %v3668, %v7372
    %v7374 = vrot.slane %v7248, %v7373
    %v7375 = vsel %vm3673, %v7374, %v7370
    %v7376 = vlaneseq
    %v7377 = vshrl.u32 %v7376, 7
    %v7378 = vsub.s32 %v3565, %v7377
    %v7379 = vrot.slane %v7251, %v7378
    %v7380 = vlaneseq
    %v7381 = vshrl.u32 %v7380, 7
    %v7382 = vsub.s32 %v3570, %v7381
    %v7383 = vrot.slane %v7254, %v7382
    %v7384 = vsel %vm3575, %v7383, %v7379
    %v7385 = vlaneseq
    %v7386 = vshrl.u32 %v7385, 7
    %v7387 = vsub.s32 %v3577, %v7386
    %v7388 = vrot.slane %v7257, %v7387
    %v7389 = vsel %vm3582, %v7388, %v7384
    %v7390 = vlaneseq
    %v7391 = vshrl.u32 %v7390, 7
    %v7392 = vsub.s32 %v3584, %v7391
    %v7393 = vrot.slane %v7260, %v7392
    %v7394 = vsel %vm3589, %v7393, %v7389
    %v7395 = vlaneseq
    %v7396 = vshrl.u32 %v7395, 7
    %v7397 = vsub.s32 %v3591, %v7396
    %v7398 = vrot.slane %v7263, %v7397
    %v7399 = vsel %vm3596, %v7398, %v7394
    %v7400 = vlaneseq
    %v7401 = vshrl.u32 %v7400, 7
    %v7402 = vsub.s32 %v3598, %v7401
    %v7403 = vrot.slane %v7266, %v7402
    %v7404 = vsel %vm3603, %v7403, %v7399
    %v7405 = vlaneseq
    %v7406 = vshrl.u32 %v7405, 7
    %v7407 = vsub.s32 %v3605, %v7406
    %v7408 = vrot.slane %v7269, %v7407
    %v7409 = vsel %vm3610, %v7408, %v7404
    %v7410 = vlaneseq
    %v7411 = vshrl.u32 %v7410, 7
    %v7412 = vsub.s32 %v3612, %v7411
    %v7413 = vrot.slane %v7272, %v7412
    %v7414 = vsel %vm3617, %v7413, %v7409
    %v7415 = vlaneseq
    %v7416 = vshrl.u32 %v7415, 7
    %v7417 = vsub.s32 %v3619, %v7416
    %v7418 = vrot.slane %v7275, %v7417
    %v7419 = vsel %vm3624, %v7418, %v7414
    %v7420 = vlaneseq
    %v7421 = vshrl.u32 %v7420, 7
    %v7422 = vsub.s32 %v3626, %v7421
    %v7423 = vrot.slane %v7278, %v7422
    %v7424 = vsel %vm3631, %v7423, %v7419
    %v7425 = vlaneseq
    %v7426 = vshrl.u32 %v7425, 7
    %v7427 = vsub.s32 %v3633, %v7426
    %v7428 = vrot.slane %v7281, %v7427
    %v7429 = vsel %vm3638, %v7428, %v7424
    %v7430 = vlaneseq
    %v7431 = vshrl.u32 %v7430, 7
    %v7432 = vsub.s32 %v3640, %v7431
    %v7433 = vrot.slane %v7284, %v7432
    %v7434 = vsel %vm3645, %v7433, %v7429
    %v7435 = vlaneseq
    %v7436 = vshrl.u32 %v7435, 7
    %v7437 = vsub.s32 %v3647, %v7436
    %v7438 = vrot.slane %v7287, %v7437
    %v7439 = vsel %vm3652, %v7438, %v7434
    %v7440 = vlaneseq
    %v7441 = vshrl.u32 %v7440, 7
    %v7442 = vsub.s32 %v3654, %v7441
    %v7443 = vrot.slane %v7290, %v7442
    %v7444 = vsel %vm3659, %v7443, %v7439
    %v7445 = vlaneseq
    %v7446 = vshrl.u32 %v7445, 7
    %v7447 = vsub.s32 %v3661, %v7446
    %v7448 = vrot.slane %v7293, %v7447
    %v7449 = vsel %vm3666, %v7448, %v7444
    %v7450 = vlaneseq
    %v7451 = vshrl.u32 %v7450, 7
    %v7452 = vsub.s32 %v3668, %v7451
    %v7453 = vrot.slane %v7296, %v7452
    %v7454 = vsel %vm3673, %v7453, %v7449
    %v7455 = vcombine.low %v7375, %v7454
    %v7457 = vunpack.c.l.s4 1966171168
    %v7458 = vunpack.c.0.s8 %v7457
    %v7459 = vlaneseq
    %v7460 = vshrl.u32 %v7459, 7
    %v7461 = vsub.s32 %v7458, %v7460
    %v7462 = vrot.slane %v7455, %v7461
    %v7464 = vunpack.c.l.s4 1966171168
    %v7465 = vunpack.c.0.s8 %v7464
    %v7466 = vlaneseq
    %v7467 = vshrl.u32 %v7466, 7
    %v7468 = vsub.s32 %v7465, %v7467
    %v7469 = vrot.slane %v7462, %v7468
    %s7471 = scalar_lea.vmem [#allocation3], 2
    %7472 = vst.msk [vmem:[%s7471] sm:$0x3] %vm3773, %v7469
    // Predicated region
    $region22: #{tpu_custom_call.1} parent=1 // pred_check
      _
    $region23: #{tpu_custom_call.1} parent=1 // pred_check_branch
      %7474 = sbr.rel (0) target = $region25
    $region24: #{tpu_custom_call.1} parent=1 // pred_region
      %s7476 = ssub.s32 64, 64
      %7477 = vsyncadd [#allocation4], %s7476
      %s7479 = sshll.u32 [#allocation3], 4
      %s7480 = int_to_ptr.vmem [resolvable:$true] %s7479
      %7482 = dma.vmem_to_hbm [thread:$0]  %s7480, 64, %s5, [#allocation4]
    $region25: #{tpu_custom_call.1} parent=1 // pred_fallthru
      _
    // Predicated region
    $region26: #{tpu_custom_call.1} parent=1 // pred_check
      _
    $region27: #{tpu_custom_call.1} parent=1 // pred_check_branch
      %7484 = sbr.rel (0) target = $region29
    $region28: #{tpu_custom_call.1} parent=1 // pred_region
      %7485 = dma.done [#allocation4], 64
    $region29: #{tpu_custom_call.1} parent=1 // pred_fallthru
      _
    %7486 = vsyncpa [#allocation4], 1

</llo_original>
